<compile_context>
chip_gen: v7x
topology: tpu7x:2x2x1
jax: 0.10.0
libtpu: 0.0.40
codegen_flags: <defaults>
</compile_context>

<pallas_src>
import functools

import jax
import jax.numpy as jnp
from jax.experimental import pallas as pl
from jax.experimental.pallas import tpu as pltpu

_MIB = 1024 * 1024


def _round_up(x, m):
    return ((x + m - 1) // m) * m


def _vmem_capacity_bytes():
    try:
        return int(pltpu.get_tpu_info().vmem_capacity_bytes)
    except Exception:
        return 64 * _MIB  # conservative (v7x per-TensorCore VMEM)


def _vmem_estimate_bytes(b_blk, t_blk, i_pad, h_pad, itemsize):
    gi_scratch = t_blk * b_blk * 3 * h_pad * 4        # f32 time-major gi scratch
    gi_transient = gi_scratch                          # matmul result before relayout
    x_tiles = 2 * b_blk * t_blk * i_pad * itemsize     # double-buffered input slab
    weights = (i_pad + h_pad) * 3 * h_pad * itemsize   # resident, single-buffered
    small = 8 * h_pad * 4 + 3 * b_blk * h_pad * 4      # biases + h scratch + out bufs
    return gi_scratch + gi_transient + x_tiles + weights + small


def _pick_b_blk(b_pad, cap=256):
    # <=256 rows (v6e/v7x MXU height); keep >=2 batch blocks when possible so
    # the "parallel" grid axis can shard across v7x's two TensorCores.
    cands = [c for c in range(8, min(cap, b_pad) + 1, 8) if b_pad % c == 0]
    if b_pad >= 16:
        two = [c for c in cands if b_pad // c >= 2]
        if two:
            return max(two)
    return max(cands)


def _gru_kernel(*refs, t_blk, h_pad, seq_len, masked, fold_bias, unroll):
    """One grid step == one (batch-block, time-block) tile.

    refs (fold_bias=True):  x, W_ih, W_hh, b_hn, out, gi_scratch, h_scratch
    refs (fold_bias=False): x, W_ih, W_hh, b_rzn, b_hn, out, gi_scratch, h_scratch

      x    : (B_BLK, T_BLK, I_pad)   batch_first input slab (bf16/f32)
      W_ih : (I_pad, 3*H_pad)        fused [r|z|n] weights (row I = folded bias)
      W_hh : (H_pad, 3*H_pad)        fused [r|z|n] hidden weights
      b_rzn: (1, 3*H_pad)            (b_ih+b_hh) for r,z ; b_in for n (if not folded)
      b_hn : (1, H_pad)              hidden-side bias of the n gate
      out  : (B_BLK, H_pad)          final hidden state for this batch block
      gi   : (T_BLK, B_BLK, 3*H_pad) f32 VMEM, time-major input pre-activations
      h    : (B_BLK, H_pad)          f32 VMEM, hidden carried across time blocks
    """
    if fold_bias:
        x_ref, wih_ref, whh_ref, b_hn_ref, out_ref, gi_ref, h_ref = refs
        b_rzn_ref = None
    else:
        x_ref, wih_ref, whh_ref, b_rzn_ref, b_hn_ref, out_ref, gi_ref, h_ref = refs

    tb = pl.program_id(1)

    @pl.when(tb == 0)
    def _():
        h_ref[...] = jnp.zeros_like(h_ref)  # torch's default initial hidden state

    b_blk = x_ref.shape[0]
    i_pad = x_ref.shape[2]

    # ---- hoisted input projection: ONE large MXU matmul per (batch, time) block.
    x2d = x_ref[...].reshape(b_blk * t_blk, i_pad)
    gi = jnp.dot(x2d, wih_ref[...], preferred_element_type=jnp.float32)
    gi = gi.reshape(b_blk, t_blk, 3 * h_pad)
    if not fold_bias:
        gi = gi + b_rzn_ref[...]

    # ---- relayout to time-major OFF the serial critical path: the recurrence
    # then reads a contiguous (B_BLK, 3*H_pad) slab per step (gi_ref[t]) instead
    # of a sublane-strided gi[:, t, :] slice every timestep.
    for t in range(t_blk):
        gi_ref[t] = gi[:, t, :]

    whh = whh_ref[...]     # (H_pad, 3*H_pad), resident
    b_hn = b_hn_ref[...]   # (1, H_pad)

    # ---- serial recurrence: only h @ W_hh + gate math on the critical path.
    # fori_loop with modest unroll keeps vreg pressure bounded.
    def step(t, h):
        gi_t = gi_ref[t]                                              # (B, 3H)
        gh = jnp.dot(h.astype(whh.dtype), whh,
                     preferred_element_type=jnp.float32)              # (B, 3H)
        r = jax.nn.sigmoid(gi_t[:, :h_pad] + gh[:, :h_pad])
        z = jax.nn.sigmoid(gi_t[:, h_pad:2 * h_pad] + gh[:, h_pad:2 * h_pad])
        n = jnp.tanh(gi_t[:, 2 * h_pad:] + r * (gh[:, 2 * h_pad:] + b_hn))
        h_new = n + z * (h - n)             # == (1-z)*n + z*h, one fewer vector op
        if masked:
            valid = (tb * t_blk + t) < seq_len
            h_new = jnp.where(valid, h_new, h)
        return h_new

    h = jax.lax.fori_loop(0, t_blk, step, h_ref[...], unroll=unroll)
    h_ref[...] = h

    @pl.when(tb == pl.num_programs(1) - 1)
    def _():
        out_ref[...] = h.astype(out_ref.dtype)


def prepare_gru_params(w_ih, w_hh, b_ih, b_hh, *, compute_dtype=jnp.bfloat16):
    """Re-layout torch.nn.GRU weights (3H,I)/(3H,H)/(3H,)/(3H,) into the fused,
    lane-padded kernel layout. Call ONCE outside the hot forward path.

    compute_dtype: dtype of the MXU operands (weights and x). Defaults to
    bfloat16 (halves weight/x DMA bytes, ~2x MXU throughput on v6e/v7x); gate
    math and accumulation stay float32 inside the kernel. Pass jnp.float32
    (or None to keep the incoming dtype) for exact-precision runs.
    """
    three_h, i_dim = w_ih.shape
    h_dim = three_h // 3
    h_pad = _round_up(h_dim, 128)
    i_pad = _round_up(i_dim, 128)
    # If the input dim had to be padded anyway, burn one pad lane as a "ones"
    # column and fold the (b_ih + b_hh) bias into the hoisted input matmul.
    fold_bias = i_pad > i_dim
    wdt = w_ih.dtype if compute_dtype is None else compute_dtype

    w_ih_g = jnp.pad(w_ih.astype(jnp.float32).reshape(3, h_dim, i_dim),
                     ((0, 0), (0, h_pad - h_dim), (0, i_pad - i_dim)))
    w_hh_g = jnp.pad(w_hh.astype(jnp.float32).reshape(3, h_dim, h_dim),
                     ((0, 0), (0, h_pad - h_dim), (0, h_pad - h_dim)))
    # Fuse gates along the output (lane) dim: columns [r | z | n], each h_pad wide.
    wih_k = jnp.transpose(w_ih_g, (2, 0, 1)).reshape(i_pad, 3 * h_pad)
    whh_k = jnp.transpose(w_hh_g, (2, 0, 1)).reshape(h_pad, 3 * h_pad)

    b_ih_g = jnp.pad(b_ih.astype(jnp.float32).reshape(3, h_dim),
                     ((0, 0), (0, h_pad - h_dim)))
    b_hh_g = jnp.pad(b_hh.astype(jnp.float32).reshape(3, h_dim),
                     ((0, 0), (0, h_pad - h_dim)))
    # r,z: input+hidden biases pre-summed; n keeps b_in / b_hn split (b_hn must
    # sit inside the r*(...) term).
    b_rzn = jnp.concatenate([b_ih_g[0] + b_hh_g[0],
                             b_ih_g[1] + b_hh_g[1],
                             b_ih_g[2]])                       # (3*h_pad,)
    b_hn = b_hh_g[2].reshape(1, h_pad)

    if fold_bias:
        wih_k = wih_k.at[i_dim].set(b_rzn)  # row hit by x's 1.0 column

    params = {"wih": wih_k.astype(wdt), "whh": whh_k.astype(wdt),
              "b_hn": b_hn, "h": h_dim, "h_pad": h_pad,
              "i": i_dim, "i_pad": i_pad, "fold_bias": fold_bias}
    if not fold_bias:
        params["b_rzn"] = b_rzn.reshape(1, 3 * h_pad)
    return params


def gru_encoder_forward(x_bsi, params, *, t_blk=None, b_blk=None,
                        out_dtype=jnp.float32):
    """x_bsi: (B, S, I) batch_first input.  Returns the final hidden state
    (B, H) in float32 (== torch.transpose(h, 0, 1).view(-1, H))."""
    B, S, I = x_bsi.shape
    h_dim, h_pad = params["h"], params["h_pad"]
    i_dim, i_pad = params["i"], params["i_pad"]
    fold_bias = params["fold_bias"]
    assert I == i_dim, (I, i_dim)
    xdt = params["wih"].dtype
    itemsize = jnp.dtype(xdt).itemsize

    # --- batch blocking.
    b_pad = _round_up(B, 8)
    if b_blk is None or b_pad % b_blk != 0:
        b_blk = _pick_b_blk(b_pad)

    # --- time blocking: largest multiple-of-8 block whose working set fits
    # half of this generation's VMEM (avoids v7x 64 MiB OOM / v5e thrash).
    cap = _vmem_capacity_bytes()
    budget = cap // 2
    if t_blk is None:
        cands = [c for c in (128, 64, 32, 16, 8) if c <= max(8, _round_up(S, 8))]
        fit = [c for c in cands
               if _vmem_estimate_bytes(b_blk, c, i_pad, h_pad, itemsize) <= budget]
        if not fit:
            fit = [8]
        exact = [c for c in fit if S % c == 0]
        t_blk = max(exact) if exact else min(fit, key=lambda c: (_round_up(S, c), -c))
    else:
        t_blk = max(8, _round_up(t_blk, 8))
    s_pad = _round_up(S, t_blk)
    masked = s_pad != S  # padded timesteps are frozen inside the kernel

    est = _vmem_estimate_bytes(b_blk, t_blk, i_pad, h_pad, itemsize)
    vmem_limit = int(min(cap * 9 // 10, max(32 * _MIB, est * 3 // 2)))

    # --- pad x: batch -> mult of 8, time -> mult of t_blk, input lanes -> i_pad
    # (with a 1.0 column driving the folded-bias row of W_ih).
    x_p = x_bsi.astype(xdt)
    if b_pad != B or s_pad != S:
        x_p = jnp.pad(x_p, ((0, b_pad - B), (0, s_pad - S), (0, 0)))
    if fold_bias:
        pieces = [x_p, jnp.ones((b_pad, s_pad, 1), xdt)]
        if i_pad - I - 1 > 0:
            pieces.append(jnp.zeros((b_pad, s_pad, i_pad - I - 1), xdt))
        x_p = jnp.concatenate(pieces, axis=-1)

    nb, nt = b_pad // b_blk, s_pad // t_blk
    kernel = functools.partial(_gru_kernel, t_blk=t_blk, h_pad=h_pad,
                               seq_len=S, masked=masked, fold_bias=fold_bias,
                               unroll=min(t_blk, 8))

    operands = [x_p, params["wih"], params["whh"]]
    if not fold_bias:
        operands.append(params["b_rzn"])
    operands.append(params["b_hn"])

    def build(single_buffer_resident):
        def resident(shape):
            # Constant-index operands never change across the grid; single-
            # buffering them halves their VMEM footprint (default is 2 buffers).
            if single_buffer_resident:
                return pl.BlockSpec(shape, lambda b, t: (0,) * len(shape),
                                    pipeline_mode=pl.Buffered(1))
            return pl.BlockSpec(shape, lambda b, t: (0,) * len(shape))

        in_specs = [
            # time sliced straight out of the batch_first array (no XLA transpose)
            pl.BlockSpec((b_blk, t_blk, i_pad), lambda b, t: (b, t, 0)),
            resident((i_pad, 3 * h_pad)),   # W_ih (resident)
            resident((h_pad, 3 * h_pad)),   # W_hh (resident)
        ]
        if not fold_bias:
            in_specs.append(resident((1, 3 * h_pad)))
        in_specs.append(resident((1, h_pad)))

        return pl.pallas_call(
            kernel,
            out_shape=jax.ShapeDtypeStruct((b_pad, h_pad), out_dtype),
            grid_spec=pltpu.PrefetchScalarGridSpec(
                num_scalar_prefetch=0,
                grid=(nb, nt),
                in_specs=in_specs,
                out_specs=pl.BlockSpec((b_blk, h_pad), lambda b, t: (b, 0)),
                scratch_shapes=[
                    pltpu.VMEM((t_blk, b_blk, 3 * h_pad), jnp.float32),  # time-major gi
                    pltpu.VMEM((b_blk, h_pad), jnp.float32),             # carried h
                ],
            ),
            compiler_params=pltpu.CompilerParams(
                # batch blocks independent (megacore-parallel on v7x);
                # time is a sequential recurrence.
                dimension_semantics=("parallel", "arbitrary"),
                vmem_limit_bytes=vmem_limit,
            ),
        )

    try:
        out_p = build(True)(*operands)
    except Exception:
        # pipeline_mode=pl.Buffered(1) not supported by this jax/libtpu combo:
        # fall back to default double-buffered resident operands.
        out_p = build(False)(*operands)

    return out_p[:B, :h_dim]


def gru_reference(x_bsi, w_ih, w_hh, b_ih, b_hh):
    """Pure-JAX reference implementing torch.nn.GRU (1 layer, unidirectional)."""
    B, S, I = x_bsi.shape
    H = w_hh.shape[1]
    w_ir, w_iz, w_in = jnp.split(w_ih, 3, axis=0)
    w_hr, w_hz, w_hn = jnp.split(w_hh, 3, axis=0)
    b_ir, b_iz, b_in = jnp.split(b_ih, 3)
    b_hr, b_hz, b_hn = jnp.split(b_hh, 3)

    def step(h, x_t):
        r = jax.nn.sigmoid(x_t @ w_ir.T + b_ir + h @ w_hr.T + b_hr)
        z = jax.nn.sigmoid(x_t @ w_iz.T + b_iz + h @ w_hz.T + b_hz)
        n = jnp.tanh(x_t @ w_in.T + b_in + r * (h @ w_hn.T + b_hn))
        return (1.0 - z) * n + z * h, None

    h0 = jnp.zeros((B, H), dtype=jnp.float32)
    h_final, _ = jax.lax.scan(step, h0, jnp.transpose(x_bsi, (1, 0, 2)))
    return h_final


if __name__ == "__main__":
    # (batch, seq, embedding_dim) -> hidden, consistent with GRUEncoder.forward.
    B, S, I, H = 2, 16, 16, 32

    key = jax.random.PRNGKey(0)
    kx, k1, k2, k3, k4, k5 = jax.random.split(key, 6)

    # nn.GRU-style uniform(-1/sqrt(H), 1/sqrt(H)) init.
    scale = 1.0 / jnp.sqrt(jnp.float32(H))
    x = jax.random.normal(kx, (B, S, I), dtype=jnp.float32)
    w_ih = jax.random.uniform(k1, (3 * H, I), jnp.float32, -scale, scale)
    w_hh = jax.random.uniform(k2, (3 * H, H), jnp.float32, -scale, scale)
    b_ih = jax.random.uniform(k3, (3 * H,), jnp.float32, -scale, scale)
    b_hh = jax.random.uniform(k4, (3 * H,), jnp.float32, -scale, scale)

    ref = jax.block_until_ready(gru_reference(x, w_ih, w_hh, b_ih, b_hh))

    # 1) exact-precision path (f32 MXU operands); t_blk=8 -> two time blocks,
    #    exercising the cross-block hidden-state carry.
    params_f32 = prepare_gru_params(w_ih, w_hh, b_ih, b_hh, compute_dtype=jnp.float32)
    out = jax.block_until_ready(gru_encoder_forward(x, params_f32, t_blk=8))
    assert out.shape == (B, H) and out.dtype == jnp.float32, (out.shape, out.dtype)
    assert jnp.allclose(out, ref, atol=2e-4, rtol=2e-4), "f32 kernel mismatch"

    # 2) default bf16 MXU-operand path (gate math / accumulation stay f32).
    params_bf16 = prepare_gru_params(w_ih, w_hh, b_ih, b_hh)
    out_bf = jax.block_until_ready(gru_encoder_forward(x, params_bf16))
    assert jnp.allclose(out_bf, ref, atol=3e-2, rtol=3e-2), "bf16 kernel mismatch"

    # 3) ragged sequence length (S=13 pads to 16; padded steps are masked).
    S2 = 13
    x2 = x[:, :S2]
    ref2 = jax.block_until_ready(gru_reference(x2, w_ih, w_hh, b_ih, b_hh))
    out2 = jax.block_until_ready(gru_encoder_forward(x2, params_f32, t_blk=8))
    assert jnp.allclose(out2, ref2, atol=2e-4, rtol=2e-4), "masked-tail mismatch"

    # 4) input dim already lane-aligned (I=128): exercises the unfolded-bias path.
    I2 = 128
    x3 = jax.random.normal(k5, (B, S, I2), dtype=jnp.float32)
    w_ih2 = jax.random.uniform(k1, (3 * H, I2), jnp.float32, -scale, scale)
    params2 = prepare_gru_params(w_ih2, w_hh, b_ih, b_hh, compute_dtype=jnp.float32)
    ref3 = jax.block_until_ready(gru_reference(x3, w_ih2, w_hh, b_ih, b_hh))
    out3 = jax.block_until_ready(gru_encoder_forward(x3, params2))
    assert jnp.allclose(out3, ref3, atol=2e-4, rtol=2e-4), "unfolded-bias path mismatch"

    print("KERNEL_OK")
</pallas_src>

<mosaic_0001>
module attributes {stable_mosaic.version = 11 : i64} {
  func.func @_gru_kernel(%arg0: i32, %arg1: i32, %arg2: memref<8x8x128xf32, #tpu.memory_space<vmem>>, %arg3: memref<128x384xf32, #tpu.memory_space<vmem>>, %arg4: memref<128x384xf32, #tpu.memory_space<vmem>>, %arg5: memref<1x128xf32, #tpu.memory_space<vmem>>, %arg6: memref<8x128xf32, #tpu.memory_space<vmem>>, %arg7: memref<8x8x384xf32, #tpu.memory_space<vmem>>, %arg8: memref<8x128xf32, #tpu.memory_space<vmem>>) attributes {dimension_semantics = [#tpu.dimension_semantics<parallel>, #tpu.dimension_semantics<arbitrary>], iteration_bounds = array<i64: 1, 2>, scalar_prefetch = 0 : i64, scratch_operands = 2 : i64, tpu.core_type = #tpu.core_type<tc>, window_params = [{transform_indices = @transform_0, window_bounds = array<i64: 8, 8, 128>}, {pipeline_mode = #tpu.pipeline_mode<synchronous>, transform_indices = @transform_1, window_bounds = array<i64: 128, 384>}, {pipeline_mode = #tpu.pipeline_mode<synchronous>, transform_indices = @transform_2, window_bounds = array<i64: 128, 384>}, {pipeline_mode = #tpu.pipeline_mode<synchronous>, transform_indices = @transform_3, window_bounds = array<i64: 1, 128>}, {transform_indices = @transform_4, window_bounds = array<i64: 8, 128>}]} {
    %c0_i32 = arith.constant 0 : i32
    %0 = arith.cmpi eq, %arg1, %c0_i32 : i32
    %1 = arith.extui %0 : i1 to i32
    %c0_i32_0 = arith.constant 0 : i32
    %2 = arith.cmpi ne, %1, %c0_i32_0 : i32
    scf.if %2 {
      %cst_73 = arith.constant 0.000000e+00 : f32
      %295 = vector.broadcast %cst_73 : f32 to vector<8x128xf32>
      %c0_74 = arith.constant 0 : index
      %c0_75 = arith.constant 0 : index
      %296 = vector.load %arg8[%c0_74, %c0_75] : memref<8x128xf32, #tpu.memory_space<vmem>>, vector<8x128xf32>
      tpu.vector_store %arg8[%c0_74, %c0_75], %295 {strides = array<i32>} : memref<8x128xf32, #tpu.memory_space<vmem>>, vector<8x128xf32>,
    } else {
    }
    %c0 = arith.constant 0 : index
    %c0_1 = arith.constant 0 : index
    %c0_2 = arith.constant 0 : index
    %3 = vector.load %arg2[%c0, %c0_1, %c0_2] : memref<8x8x128xf32, #tpu.memory_space<vmem>>, vector<8x8x128xf32>
    %4 = vector.shape_cast %3 : vector<8x8x128xf32> to vector<64x128xf32>
    %c0_3 = arith.constant 0 : index
    %c0_4 = arith.constant 0 : index
    %5 = vector.load %arg3[%c0_3, %c0_4] : memref<128x384xf32, #tpu.memory_space<vmem>>, vector<128x384xf32>
    %cst = arith.constant dense<0.000000e+00> : vector<64x384xf32>
    %6 = tpu.matmul %4, %5, %cst {dimension_numbers = #tpu.dot_dimension_numbers<[1], [0], [0], [1], [0, 0, 1, 1], [], []>} : vector<64x128xf32>, vector<128x384xf32>, vector<64x384xf32> -> vector<64x384xf32>
    %7 = vector.shape_cast %6 : vector<64x384xf32> to vector<8x8x384xf32>
    %8 = vector.extract_strided_slice %7 {offsets = [0, 0, 0], sizes = [8, 1, 384], strides = [1, 1, 1]} : vector<8x8x384xf32> to vector<8x1x384xf32>
    %9 = vector.shape_cast %8 : vector<8x1x384xf32> to vector<8x384xf32>
    %c0_5 = arith.constant 0 : index
    %c0_6 = arith.constant 0 : index
    %c0_7 = arith.constant 0 : index
    %10 = vector.load %arg7[%c0_5, %c0_6, %c0_7] : memref<8x8x384xf32, #tpu.memory_space<vmem>>, vector<1x8x384xf32>
    %11 = vector.shape_cast %10 : vector<1x8x384xf32> to vector<8x384xf32>
    %12 = vector.shape_cast %9 : vector<8x384xf32> to vector<1x8x384xf32>
    tpu.vector_store %arg7[%c0_5, %c0_6, %c0_7], %12 {strides = array<i32>} : memref<8x8x384xf32, #tpu.memory_space<vmem>>, vector<1x8x384xf32>,
    %13 = vector.extract_strided_slice %7 {offsets = [0, 1, 0], sizes = [8, 1, 384], strides = [1, 1, 1]} : vector<8x8x384xf32> to vector<8x1x384xf32>
    %14 = vector.shape_cast %13 : vector<8x1x384xf32> to vector<8x384xf32>
    %c1 = arith.constant 1 : index
    %c0_8 = arith.constant 0 : index
    %c0_9 = arith.constant 0 : index
    %15 = vector.load %arg7[%c1, %c0_8, %c0_9] : memref<8x8x384xf32, #tpu.memory_space<vmem>>, vector<1x8x384xf32>
    %16 = vector.shape_cast %15 : vector<1x8x384xf32> to vector<8x384xf32>
    %17 = vector.shape_cast %14 : vector<8x384xf32> to vector<1x8x384xf32>
    tpu.vector_store %arg7[%c1, %c0_8, %c0_9], %17 {strides = array<i32>} : memref<8x8x384xf32, #tpu.memory_space<vmem>>, vector<1x8x384xf32>,
    %18 = vector.extract_strided_slice %7 {offsets = [0, 2, 0], sizes = [8, 1, 384], strides = [1, 1, 1]} : vector<8x8x384xf32> to vector<8x1x384xf32>
    %19 = vector.shape_cast %18 : vector<8x1x384xf32> to vector<8x384xf32>
    %c2 = arith.constant 2 : index
    %c0_10 = arith.constant 0 : index
    %c0_11 = arith.constant 0 : index
    %20 = vector.load %arg7[%c2, %c0_10, %c0_11] : memref<8x8x384xf32, #tpu.memory_space<vmem>>, vector<1x8x384xf32>
    %21 = vector.shape_cast %20 : vector<1x8x384xf32> to vector<8x384xf32>
    %22 = vector.shape_cast %19 : vector<8x384xf32> to vector<1x8x384xf32>
    tpu.vector_store %arg7[%c2, %c0_10, %c0_11], %22 {strides = array<i32>} : memref<8x8x384xf32, #tpu.memory_space<vmem>>, vector<1x8x384xf32>,
    %23 = vector.extract_strided_slice %7 {offsets = [0, 3, 0], sizes = [8, 1, 384], strides = [1, 1, 1]} : vector<8x8x384xf32> to vector<8x1x384xf32>
    %24 = vector.shape_cast %23 : vector<8x1x384xf32> to vector<8x384xf32>
    %c3 = arith.constant 3 : index
    %c0_12 = arith.constant 0 : index
    %c0_13 = arith.constant 0 : index
    %25 = vector.load %arg7[%c3, %c0_12, %c0_13] : memref<8x8x384xf32, #tpu.memory_space<vmem>>, vector<1x8x384xf32>
    %26 = vector.shape_cast %25 : vector<1x8x384xf32> to vector<8x384xf32>
    %27 = vector.shape_cast %24 : vector<8x384xf32> to vector<1x8x384xf32>
    tpu.vector_store %arg7[%c3, %c0_12, %c0_13], %27 {strides = array<i32>} : memref<8x8x384xf32, #tpu.memory_space<vmem>>, vector<1x8x384xf32>,
    %28 = vector.extract_strided_slice %7 {offsets = [0, 4, 0], sizes = [8, 1, 384], strides = [1, 1, 1]} : vector<8x8x384xf32> to vector<8x1x384xf32>
    %29 = vector.shape_cast %28 : vector<8x1x384xf32> to vector<8x384xf32>
    %c4 = arith.constant 4 : index
    %c0_14 = arith.constant 0 : index
    %c0_15 = arith.constant 0 : index
    %30 = vector.load %arg7[%c4, %c0_14, %c0_15] : memref<8x8x384xf32, #tpu.memory_space<vmem>>, vector<1x8x384xf32>
    %31 = vector.shape_cast %30 : vector<1x8x384xf32> to vector<8x384xf32>
    %32 = vector.shape_cast %29 : vector<8x384xf32> to vector<1x8x384xf32>
    tpu.vector_store %arg7[%c4, %c0_14, %c0_15], %32 {strides = array<i32>} : memref<8x8x384xf32, #tpu.memory_space<vmem>>, vector<1x8x384xf32>,
    %33 = vector.extract_strided_slice %7 {offsets = [0, 5, 0], sizes = [8, 1, 384], strides = [1, 1, 1]} : vector<8x8x384xf32> to vector<8x1x384xf32>
    %34 = vector.shape_cast %33 : vector<8x1x384xf32> to vector<8x384xf32>
    %c5 = arith.constant 5 : index
    %c0_16 = arith.constant 0 : index
    %c0_17 = arith.constant 0 : index
    %35 = vector.load %arg7[%c5, %c0_16, %c0_17] : memref<8x8x384xf32, #tpu.memory_space<vmem>>, vector<1x8x384xf32>
    %36 = vector.shape_cast %35 : vector<1x8x384xf32> to vector<8x384xf32>
    %37 = vector.shape_cast %34 : vector<8x384xf32> to vector<1x8x384xf32>
    tpu.vector_store %arg7[%c5, %c0_16, %c0_17], %37 {strides = array<i32>} : memref<8x8x384xf32, #tpu.memory_space<vmem>>, vector<1x8x384xf32>,
    %38 = vector.extract_strided_slice %7 {offsets = [0, 6, 0], sizes = [8, 1, 384], strides = [1, 1, 1]} : vector<8x8x384xf32> to vector<8x1x384xf32>
    %39 = vector.shape_cast %38 : vector<8x1x384xf32> to vector<8x384xf32>
    %c6 = arith.constant 6 : index
    %c0_18 = arith.constant 0 : index
    %c0_19 = arith.constant 0 : index
    %40 = vector.load %arg7[%c6, %c0_18, %c0_19] : memref<8x8x384xf32, #tpu.memory_space<vmem>>, vector<1x8x384xf32>
    %41 = vector.shape_cast %40 : vector<1x8x384xf32> to vector<8x384xf32>
    %42 = vector.shape_cast %39 : vector<8x384xf32> to vector<1x8x384xf32>
    tpu.vector_store %arg7[%c6, %c0_18, %c0_19], %42 {strides = array<i32>} : memref<8x8x384xf32, #tpu.memory_space<vmem>>, vector<1x8x384xf32>,
    %43 = vector.extract_strided_slice %7 {offsets = [0, 7, 0], sizes = [8, 1, 384], strides = [1, 1, 1]} : vector<8x8x384xf32> to vector<8x1x384xf32>
    %44 = vector.shape_cast %43 : vector<8x1x384xf32> to vector<8x384xf32>
    %c7 = arith.constant 7 : index
    %c0_20 = arith.constant 0 : index
    %c0_21 = arith.constant 0 : index
    %45 = vector.load %arg7[%c7, %c0_20, %c0_21] : memref<8x8x384xf32, #tpu.memory_space<vmem>>, vector<1x8x384xf32>
    %46 = vector.shape_cast %45 : vector<1x8x384xf32> to vector<8x384xf32>
    %47 = vector.shape_cast %44 : vector<8x384xf32> to vector<1x8x384xf32>
    tpu.vector_store %arg7[%c7, %c0_20, %c0_21], %47 {strides = array<i32>} : memref<8x8x384xf32, #tpu.memory_space<vmem>>, vector<1x8x384xf32>,
    %c0_22 = arith.constant 0 : index
    %c0_23 = arith.constant 0 : index
    %48 = vector.load %arg4[%c0_22, %c0_23] : memref<128x384xf32, #tpu.memory_space<vmem>>, vector<128x384xf32>
    %c0_24 = arith.constant 0 : index
    %c0_25 = arith.constant 0 : index
    %49 = vector.load %arg5[%c0_24, %c0_25] : memref<1x128xf32, #tpu.memory_space<vmem>>, vector<1x128xf32>
    %c0_26 = arith.constant 0 : index
    %c0_27 = arith.constant 0 : index
    %50 = vector.load %arg8[%c0_26, %c0_27] : memref<8x128xf32, #tpu.memory_space<vmem>>, vector<8x128xf32>
    %c0_i32_28 = arith.constant 0 : i32
    %51 = arith.index_cast %c0_i32_28 : i32 to index
    %c0_29 = arith.constant 0 : index
    %c0_30 = arith.constant 0 : index
    %52 = vector.load %arg7[%51, %c0_29, %c0_30] : memref<8x8x384xf32, #tpu.memory_space<vmem>>, vector<1x8x384xf32>
    %53 = vector.shape_cast %52 : vector<1x8x384xf32> to vector<8x384xf32>
    %cst_31 = arith.constant dense<0.000000e+00> : vector<8x384xf32>
    %54 = tpu.matmul %50, %48, %cst_31 {dimension_numbers = #tpu.dot_dimension_numbers<[1], [0], [0], [1], [0, 0, 1, 1], [], []>} : vector<8x128xf32>, vector<128x384xf32>, vector<8x384xf32> -> vector<8x384xf32>
    %55 = vector.extract_strided_slice %53 {offsets = [0, 0], sizes = [8, 128], strides = [1, 1]} : vector<8x384xf32> to vector<8x128xf32>
    %56 = vector.extract_strided_slice %54 {offsets = [0, 0], sizes = [8, 128], strides = [1, 1]} : vector<8x384xf32> to vector<8x128xf32>
    %57 = arith.addf %55, %56 : vector<8x128xf32>
    %58 = arith.negf %57 : vector<8x128xf32>
    %59 = math.exp %58 : vector<8x128xf32>
    %cst_32 = arith.constant 1.000000e+00 : f32
    %60 = vector.broadcast %cst_32 : f32 to vector<8x128xf32>
    %61 = arith.addf %60, %59 : vector<8x128xf32>
    %62 = arith.divf %60, %61 : vector<8x128xf32>
    %63 = vector.extract_strided_slice %53 {offsets = [0, 128], sizes = [8, 128], strides = [1, 1]} : vector<8x384xf32> to vector<8x128xf32>
    %64 = vector.extract_strided_slice %54 {offsets = [0, 128], sizes = [8, 128], strides = [1, 1]} : vector<8x384xf32> to vector<8x128xf32>
    %65 = arith.addf %63, %64 : vector<8x128xf32>
    %66 = arith.negf %65 : vector<8x128xf32>
    %67 = math.exp %66 : vector<8x128xf32>
    %cst_33 = arith.constant 1.000000e+00 : f32
    %68 = vector.broadcast %cst_33 : f32 to vector<8x128xf32>
    %69 = arith.addf %68, %67 : vector<8x128xf32>
    %70 = arith.divf %68, %69 : vector<8x128xf32>
    %71 = vector.extract_strided_slice %53 {offsets = [0, 256], sizes = [8, 128], strides = [1, 1]} : vector<8x384xf32> to vector<8x128xf32>
    %72 = vector.extract_strided_slice %54 {offsets = [0, 256], sizes = [8, 128], strides = [1, 1]} : vector<8x384xf32> to vector<8x128xf32>
    %73 = vector.broadcast %49 : vector<1x128xf32> to vector<8x128xf32>
    %74 = arith.addf %72, %73 : vector<8x128xf32>
    %75 = arith.mulf %62, %74 : vector<8x128xf32>
    %76 = arith.addf %71, %75 : vector<8x128xf32>
    %77 = math.tanh %76 : vector<8x128xf32>
    %78 = arith.subf %50, %77 : vector<8x128xf32>
    %79 = arith.mulf %70, %78 : vector<8x128xf32>
    %80 = arith.addf %77, %79 : vector<8x128xf32>
    %c1_i32 = arith.constant 1 : i32
    %81 = arith.index_cast %c1_i32 : i32 to index
    %c0_34 = arith.constant 0 : index
    %c0_35 = arith.constant 0 : index
    %82 = vector.load %arg7[%81, %c0_34, %c0_35] : memref<8x8x384xf32, #tpu.memory_space<vmem>>, vector<1x8x384xf32>
    %83 = vector.shape_cast %82 : vector<1x8x384xf32> to vector<8x384xf32>
    %cst_36 = arith.constant dense<0.000000e+00> : vector<8x384xf32>
    %84 = tpu.matmul %80, %48, %cst_36 {dimension_numbers = #tpu.dot_dimension_numbers<[1], [0], [0], [1], [0, 0, 1, 1], [], []>} : vector<8x128xf32>, vector<128x384xf32>, vector<8x384xf32> -> vector<8x384xf32>
    %85 = vector.extract_strided_slice %83 {offsets = [0, 0], sizes = [8, 128], strides = [1, 1]} : vector<8x384xf32> to vector<8x128xf32>
    %86 = vector.extract_strided_slice %84 {offsets = [0, 0], sizes = [8, 128], strides = [1, 1]} : vector<8x384xf32> to vector<8x128xf32>
    %87 = arith.addf %85, %86 : vector<8x128xf32>
    %88 = arith.negf %87 : vector<8x128xf32>
    %89 = math.exp %88 : vector<8x128xf32>
    %cst_37 = arith.constant 1.000000e+00 : f32
    %90 = vector.broadcast %cst_37 : f32 to vector<8x128xf32>
    %91 = arith.addf %90, %89 : vector<8x128xf32>
    %92 = arith.divf %90, %91 : vector<8x128xf32>
    %93 = vector.extract_strided_slice %83 {offsets = [0, 128], sizes = [8, 128], strides = [1, 1]} : vector<8x384xf32> to vector<8x128xf32>
    %94 = vector.extract_strided_slice %84 {offsets = [0, 128], sizes = [8, 128], strides = [1, 1]} : vector<8x384xf32> to vector<8x128xf32>
    %95 = arith.addf %93, %94 : vector<8x128xf32>
    %96 = arith.negf %95 : vector<8x128xf32>
    %97 = math.exp %96 : vector<8x128xf32>
    %cst_38 = arith.constant 1.000000e+00 : f32
    %98 = vector.broadcast %cst_38 : f32 to vector<8x128xf32>
    %99 = arith.addf %98, %97 : vector<8x128xf32>
    %100 = arith.divf %98, %99 : vector<8x128xf32>
    %101 = vector.extract_strided_slice %83 {offsets = [0, 256], sizes = [8, 128], strides = [1, 1]} : vector<8x384xf32> to vector<8x128xf32>
    %102 = vector.extract_strided_slice %84 {offsets = [0, 256], sizes = [8, 128], strides = [1, 1]} : vector<8x384xf32> to vector<8x128xf32>
    %103 = vector.broadcast %49 : vector<1x128xf32> to vector<8x128xf32>
    %104 = arith.addf %102, %103 : vector<8x128xf32>
    %105 = arith.mulf %92, %104 : vector<8x128xf32>
    %106 = arith.addf %101, %105 : vector<8x128xf32>
    %107 = math.tanh %106 : vector<8x128xf32>
    %108 = arith.subf %80, %107 : vector<8x128xf32>
    %109 = arith.mulf %100, %108 : vector<8x128xf32>
    %110 = arith.addf %107, %109 : vector<8x128xf32>
    %c2_i32 = arith.constant 2 : i32
    %111 = arith.index_cast %c2_i32 : i32 to index
    %c0_39 = arith.constant 0 : index
    %c0_40 = arith.constant 0 : index
    %112 = vector.load %arg7[%111, %c0_39, %c0_40] : memref<8x8x384xf32, #tpu.memory_space<vmem>>, vector<1x8x384xf32>
    %113 = vector.shape_cast %112 : vector<1x8x384xf32> to vector<8x384xf32>
    %cst_41 = arith.constant dense<0.000000e+00> : vector<8x384xf32>
    %114 = tpu.matmul %110, %48, %cst_41 {dimension_numbers = #tpu.dot_dimension_numbers<[1], [0], [0], [1], [0, 0, 1, 1], [], []>} : vector<8x128xf32>, vector<128x384xf32>, vector<8x384xf32> -> vector<8x384xf32>
    %115 = vector.extract_strided_slice %113 {offsets = [0, 0], sizes = [8, 128], strides = [1, 1]} : vector<8x384xf32> to vector<8x128xf32>
    %116 = vector.extract_strided_slice %114 {offsets = [0, 0], sizes = [8, 128], strides = [1, 1]} : vector<8x384xf32> to vector<8x128xf32>
    %117 = arith.addf %115, %116 : vector<8x128xf32>
    %118 = arith.negf %117 : vector<8x128xf32>
    %119 = math.exp %118 : vector<8x128xf32>
    %cst_42 = arith.constant 1.000000e+00 : f32
    %120 = vector.broadcast %cst_42 : f32 to vector<8x128xf32>
    %121 = arith.addf %120, %119 : vector<8x128xf32>
    %122 = arith.divf %120, %121 : vector<8x128xf32>
    %123 = vector.extract_strided_slice %113 {offsets = [0, 128], sizes = [8, 128], strides = [1, 1]} : vector<8x384xf32> to vector<8x128xf32>
    %124 = vector.extract_strided_slice %114 {offsets = [0, 128], sizes = [8, 128], strides = [1, 1]} : vector<8x384xf32> to vector<8x128xf32>
    %125 = arith.addf %123, %124 : vector<8x128xf32>
    %126 = arith.negf %125 : vector<8x128xf32>
    %127 = math.exp %126 : vector<8x128xf32>
    %cst_43 = arith.constant 1.000000e+00 : f32
    %128 = vector.broadcast %cst_43 : f32 to vector<8x128xf32>
    %129 = arith.addf %128, %127 : vector<8x128xf32>
    %130 = arith.divf %128, %129 : vector<8x128xf32>
    %131 = vector.extract_strided_slice %113 {offsets = [0, 256], sizes = [8, 128], strides = [1, 1]} : vector<8x384xf32> to vector<8x128xf32>
    %132 = vector.extract_strided_slice %114 {offsets = [0, 256], sizes = [8, 128], strides = [1, 1]} : vector<8x384xf32> to vector<8x128xf32>
    %133 = vector.broadcast %49 : vector<1x128xf32> to vector<8x128xf32>
    %134 = arith.addf %132, %133 : vector<8x128xf32>
    %135 = arith.mulf %122, %134 : vector<8x128xf32>
    %136 = arith.addf %131, %135 : vector<8x128xf32>
    %137 = math.tanh %136 : vector<8x128xf32>
    %138 = arith.subf %110, %137 : vector<8x128xf32>
    %139 = arith.mulf %130, %138 : vector<8x128xf32>
    %140 = arith.addf %137, %139 : vector<8x128xf32>
    %c3_i32 = arith.constant 3 : i32
    %141 = arith.index_cast %c3_i32 : i32 to index
    %c0_44 = arith.constant 0 : index
    %c0_45 = arith.constant 0 : index
    %142 = vector.load %arg7[%141, %c0_44, %c0_45] : memref<8x8x384xf32, #tpu.memory_space<vmem>>, vector<1x8x384xf32>
    %143 = vector.shape_cast %142 : vector<1x8x384xf32> to vector<8x384xf32>
    %cst_46 = arith.constant dense<0.000000e+00> : vector<8x384xf32>
    %144 = tpu.matmul %140, %48, %cst_46 {dimension_numbers = #tpu.dot_dimension_numbers<[1], [0], [0], [1], [0, 0, 1, 1], [], []>} : vector<8x128xf32>, vector<128x384xf32>, vector<8x384xf32> -> vector<8x384xf32>
    %145 = vector.extract_strided_slice %143 {offsets = [0, 0], sizes = [8, 128], strides = [1, 1]} : vector<8x384xf32> to vector<8x128xf32>
    %146 = vector.extract_strided_slice %144 {offsets = [0, 0], sizes = [8, 128], strides = [1, 1]} : vector<8x384xf32> to vector<8x128xf32>
    %147 = arith.addf %145, %146 : vector<8x128xf32>
    %148 = arith.negf %147 : vector<8x128xf32>
    %149 = math.exp %148 : vector<8x128xf32>
    %cst_47 = arith.constant 1.000000e+00 : f32
    %150 = vector.broadcast %cst_47 : f32 to vector<8x128xf32>
    %151 = arith.addf %150, %149 : vector<8x128xf32>
    %152 = arith.divf %150, %151 : vector<8x128xf32>
    %153 = vector.extract_strided_slice %143 {offsets = [0, 128], sizes = [8, 128], strides = [1, 1]} : vector<8x384xf32> to vector<8x128xf32>
    %154 = vector.extract_strided_slice %144 {offsets = [0, 128], sizes = [8, 128], strides = [1, 1]} : vector<8x384xf32> to vector<8x128xf32>
    %155 = arith.addf %153, %154 : vector<8x128xf32>
    %156 = arith.negf %155 : vector<8x128xf32>
    %157 = math.exp %156 : vector<8x128xf32>
    %cst_48 = arith.constant 1.000000e+00 : f32
    %158 = vector.broadcast %cst_48 : f32 to vector<8x128xf32>
    %159 = arith.addf %158, %157 : vector<8x128xf32>
    %160 = arith.divf %158, %159 : vector<8x128xf32>
    %161 = vector.extract_strided_slice %143 {offsets = [0, 256], sizes = [8, 128], strides = [1, 1]} : vector<8x384xf32> to vector<8x128xf32>
    %162 = vector.extract_strided_slice %144 {offsets = [0, 256], sizes = [8, 128], strides = [1, 1]} : vector<8x384xf32> to vector<8x128xf32>
    %163 = vector.broadcast %49 : vector<1x128xf32> to vector<8x128xf32>
    %164 = arith.addf %162, %163 : vector<8x128xf32>
    %165 = arith.mulf %152, %164 : vector<8x128xf32>
    %166 = arith.addf %161, %165 : vector<8x128xf32>
    %167 = math.tanh %166 : vector<8x128xf32>
    %168 = arith.subf %140, %167 : vector<8x128xf32>
    %169 = arith.mulf %160, %168 : vector<8x128xf32>
    %170 = arith.addf %167, %169 : vector<8x128xf32>
    %c4_i32 = arith.constant 4 : i32
    %171 = arith.index_cast %c4_i32 : i32 to index
    %c0_49 = arith.constant 0 : index
    %c0_50 = arith.constant 0 : index
    %172 = vector.load %arg7[%171, %c0_49, %c0_50] : memref<8x8x384xf32, #tpu.memory_space<vmem>>, vector<1x8x384xf32>
    %173 = vector.shape_cast %172 : vector<1x8x384xf32> to vector<8x384xf32>
    %cst_51 = arith.constant dense<0.000000e+00> : vector<8x384xf32>
    %174 = tpu.matmul %170, %48, %cst_51 {dimension_numbers = #tpu.dot_dimension_numbers<[1], [0], [0], [1], [0, 0, 1, 1], [], []>} : vector<8x128xf32>, vector<128x384xf32>, vector<8x384xf32> -> vector<8x384xf32>
    %175 = vector.extract_strided_slice %173 {offsets = [0, 0], sizes = [8, 128], strides = [1, 1]} : vector<8x384xf32> to vector<8x128xf32>
    %176 = vector.extract_strided_slice %174 {offsets = [0, 0], sizes = [8, 128], strides = [1, 1]} : vector<8x384xf32> to vector<8x128xf32>
    %177 = arith.addf %175, %176 : vector<8x128xf32>
    %178 = arith.negf %177 : vector<8x128xf32>
    %179 = math.exp %178 : vector<8x128xf32>
    %cst_52 = arith.constant 1.000000e+00 : f32
    %180 = vector.broadcast %cst_52 : f32 to vector<8x128xf32>
    %181 = arith.addf %180, %179 : vector<8x128xf32>
    %182 = arith.divf %180, %181 : vector<8x128xf32>
    %183 = vector.extract_strided_slice %173 {offsets = [0, 128], sizes = [8, 128], strides = [1, 1]} : vector<8x384xf32> to vector<8x128xf32>
    %184 = vector.extract_strided_slice %174 {offsets = [0, 128], sizes = [8, 128], strides = [1, 1]} : vector<8x384xf32> to vector<8x128xf32>
    %185 = arith.addf %183, %184 : vector<8x128xf32>
    %186 = arith.negf %185 : vector<8x128xf32>
    %187 = math.exp %186 : vector<8x128xf32>
    %cst_53 = arith.constant 1.000000e+00 : f32
    %188 = vector.broadcast %cst_53 : f32 to vector<8x128xf32>
    %189 = arith.addf %188, %187 : vector<8x128xf32>
    %190 = arith.divf %188, %189 : vector<8x128xf32>
    %191 = vector.extract_strided_slice %173 {offsets = [0, 256], sizes = [8, 128], strides = [1, 1]} : vector<8x384xf32> to vector<8x128xf32>
    %192 = vector.extract_strided_slice %174 {offsets = [0, 256], sizes = [8, 128], strides = [1, 1]} : vector<8x384xf32> to vector<8x128xf32>
    %193 = vector.broadcast %49 : vector<1x128xf32> to vector<8x128xf32>
    %194 = arith.addf %192, %193 : vector<8x128xf32>
    %195 = arith.mulf %182, %194 : vector<8x128xf32>
    %196 = arith.addf %191, %195 : vector<8x128xf32>
    %197 = math.tanh %196 : vector<8x128xf32>
    %198 = arith.subf %170, %197 : vector<8x128xf32>
    %199 = arith.mulf %190, %198 : vector<8x128xf32>
    %200 = arith.addf %197, %199 : vector<8x128xf32>
    %c5_i32 = arith.constant 5 : i32
    %201 = arith.index_cast %c5_i32 : i32 to index
    %c0_54 = arith.constant 0 : index
    %c0_55 = arith.constant 0 : index
    %202 = vector.load %arg7[%201, %c0_54, %c0_55] : memref<8x8x384xf32, #tpu.memory_space<vmem>>, vector<1x8x384xf32>
    %203 = vector.shape_cast %202 : vector<1x8x384xf32> to vector<8x384xf32>
    %cst_56 = arith.constant dense<0.000000e+00> : vector<8x384xf32>
    %204 = tpu.matmul %200, %48, %cst_56 {dimension_numbers = #tpu.dot_dimension_numbers<[1], [0], [0], [1], [0, 0, 1, 1], [], []>} : vector<8x128xf32>, vector<128x384xf32>, vector<8x384xf32> -> vector<8x384xf32>
    %205 = vector.extract_strided_slice %203 {offsets = [0, 0], sizes = [8, 128], strides = [1, 1]} : vector<8x384xf32> to vector<8x128xf32>
    %206 = vector.extract_strided_slice %204 {offsets = [0, 0], sizes = [8, 128], strides = [1, 1]} : vector<8x384xf32> to vector<8x128xf32>
    %207 = arith.addf %205, %206 : vector<8x128xf32>
    %208 = arith.negf %207 : vector<8x128xf32>
    %209 = math.exp %208 : vector<8x128xf32>
    %cst_57 = arith.constant 1.000000e+00 : f32
    %210 = vector.broadcast %cst_57 : f32 to vector<8x128xf32>
    %211 = arith.addf %210, %209 : vector<8x128xf32>
    %212 = arith.divf %210, %211 : vector<8x128xf32>
    %213 = vector.extract_strided_slice %203 {offsets = [0, 128], sizes = [8, 128], strides = [1, 1]} : vector<8x384xf32> to vector<8x128xf32>
    %214 = vector.extract_strided_slice %204 {offsets = [0, 128], sizes = [8, 128], strides = [1, 1]} : vector<8x384xf32> to vector<8x128xf32>
    %215 = arith.addf %213, %214 : vector<8x128xf32>
    %216 = arith.negf %215 : vector<8x128xf32>
    %217 = math.exp %216 : vector<8x128xf32>
    %cst_58 = arith.constant 1.000000e+00 : f32
    %218 = vector.broadcast %cst_58 : f32 to vector<8x128xf32>
    %219 = arith.addf %218, %217 : vector<8x128xf32>
    %220 = arith.divf %218, %219 : vector<8x128xf32>
    %221 = vector.extract_strided_slice %203 {offsets = [0, 256], sizes = [8, 128], strides = [1, 1]} : vector<8x384xf32> to vector<8x128xf32>
    %222 = vector.extract_strided_slice %204 {offsets = [0, 256], sizes = [8, 128], strides = [1, 1]} : vector<8x384xf32> to vector<8x128xf32>
    %223 = vector.broadcast %49 : vector<1x128xf32> to vector<8x128xf32>
    %224 = arith.addf %222, %223 : vector<8x128xf32>
    %225 = arith.mulf %212, %224 : vector<8x128xf32>
    %226 = arith.addf %221, %225 : vector<8x128xf32>
    %227 = math.tanh %226 : vector<8x128xf32>
    %228 = arith.subf %200, %227 : vector<8x128xf32>
    %229 = arith.mulf %220, %228 : vector<8x128xf32>
    %230 = arith.addf %227, %229 : vector<8x128xf32>
    %c6_i32 = arith.constant 6 : i32
    %231 = arith.index_cast %c6_i32 : i32 to index
    %c0_59 = arith.constant 0 : index
    %c0_60 = arith.constant 0 : index
    %232 = vector.load %arg7[%231, %c0_59, %c0_60] : memref<8x8x384xf32, #tpu.memory_space<vmem>>, vector<1x8x384xf32>
    %233 = vector.shape_cast %232 : vector<1x8x384xf32> to vector<8x384xf32>
    %cst_61 = arith.constant dense<0.000000e+00> : vector<8x384xf32>
    %234 = tpu.matmul %230, %48, %cst_61 {dimension_numbers = #tpu.dot_dimension_numbers<[1], [0], [0], [1], [0, 0, 1, 1], [], []>} : vector<8x128xf32>, vector<128x384xf32>, vector<8x384xf32> -> vector<8x384xf32>
    %235 = vector.extract_strided_slice %233 {offsets = [0, 0], sizes = [8, 128], strides = [1, 1]} : vector<8x384xf32> to vector<8x128xf32>
    %236 = vector.extract_strided_slice %234 {offsets = [0, 0], sizes = [8, 128], strides = [1, 1]} : vector<8x384xf32> to vector<8x128xf32>
    %237 = arith.addf %235, %236 : vector<8x128xf32>
    %238 = arith.negf %237 : vector<8x128xf32>
    %239 = math.exp %238 : vector<8x128xf32>
    %cst_62 = arith.constant 1.000000e+00 : f32
    %240 = vector.broadcast %cst_62 : f32 to vector<8x128xf32>
    %241 = arith.addf %240, %239 : vector<8x128xf32>
    %242 = arith.divf %240, %241 : vector<8x128xf32>
    %243 = vector.extract_strided_slice %233 {offsets = [0, 128], sizes = [8, 128], strides = [1, 1]} : vector<8x384xf32> to vector<8x128xf32>
    %244 = vector.extract_strided_slice %234 {offsets = [0, 128], sizes = [8, 128], strides = [1, 1]} : vector<8x384xf32> to vector<8x128xf32>
    %245 = arith.addf %243, %244 : vector<8x128xf32>
    %246 = arith.negf %245 : vector<8x128xf32>
    %247 = math.exp %246 : vector<8x128xf32>
    %cst_63 = arith.constant 1.000000e+00 : f32
    %248 = vector.broadcast %cst_63 : f32 to vector<8x128xf32>
    %249 = arith.addf %248, %247 : vector<8x128xf32>
    %250 = arith.divf %248, %249 : vector<8x128xf32>
    %251 = vector.extract_strided_slice %233 {offsets = [0, 256], sizes = [8, 128], strides = [1, 1]} : vector<8x384xf32> to vector<8x128xf32>
    %252 = vector.extract_strided_slice %234 {offsets = [0, 256], sizes = [8, 128], strides = [1, 1]} : vector<8x384xf32> to vector<8x128xf32>
    %253 = vector.broadcast %49 : vector<1x128xf32> to vector<8x128xf32>
    %254 = arith.addf %252, %253 : vector<8x128xf32>
    %255 = arith.mulf %242, %254 : vector<8x128xf32>
    %256 = arith.addf %251, %255 : vector<8x128xf32>
    %257 = math.tanh %256 : vector<8x128xf32>
    %258 = arith.subf %230, %257 : vector<8x128xf32>
    %259 = arith.mulf %250, %258 : vector<8x128xf32>
    %260 = arith.addf %257, %259 : vector<8x128xf32>
    %c7_i32 = arith.constant 7 : i32
    %261 = arith.index_cast %c7_i32 : i32 to index
    %c0_64 = arith.constant 0 : index
    %c0_65 = arith.constant 0 : index
    %262 = vector.load %arg7[%261, %c0_64, %c0_65] : memref<8x8x384xf32, #tpu.memory_space<vmem>>, vector<1x8x384xf32>
    %263 = vector.shape_cast %262 : vector<1x8x384xf32> to vector<8x384xf32>
    %cst_66 = arith.constant dense<0.000000e+00> : vector<8x384xf32>
    %264 = tpu.matmul %260, %48, %cst_66 {dimension_numbers = #tpu.dot_dimension_numbers<[1], [0], [0], [1], [0, 0, 1, 1], [], []>} : vector<8x128xf32>, vector<128x384xf32>, vector<8x384xf32> -> vector<8x384xf32>
    %265 = vector.extract_strided_slice %263 {offsets = [0, 0], sizes = [8, 128], strides = [1, 1]} : vector<8x384xf32> to vector<8x128xf32>
    %266 = vector.extract_strided_slice %264 {offsets = [0, 0], sizes = [8, 128], strides = [1, 1]} : vector<8x384xf32> to vector<8x128xf32>
    %267 = arith.addf %265, %266 : vector<8x128xf32>
    %268 = arith.negf %267 : vector<8x128xf32>
    %269 = math.exp %268 : vector<8x128xf32>
    %cst_67 = arith.constant 1.000000e+00 : f32
    %270 = vector.broadcast %cst_67 : f32 to vector<8x128xf32>
    %271 = arith.addf %270, %269 : vector<8x128xf32>
    %272 = arith.divf %270, %271 : vector<8x128xf32>
    %273 = vector.extract_strided_slice %263 {offsets = [0, 128], sizes = [8, 128], strides = [1, 1]} : vector<8x384xf32> to vector<8x128xf32>
    %274 = vector.extract_strided_slice %264 {offsets = [0, 128], sizes = [8, 128], strides = [1, 1]} : vector<8x384xf32> to vector<8x128xf32>
    %275 = arith.addf %273, %274 : vector<8x128xf32>
    %276 = arith.negf %275 : vector<8x128xf32>
    %277 = math.exp %276 : vector<8x128xf32>
    %cst_68 = arith.constant 1.000000e+00 : f32
    %278 = vector.broadcast %cst_68 : f32 to vector<8x128xf32>
    %279 = arith.addf %278, %277 : vector<8x128xf32>
    %280 = arith.divf %278, %279 : vector<8x128xf32>
    %281 = vector.extract_strided_slice %263 {offsets = [0, 256], sizes = [8, 128], strides = [1, 1]} : vector<8x384xf32> to vector<8x128xf32>
    %282 = vector.extract_strided_slice %264 {offsets = [0, 256], sizes = [8, 128], strides = [1, 1]} : vector<8x384xf32> to vector<8x128xf32>
    %283 = vector.broadcast %49 : vector<1x128xf32> to vector<8x128xf32>
    %284 = arith.addf %282, %283 : vector<8x128xf32>
    %285 = arith.mulf %272, %284 : vector<8x128xf32>
    %286 = arith.addf %281, %285 : vector<8x128xf32>
    %287 = math.tanh %286 : vector<8x128xf32>
    %288 = arith.subf %260, %287 : vector<8x128xf32>
    %289 = arith.mulf %280, %288 : vector<8x128xf32>
    %290 = arith.addf %287, %289 : vector<8x128xf32>
    %c8_i32 = arith.constant 8 : i32
    %c0_69 = arith.constant 0 : index
    %c0_70 = arith.constant 0 : index
    %291 = vector.load %arg8[%c0_69, %c0_70] : memref<8x128xf32, #tpu.memory_space<vmem>>, vector<8x128xf32>
    tpu.vector_store %arg8[%c0_69, %c0_70], %290 {strides = array<i32>} : memref<8x128xf32, #tpu.memory_space<vmem>>, vector<8x128xf32>,
    %c1_i32_71 = arith.constant 1 : i32
    %292 = arith.cmpi eq, %arg1, %c1_i32_71 : i32
    %293 = arith.extui %292 : i1 to i32
    %c0_i32_72 = arith.constant 0 : i32
    %294 = arith.cmpi ne, %293, %c0_i32_72 : i32
    scf.if %294 {
      %c0_73 = arith.constant 0 : index
      %c0_74 = arith.constant 0 : index
      %295 = vector.load %arg6[%c0_73, %c0_74] : memref<8x128xf32, #tpu.memory_space<vmem>>, vector<8x128xf32>
      tpu.vector_store %arg6[%c0_73, %c0_74], %290 {strides = array<i32>} : memref<8x128xf32, #tpu.memory_space<vmem>>, vector<8x128xf32>,
    } else {
    }
    return
  }
  func.func @transform_0(%arg0: i32, %arg1: i32) -> (i32, i32, i32) {
    %c0_i32 = arith.constant 0 : i32
    %c0_i32_0 = arith.constant 0 : i32
    return %arg0, %arg1, %c0_i32 : i32, i32, i32
  }
  func.func @transform_1(%arg0: i32, %arg1: i32) -> (i32, i32) {
    %c0_i32 = arith.constant 0 : i32
    %c0_i32_0 = arith.constant 0 : i32
    %c0_i32_1 = arith.constant 0 : i32
    return %c0_i32, %c0_i32_0 : i32, i32
  }
  func.func @transform_2(%arg0: i32, %arg1: i32) -> (i32, i32) {
    %c0_i32 = arith.constant 0 : i32
    %c0_i32_0 = arith.constant 0 : i32
    %c0_i32_1 = arith.constant 0 : i32
    return %c0_i32, %c0_i32_0 : i32, i32
  }
  func.func @transform_3(%arg0: i32, %arg1: i32) -> (i32, i32) {
    %c0_i32 = arith.constant 0 : i32
    %c0_i32_0 = arith.constant 0 : i32
    %c0_i32_1 = arith.constant 0 : i32
    return %c0_i32, %c0_i32_0 : i32, i32
  }
  func.func @transform_4(%arg0: i32, %arg1: i32) -> (i32, i32) {
    %c0_i32 = arith.constant 0 : i32
    %c0_i32_0 = arith.constant 0 : i32
    return %arg0, %c0_i32 : i32, i32
  }
}

module attributes {stable_mosaic.version = 11 : i64} {
  func.func @_gru_kernel(%arg0: i32, %arg1: i32, %arg2: memref<8x8x128xf32, #tpu.memory_space<vmem>>, %arg3: memref<128x384xf32, #tpu.memory_space<vmem>>, %arg4: memref<128x384xf32, #tpu.memory_space<vmem>>, %arg5: memref<1x128xf32, #tpu.memory_space<vmem>>, %arg6: memref<8x128xf32, #tpu.memory_space<vmem>>, %arg7: memref<8x8x384xf32, #tpu.memory_space<vmem>>, %arg8: memref<8x128xf32, #tpu.memory_space<vmem>>) attributes {dimension_semantics = [#tpu.dimension_semantics<parallel>, #tpu.dimension_semantics<arbitrary>], iteration_bounds = array<i64: 1, 2>, scalar_prefetch = 0 : i64, scratch_operands = 2 : i64, tpu.core_type = #tpu.core_type<tc>, window_params = [{transform_indices = @transform_0, window_bounds = array<i64: 8, 8, 128>}, {pipeline_mode = #tpu.pipeline_mode<synchronous>, transform_indices = @transform_1, window_bounds = array<i64: 128, 384>}, {pipeline_mode = #tpu.pipeline_mode<synchronous>, transform_indices = @transform_2, window_bounds = array<i64: 128, 384>}, {pipeline_mode = #tpu.pipeline_mode<synchronous>, transform_indices = @transform_3, window_bounds = array<i64: 1, 128>}, {transform_indices = @transform_4, window_bounds = array<i64: 8, 128>}]} {
    %c0_i32 = arith.constant 0 : i32
    %0 = arith.cmpi eq, %arg1, %c0_i32 : i32
    %1 = arith.extui %0 : i1 to i32
    %c0_i32_0 = arith.constant 0 : i32
    %2 = arith.cmpi ne, %1, %c0_i32_0 : i32
    scf.if %2 {
      %cst_73 = arith.constant 0.000000e+00 : f32
      %295 = vector.broadcast %cst_73 : f32 to vector<8x128xf32>
      %c0_74 = arith.constant 0 : index
      %c0_75 = arith.constant 0 : index
      %296 = vector.load %arg8[%c0_74, %c0_75] : memref<8x128xf32, #tpu.memory_space<vmem>>, vector<8x128xf32>
      tpu.vector_store %arg8[%c0_74, %c0_75], %295 {strides = array<i32>} : memref<8x128xf32, #tpu.memory_space<vmem>>, vector<8x128xf32>,
    } else {
    }
    %c0 = arith.constant 0 : index
    %c0_1 = arith.constant 0 : index
    %c0_2 = arith.constant 0 : index
    %3 = vector.load %arg2[%c0, %c0_1, %c0_2] : memref<8x8x128xf32, #tpu.memory_space<vmem>>, vector<8x8x128xf32>
    %4 = vector.shape_cast %3 : vector<8x8x128xf32> to vector<64x128xf32>
    %c0_3 = arith.constant 0 : index
    %c0_4 = arith.constant 0 : index
    %5 = vector.load %arg3[%c0_3, %c0_4] : memref<128x384xf32, #tpu.memory_space<vmem>>, vector<128x384xf32>
    %cst = arith.constant dense<0.000000e+00> : vector<64x384xf32>
    %6 = tpu.matmul %4, %5, %cst {dimension_numbers = #tpu.dot_dimension_numbers<[1], [0], [0], [1], [0, 0, 1, 1], [], []>} : vector<64x128xf32>, vector<128x384xf32>, vector<64x384xf32> -> vector<64x384xf32>
    %7 = vector.shape_cast %6 : vector<64x384xf32> to vector<8x8x384xf32>
    %8 = vector.extract_strided_slice %7 {offsets = [0, 0, 0], sizes = [8, 1, 384], strides = [1, 1, 1]} : vector<8x8x384xf32> to vector<8x1x384xf32>
    %9 = vector.shape_cast %8 : vector<8x1x384xf32> to vector<8x384xf32>
    %c0_5 = arith.constant 0 : index
    %c0_6 = arith.constant 0 : index
    %c0_7 = arith.constant 0 : index
    %10 = vector.load %arg7[%c0_5, %c0_6, %c0_7] : memref<8x8x384xf32, #tpu.memory_space<vmem>>, vector<1x8x384xf32>
    %11 = vector.shape_cast %10 : vector<1x8x384xf32> to vector<8x384xf32>
    %12 = vector.shape_cast %9 : vector<8x384xf32> to vector<1x8x384xf32>
    tpu.vector_store %arg7[%c0_5, %c0_6, %c0_7], %12 {strides = array<i32>} : memref<8x8x384xf32, #tpu.memory_space<vmem>>, vector<1x8x384xf32>,
    %13 = vector.extract_strided_slice %7 {offsets = [0, 1, 0], sizes = [8, 1, 384], strides = [1, 1, 1]} : vector<8x8x384xf32> to vector<8x1x384xf32>
    %14 = vector.shape_cast %13 : vector<8x1x384xf32> to vector<8x384xf32>
    %c1 = arith.constant 1 : index
    %c0_8 = arith.constant 0 : index
    %c0_9 = arith.constant 0 : index
    %15 = vector.load %arg7[%c1, %c0_8, %c0_9] : memref<8x8x384xf32, #tpu.memory_space<vmem>>, vector<1x8x384xf32>
    %16 = vector.shape_cast %15 : vector<1x8x384xf32> to vector<8x384xf32>
    %17 = vector.shape_cast %14 : vector<8x384xf32> to vector<1x8x384xf32>
    tpu.vector_store %arg7[%c1, %c0_8, %c0_9], %17 {strides = array<i32>} : memref<8x8x384xf32, #tpu.memory_space<vmem>>, vector<1x8x384xf32>,
    %18 = vector.extract_strided_slice %7 {offsets = [0, 2, 0], sizes = [8, 1, 384], strides = [1, 1, 1]} : vector<8x8x384xf32> to vector<8x1x384xf32>
    %19 = vector.shape_cast %18 : vector<8x1x384xf32> to vector<8x384xf32>
    %c2 = arith.constant 2 : index
    %c0_10 = arith.constant 0 : index
    %c0_11 = arith.constant 0 : index
    %20 = vector.load %arg7[%c2, %c0_10, %c0_11] : memref<8x8x384xf32, #tpu.memory_space<vmem>>, vector<1x8x384xf32>
    %21 = vector.shape_cast %20 : vector<1x8x384xf32> to vector<8x384xf32>
    %22 = vector.shape_cast %19 : vector<8x384xf32> to vector<1x8x384xf32>
    tpu.vector_store %arg7[%c2, %c0_10, %c0_11], %22 {strides = array<i32>} : memref<8x8x384xf32, #tpu.memory_space<vmem>>, vector<1x8x384xf32>,
    %23 = vector.extract_strided_slice %7 {offsets = [0, 3, 0], sizes = [8, 1, 384], strides = [1, 1, 1]} : vector<8x8x384xf32> to vector<8x1x384xf32>
    %24 = vector.shape_cast %23 : vector<8x1x384xf32> to vector<8x384xf32>
    %c3 = arith.constant 3 : index
    %c0_12 = arith.constant 0 : index
    %c0_13 = arith.constant 0 : index
    %25 = vector.load %arg7[%c3, %c0_12, %c0_13] : memref<8x8x384xf32, #tpu.memory_space<vmem>>, vector<1x8x384xf32>
    %26 = vector.shape_cast %25 : vector<1x8x384xf32> to vector<8x384xf32>
    %27 = vector.shape_cast %24 : vector<8x384xf32> to vector<1x8x384xf32>
    tpu.vector_store %arg7[%c3, %c0_12, %c0_13], %27 {strides = array<i32>} : memref<8x8x384xf32, #tpu.memory_space<vmem>>, vector<1x8x384xf32>,
    %28 = vector.extract_strided_slice %7 {offsets = [0, 4, 0], sizes = [8, 1, 384], strides = [1, 1, 1]} : vector<8x8x384xf32> to vector<8x1x384xf32>
    %29 = vector.shape_cast %28 : vector<8x1x384xf32> to vector<8x384xf32>
    %c4 = arith.constant 4 : index
    %c0_14 = arith.constant 0 : index
    %c0_15 = arith.constant 0 : index
    %30 = vector.load %arg7[%c4, %c0_14, %c0_15] : memref<8x8x384xf32, #tpu.memory_space<vmem>>, vector<1x8x384xf32>
    %31 = vector.shape_cast %30 : vector<1x8x384xf32> to vector<8x384xf32>
    %32 = vector.shape_cast %29 : vector<8x384xf32> to vector<1x8x384xf32>
    tpu.vector_store %arg7[%c4, %c0_14, %c0_15], %32 {strides = array<i32>} : memref<8x8x384xf32, #tpu.memory_space<vmem>>, vector<1x8x384xf32>,
    %33 = vector.extract_strided_slice %7 {offsets = [0, 5, 0], sizes = [8, 1, 384], strides = [1, 1, 1]} : vector<8x8x384xf32> to vector<8x1x384xf32>
    %34 = vector.shape_cast %33 : vector<8x1x384xf32> to vector<8x384xf32>
    %c5 = arith.constant 5 : index
    %c0_16 = arith.constant 0 : index
    %c0_17 = arith.constant 0 : index
    %35 = vector.load %arg7[%c5, %c0_16, %c0_17] : memref<8x8x384xf32, #tpu.memory_space<vmem>>, vector<1x8x384xf32>
    %36 = vector.shape_cast %35 : vector<1x8x384xf32> to vector<8x384xf32>
    %37 = vector.shape_cast %34 : vector<8x384xf32> to vector<1x8x384xf32>
    tpu.vector_store %arg7[%c5, %c0_16, %c0_17], %37 {strides = array<i32>} : memref<8x8x384xf32, #tpu.memory_space<vmem>>, vector<1x8x384xf32>,
    %38 = vector.extract_strided_slice %7 {offsets = [0, 6, 0], sizes = [8, 1, 384], strides = [1, 1, 1]} : vector<8x8x384xf32> to vector<8x1x384xf32>
    %39 = vector.shape_cast %38 : vector<8x1x384xf32> to vector<8x384xf32>
    %c6 = arith.constant 6 : index
    %c0_18 = arith.constant 0 : index
    %c0_19 = arith.constant 0 : index
    %40 = vector.load %arg7[%c6, %c0_18, %c0_19] : memref<8x8x384xf32, #tpu.memory_space<vmem>>, vector<1x8x384xf32>
    %41 = vector.shape_cast %40 : vector<1x8x384xf32> to vector<8x384xf32>
    %42 = vector.shape_cast %39 : vector<8x384xf32> to vector<1x8x384xf32>
    tpu.vector_store %arg7[%c6, %c0_18, %c0_19], %42 {strides = array<i32>} : memref<8x8x384xf32, #tpu.memory_space<vmem>>, vector<1x8x384xf32>,
    %43 = vector.extract_strided_slice %7 {offsets = [0, 7, 0], sizes = [8, 1, 384], strides = [1, 1, 1]} : vector<8x8x384xf32> to vector<8x1x384xf32>
    %44 = vector.shape_cast %43 : vector<8x1x384xf32> to vector<8x384xf32>
    %c7 = arith.constant 7 : index
    %c0_20 = arith.constant 0 : index
    %c0_21 = arith.constant 0 : index
    %45 = vector.load %arg7[%c7, %c0_20, %c0_21] : memref<8x8x384xf32, #tpu.memory_space<vmem>>, vector<1x8x384xf32>
    %46 = vector.shape_cast %45 : vector<1x8x384xf32> to vector<8x384xf32>
    %47 = vector.shape_cast %44 : vector<8x384xf32> to vector<1x8x384xf32>
    tpu.vector_store %arg7[%c7, %c0_20, %c0_21], %47 {strides = array<i32>} : memref<8x8x384xf32, #tpu.memory_space<vmem>>, vector<1x8x384xf32>,
    %c0_22 = arith.constant 0 : index
    %c0_23 = arith.constant 0 : index
    %48 = vector.load %arg4[%c0_22, %c0_23] : memref<128x384xf32, #tpu.memory_space<vmem>>, vector<128x384xf32>
    %c0_24 = arith.constant 0 : index
    %c0_25 = arith.constant 0 : index
    %49 = vector.load %arg5[%c0_24, %c0_25] : memref<1x128xf32, #tpu.memory_space<vmem>>, vector<1x128xf32>
    %c0_26 = arith.constant 0 : index
    %c0_27 = arith.constant 0 : index
    %50 = vector.load %arg8[%c0_26, %c0_27] : memref<8x128xf32, #tpu.memory_space<vmem>>, vector<8x128xf32>
    %c0_i32_28 = arith.constant 0 : i32
    %51 = arith.index_cast %c0_i32_28 : i32 to index
    %c0_29 = arith.constant 0 : index
    %c0_30 = arith.constant 0 : index
    %52 = vector.load %arg7[%51, %c0_29, %c0_30] : memref<8x8x384xf32, #tpu.memory_space<vmem>>, vector<1x8x384xf32>
    %53 = vector.shape_cast %52 : vector<1x8x384xf32> to vector<8x384xf32>
    %cst_31 = arith.constant dense<0.000000e+00> : vector<8x384xf32>
    %54 = tpu.matmul %50, %48, %cst_31 {dimension_numbers = #tpu.dot_dimension_numbers<[1], [0], [0], [1], [0, 0, 1, 1], [], []>} : vector<8x128xf32>, vector<128x384xf32>, vector<8x384xf32> -> vector<8x384xf32>
    %55 = vector.extract_strided_slice %53 {offsets = [0, 0], sizes = [8, 128], strides = [1, 1]} : vector<8x384xf32> to vector<8x128xf32>
    %56 = vector.extract_strided_slice %54 {offsets = [0, 0], sizes = [8, 128], strides = [1, 1]} : vector<8x384xf32> to vector<8x128xf32>
    %57 = arith.addf %55, %56 : vector<8x128xf32>
    %58 = arith.negf %57 : vector<8x128xf32>
    %59 = math.exp %58 : vector<8x128xf32>
    %cst_32 = arith.constant 1.000000e+00 : f32
    %60 = vector.broadcast %cst_32 : f32 to vector<8x128xf32>
    %61 = arith.addf %60, %59 : vector<8x128xf32>
    %62 = arith.divf %60, %61 : vector<8x128xf32>
    %63 = vector.extract_strided_slice %53 {offsets = [0, 128], sizes = [8, 128], strides = [1, 1]} : vector<8x384xf32> to vector<8x128xf32>
    %64 = vector.extract_strided_slice %54 {offsets = [0, 128], sizes = [8, 128], strides = [1, 1]} : vector<8x384xf32> to vector<8x128xf32>
    %65 = arith.addf %63, %64 : vector<8x128xf32>
    %66 = arith.negf %65 : vector<8x128xf32>
    %67 = math.exp %66 : vector<8x128xf32>
    %cst_33 = arith.constant 1.000000e+00 : f32
    %68 = vector.broadcast %cst_33 : f32 to vector<8x128xf32>
    %69 = arith.addf %68, %67 : vector<8x128xf32>
    %70 = arith.divf %68, %69 : vector<8x128xf32>
    %71 = vector.extract_strided_slice %53 {offsets = [0, 256], sizes = [8, 128], strides = [1, 1]} : vector<8x384xf32> to vector<8x128xf32>
    %72 = vector.extract_strided_slice %54 {offsets = [0, 256], sizes = [8, 128], strides = [1, 1]} : vector<8x384xf32> to vector<8x128xf32>
    %73 = vector.broadcast %49 : vector<1x128xf32> to vector<8x128xf32>
    %74 = arith.addf %72, %73 : vector<8x128xf32>
    %75 = arith.mulf %62, %74 : vector<8x128xf32>
    %76 = arith.addf %71, %75 : vector<8x128xf32>
    %77 = math.tanh %76 : vector<8x128xf32>
    %78 = arith.subf %50, %77 : vector<8x128xf32>
    %79 = arith.mulf %70, %78 : vector<8x128xf32>
    %80 = arith.addf %77, %79 : vector<8x128xf32>
    %c1_i32 = arith.constant 1 : i32
    %81 = arith.index_cast %c1_i32 : i32 to index
    %c0_34 = arith.constant 0 : index
    %c0_35 = arith.constant 0 : index
    %82 = vector.load %arg7[%81, %c0_34, %c0_35] : memref<8x8x384xf32, #tpu.memory_space<vmem>>, vector<1x8x384xf32>
    %83 = vector.shape_cast %82 : vector<1x8x384xf32> to vector<8x384xf32>
    %cst_36 = arith.constant dense<0.000000e+00> : vector<8x384xf32>
    %84 = tpu.matmul %80, %48, %cst_36 {dimension_numbers = #tpu.dot_dimension_numbers<[1], [0], [0], [1], [0, 0, 1, 1], [], []>} : vector<8x128xf32>, vector<128x384xf32>, vector<8x384xf32> -> vector<8x384xf32>
    %85 = vector.extract_strided_slice %83 {offsets = [0, 0], sizes = [8, 128], strides = [1, 1]} : vector<8x384xf32> to vector<8x128xf32>
    %86 = vector.extract_strided_slice %84 {offsets = [0, 0], sizes = [8, 128], strides = [1, 1]} : vector<8x384xf32> to vector<8x128xf32>
    %87 = arith.addf %85, %86 : vector<8x128xf32>
    %88 = arith.negf %87 : vector<8x128xf32>
    %89 = math.exp %88 : vector<8x128xf32>
    %cst_37 = arith.constant 1.000000e+00 : f32
    %90 = vector.broadcast %cst_37 : f32 to vector<8x128xf32>
    %91 = arith.addf %90, %89 : vector<8x128xf32>
    %92 = arith.divf %90, %91 : vector<8x128xf32>
    %93 = vector.extract_strided_slice %83 {offsets = [0, 128], sizes = [8, 128], strides = [1, 1]} : vector<8x384xf32> to vector<8x128xf32>
    %94 = vector.extract_strided_slice %84 {offsets = [0, 128], sizes = [8, 128], strides = [1, 1]} : vector<8x384xf32> to vector<8x128xf32>
    %95 = arith.addf %93, %94 : vector<8x128xf32>
    %96 = arith.negf %95 : vector<8x128xf32>
    %97 = math.exp %96 : vector<8x128xf32>
    %cst_38 = arith.constant 1.000000e+00 : f32
    %98 = vector.broadcast %cst_38 : f32 to vector<8x128xf32>
    %99 = arith.addf %98, %97 : vector<8x128xf32>
    %100 = arith.divf %98, %99 : vector<8x128xf32>
    %101 = vector.extract_strided_slice %83 {offsets = [0, 256], sizes = [8, 128], strides = [1, 1]} : vector<8x384xf32> to vector<8x128xf32>
    %102 = vector.extract_strided_slice %84 {offsets = [0, 256], sizes = [8, 128], strides = [1, 1]} : vector<8x384xf32> to vector<8x128xf32>
    %103 = vector.broadcast %49 : vector<1x128xf32> to vector<8x128xf32>
    %104 = arith.addf %102, %103 : vector<8x128xf32>
    %105 = arith.mulf %92, %104 : vector<8x128xf32>
    %106 = arith.addf %101, %105 : vector<8x128xf32>
    %107 = math.tanh %106 : vector<8x128xf32>
    %108 = arith.subf %80, %107 : vector<8x128xf32>
    %109 = arith.mulf %100, %108 : vector<8x128xf32>
    %110 = arith.addf %107, %109 : vector<8x128xf32>
    %c2_i32 = arith.constant 2 : i32
    %111 = arith.index_cast %c2_i32 : i32 to index
    %c0_39 = arith.constant 0 : index
    %c0_40 = arith.constant 0 : index
    %112 = vector.load %arg7[%111, %c0_39, %c0_40] : memref<8x8x384xf32, #tpu.memory_space<vmem>>, vector<1x8x384xf32>
    %113 = vector.shape_cast %112 : vector<1x8x384xf32> to vector<8x384xf32>
    %cst_41 = arith.constant dense<0.000000e+00> : vector<8x384xf32>
    %114 = tpu.matmul %110, %48, %cst_41 {dimension_numbers = #tpu.dot_dimension_numbers<[1], [0], [0], [1], [0, 0, 1, 1], [], []>} : vector<8x128xf32>, vector<128x384xf32>, vector<8x384xf32> -> vector<8x384xf32>
    %115 = vector.extract_strided_slice %113 {offsets = [0, 0], sizes = [8, 128], strides = [1, 1]} : vector<8x384xf32> to vector<8x128xf32>
    %116 = vector.extract_strided_slice %114 {offsets = [0, 0], sizes = [8, 128], strides = [1, 1]} : vector<8x384xf32> to vector<8x128xf32>
    %117 = arith.addf %115, %116 : vector<8x128xf32>
    %118 = arith.negf %117 : vector<8x128xf32>
    %119 = math.exp %118 : vector<8x128xf32>
    %cst_42 = arith.constant 1.000000e+00 : f32
    %120 = vector.broadcast %cst_42 : f32 to vector<8x128xf32>
    %121 = arith.addf %120, %119 : vector<8x128xf32>
    %122 = arith.divf %120, %121 : vector<8x128xf32>
    %123 = vector.extract_strided_slice %113 {offsets = [0, 128], sizes = [8, 128], strides = [1, 1]} : vector<8x384xf32> to vector<8x128xf32>
    %124 = vector.extract_strided_slice %114 {offsets = [0, 128], sizes = [8, 128], strides = [1, 1]} : vector<8x384xf32> to vector<8x128xf32>
    %125 = arith.addf %123, %124 : vector<8x128xf32>
    %126 = arith.negf %125 : vector<8x128xf32>
    %127 = math.exp %126 : vector<8x128xf32>
    %cst_43 = arith.constant 1.000000e+00 : f32
    %128 = vector.broadcast %cst_43 : f32 to vector<8x128xf32>
    %129 = arith.addf %128, %127 : vector<8x128xf32>
    %130 = arith.divf %128, %129 : vector<8x128xf32>
    %131 = vector.extract_strided_slice %113 {offsets = [0, 256], sizes = [8, 128], strides = [1, 1]} : vector<8x384xf32> to vector<8x128xf32>
    %132 = vector.extract_strided_slice %114 {offsets = [0, 256], sizes = [8, 128], strides = [1, 1]} : vector<8x384xf32> to vector<8x128xf32>
    %133 = vector.broadcast %49 : vector<1x128xf32> to vector<8x128xf32>
    %134 = arith.addf %132, %133 : vector<8x128xf32>
    %135 = arith.mulf %122, %134 : vector<8x128xf32>
    %136 = arith.addf %131, %135 : vector<8x128xf32>
    %137 = math.tanh %136 : vector<8x128xf32>
    %138 = arith.subf %110, %137 : vector<8x128xf32>
    %139 = arith.mulf %130, %138 : vector<8x128xf32>
    %140 = arith.addf %137, %139 : vector<8x128xf32>
    %c3_i32 = arith.constant 3 : i32
    %141 = arith.index_cast %c3_i32 : i32 to index
    %c0_44 = arith.constant 0 : index
    %c0_45 = arith.constant 0 : index
    %142 = vector.load %arg7[%141, %c0_44, %c0_45] : memref<8x8x384xf32, #tpu.memory_space<vmem>>, vector<1x8x384xf32>
    %143 = vector.shape_cast %142 : vector<1x8x384xf32> to vector<8x384xf32>
    %cst_46 = arith.constant dense<0.000000e+00> : vector<8x384xf32>
    %144 = tpu.matmul %140, %48, %cst_46 {dimension_numbers = #tpu.dot_dimension_numbers<[1], [0], [0], [1], [0, 0, 1, 1], [], []>} : vector<8x128xf32>, vector<128x384xf32>, vector<8x384xf32> -> vector<8x384xf32>
    %145 = vector.extract_strided_slice %143 {offsets = [0, 0], sizes = [8, 128], strides = [1, 1]} : vector<8x384xf32> to vector<8x128xf32>
    %146 = vector.extract_strided_slice %144 {offsets = [0, 0], sizes = [8, 128], strides = [1, 1]} : vector<8x384xf32> to vector<8x128xf32>
    %147 = arith.addf %145, %146 : vector<8x128xf32>
    %148 = arith.negf %147 : vector<8x128xf32>
    %149 = math.exp %148 : vector<8x128xf32>
    %cst_47 = arith.constant 1.000000e+00 : f32
    %150 = vector.broadcast %cst_47 : f32 to vector<8x128xf32>
    %151 = arith.addf %150, %149 : vector<8x128xf32>
    %152 = arith.divf %150, %151 : vector<8x128xf32>
    %153 = vector.extract_strided_slice %143 {offsets = [0, 128], sizes = [8, 128], strides = [1, 1]} : vector<8x384xf32> to vector<8x128xf32>
    %154 = vector.extract_strided_slice %144 {offsets = [0, 128], sizes = [8, 128], strides = [1, 1]} : vector<8x384xf32> to vector<8x128xf32>
    %155 = arith.addf %153, %154 : vector<8x128xf32>
    %156 = arith.negf %155 : vector<8x128xf32>
    %157 = math.exp %156 : vector<8x128xf32>
    %cst_48 = arith.constant 1.000000e+00 : f32
    %158 = vector.broadcast %cst_48 : f32 to vector<8x128xf32>
    %159 = arith.addf %158, %157 : vector<8x128xf32>
    %160 = arith.divf %158, %159 : vector<8x128xf32>
    %161 = vector.extract_strided_slice %143 {offsets = [0, 256], sizes = [8, 128], strides = [1, 1]} : vector<8x384xf32> to vector<8x128xf32>
    %162 = vector.extract_strided_slice %144 {offsets = [0, 256], sizes = [8, 128], strides = [1, 1]} : vector<8x384xf32> to vector<8x128xf32>
    %163 = vector.broadcast %49 : vector<1x128xf32> to vector<8x128xf32>
    %164 = arith.addf %162, %163 : vector<8x128xf32>
    %165 = arith.mulf %152, %164 : vector<8x128xf32>
    %166 = arith.addf %161, %165 : vector<8x128xf32>
    %167 = math.tanh %166 : vector<8x128xf32>
    %168 = arith.subf %140, %167 : vector<8x128xf32>
    %169 = arith.mulf %160, %168 : vector<8x128xf32>
    %170 = arith.addf %167, %169 : vector<8x128xf32>
    %c4_i32 = arith.constant 4 : i32
    %171 = arith.index_cast %c4_i32 : i32 to index
    %c0_49 = arith.constant 0 : index
    %c0_50 = arith.constant 0 : index
    %172 = vector.load %arg7[%171, %c0_49, %c0_50] : memref<8x8x384xf32, #tpu.memory_space<vmem>>, vector<1x8x384xf32>
    %173 = vector.shape_cast %172 : vector<1x8x384xf32> to vector<8x384xf32>
    %cst_51 = arith.constant dense<0.000000e+00> : vector<8x384xf32>
    %174 = tpu.matmul %170, %48, %cst_51 {dimension_numbers = #tpu.dot_dimension_numbers<[1], [0], [0], [1], [0, 0, 1, 1], [], []>} : vector<8x128xf32>, vector<128x384xf32>, vector<8x384xf32> -> vector<8x384xf32>
    %175 = vector.extract_strided_slice %173 {offsets = [0, 0], sizes = [8, 128], strides = [1, 1]} : vector<8x384xf32> to vector<8x128xf32>
    %176 = vector.extract_strided_slice %174 {offsets = [0, 0], sizes = [8, 128], strides = [1, 1]} : vector<8x384xf32> to vector<8x128xf32>
    %177 = arith.addf %175, %176 : vector<8x128xf32>
    %178 = arith.negf %177 : vector<8x128xf32>
    %179 = math.exp %178 : vector<8x128xf32>
    %cst_52 = arith.constant 1.000000e+00 : f32
    %180 = vector.broadcast %cst_52 : f32 to vector<8x128xf32>
    %181 = arith.addf %180, %179 : vector<8x128xf32>
    %182 = arith.divf %180, %181 : vector<8x128xf32>
    %183 = vector.extract_strided_slice %173 {offsets = [0, 128], sizes = [8, 128], strides = [1, 1]} : vector<8x384xf32> to vector<8x128xf32>
    %184 = vector.extract_strided_slice %174 {offsets = [0, 128], sizes = [8, 128], strides = [1, 1]} : vector<8x384xf32> to vector<8x128xf32>
    %185 = arith.addf %183, %184 : vector<8x128xf32>
    %186 = arith.negf %185 : vector<8x128xf32>
    %187 = math.exp %186 : vector<8x128xf32>
    %cst_53 = arith.constant 1.000000e+00 : f32
    %188 = vector.broadcast %cst_53 : f32 to vector<8x128xf32>
    %189 = arith.addf %188, %187 : vector<8x128xf32>
    %190 = arith.divf %188, %189 : vector<8x128xf32>
    %191 = vector.extract_strided_slice %173 {offsets = [0, 256], sizes = [8, 128], strides = [1, 1]} : vector<8x384xf32> to vector<8x128xf32>
    %192 = vector.extract_strided_slice %174 {offsets = [0, 256], sizes = [8, 128], strides = [1, 1]} : vector<8x384xf32> to vector<8x128xf32>
    %193 = vector.broadcast %49 : vector<1x128xf32> to vector<8x128xf32>
    %194 = arith.addf %192, %193 : vector<8x128xf32>
    %195 = arith.mulf %182, %194 : vector<8x128xf32>
    %196 = arith.addf %191, %195 : vector<8x128xf32>
    %197 = math.tanh %196 : vector<8x128xf32>
    %198 = arith.subf %170, %197 : vector<8x128xf32>
    %199 = arith.mulf %190, %198 : vector<8x128xf32>
    %200 = arith.addf %197, %199 : vector<8x128xf32>
    %c5_i32 = arith.constant 5 : i32
    %201 = arith.index_cast %c5_i32 : i32 to index
    %c0_54 = arith.constant 0 : index
    %c0_55 = arith.constant 0 : index
    %202 = vector.load %arg7[%201, %c0_54, %c0_55] : memref<8x8x384xf32, #tpu.memory_space<vmem>>, vector<1x8x384xf32>
    %203 = vector.shape_cast %202 : vector<1x8x384xf32> to vector<8x384xf32>
    %cst_56 = arith.constant dense<0.000000e+00> : vector<8x384xf32>
    %204 = tpu.matmul %200, %48, %cst_56 {dimension_numbers = #tpu.dot_dimension_numbers<[1], [0], [0], [1], [0, 0, 1, 1], [], []>} : vector<8x128xf32>, vector<128x384xf32>, vector<8x384xf32> -> vector<8x384xf32>
    %205 = vector.extract_strided_slice %203 {offsets = [0, 0], sizes = [8, 128], strides = [1, 1]} : vector<8x384xf32> to vector<8x128xf32>
    %206 = vector.extract_strided_slice %204 {offsets = [0, 0], sizes = [8, 128], strides = [1, 1]} : vector<8x384xf32> to vector<8x128xf32>
    %207 = arith.addf %205, %206 : vector<8x128xf32>
    %208 = arith.negf %207 : vector<8x128xf32>
    %209 = math.exp %208 : vector<8x128xf32>
    %cst_57 = arith.constant 1.000000e+00 : f32
    %210 = vector.broadcast %cst_57 : f32 to vector<8x128xf32>
    %211 = arith.addf %210, %209 : vector<8x128xf32>
    %212 = arith.divf %210, %211 : vector<8x128xf32>
    %213 = vector.extract_strided_slice %203 {offsets = [0, 128], sizes = [8, 128], strides = [1, 1]} : vector<8x384xf32> to vector<8x128xf32>
    %214 = vector.extract_strided_slice %204 {offsets = [0, 128], sizes = [8, 128], strides = [1, 1]} : vector<8x384xf32> to vector<8x128xf32>
    %215 = arith.addf %213, %214 : vector<8x128xf32>
    %216 = arith.negf %215 : vector<8x128xf32>
    %217 = math.exp %216 : vector<8x128xf32>
    %cst_58 = arith.constant 1.000000e+00 : f32
    %218 = vector.broadcast %cst_58 : f32 to vector<8x128xf32>
    %219 = arith.addf %218, %217 : vector<8x128xf32>
    %220 = arith.divf %218, %219 : vector<8x128xf32>
    %221 = vector.extract_strided_slice %203 {offsets = [0, 256], sizes = [8, 128], strides = [1, 1]} : vector<8x384xf32> to vector<8x128xf32>
    %222 = vector.extract_strided_slice %204 {offsets = [0, 256], sizes = [8, 128], strides = [1, 1]} : vector<8x384xf32> to vector<8x128xf32>
    %223 = vector.broadcast %49 : vector<1x128xf32> to vector<8x128xf32>
    %224 = arith.addf %222, %223 : vector<8x128xf32>
    %225 = arith.mulf %212, %224 : vector<8x128xf32>
    %226 = arith.addf %221, %225 : vector<8x128xf32>
    %227 = math.tanh %226 : vector<8x128xf32>
    %228 = arith.subf %200, %227 : vector<8x128xf32>
    %229 = arith.mulf %220, %228 : vector<8x128xf32>
    %230 = arith.addf %227, %229 : vector<8x128xf32>
    %c6_i32 = arith.constant 6 : i32
    %231 = arith.index_cast %c6_i32 : i32 to index
    %c0_59 = arith.constant 0 : index
    %c0_60 = arith.constant 0 : index
    %232 = vector.load %arg7[%231, %c0_59, %c0_60] : memref<8x8x384xf32, #tpu.memory_space<vmem>>, vector<1x8x384xf32>
    %233 = vector.shape_cast %232 : vector<1x8x384xf32> to vector<8x384xf32>
    %cst_61 = arith.constant dense<0.000000e+00> : vector<8x384xf32>
    %234 = tpu.matmul %230, %48, %cst_61 {dimension_numbers = #tpu.dot_dimension_numbers<[1], [0], [0], [1], [0, 0, 1, 1], [], []>} : vector<8x128xf32>, vector<128x384xf32>, vector<8x384xf32> -> vector<8x384xf32>
    %235 = vector.extract_strided_slice %233 {offsets = [0, 0], sizes = [8, 128], strides = [1, 1]} : vector<8x384xf32> to vector<8x128xf32>
    %236 = vector.extract_strided_slice %234 {offsets = [0, 0], sizes = [8, 128], strides = [1, 1]} : vector<8x384xf32> to vector<8x128xf32>
    %237 = arith.addf %235, %236 : vector<8x128xf32>
    %238 = arith.negf %237 : vector<8x128xf32>
    %239 = math.exp %238 : vector<8x128xf32>
    %cst_62 = arith.constant 1.000000e+00 : f32
    %240 = vector.broadcast %cst_62 : f32 to vector<8x128xf32>
    %241 = arith.addf %240, %239 : vector<8x128xf32>
    %242 = arith.divf %240, %241 : vector<8x128xf32>
    %243 = vector.extract_strided_slice %233 {offsets = [0, 128], sizes = [8, 128], strides = [1, 1]} : vector<8x384xf32> to vector<8x128xf32>
    %244 = vector.extract_strided_slice %234 {offsets = [0, 128], sizes = [8, 128], strides = [1, 1]} : vector<8x384xf32> to vector<8x128xf32>
    %245 = arith.addf %243, %244 : vector<8x128xf32>
    %246 = arith.negf %245 : vector<8x128xf32>
    %247 = math.exp %246 : vector<8x128xf32>
    %cst_63 = arith.constant 1.000000e+00 : f32
    %248 = vector.broadcast %cst_63 : f32 to vector<8x128xf32>
    %249 = arith.addf %248, %247 : vector<8x128xf32>
    %250 = arith.divf %248, %249 : vector<8x128xf32>
    %251 = vector.extract_strided_slice %233 {offsets = [0, 256], sizes = [8, 128], strides = [1, 1]} : vector<8x384xf32> to vector<8x128xf32>
    %252 = vector.extract_strided_slice %234 {offsets = [0, 256], sizes = [8, 128], strides = [1, 1]} : vector<8x384xf32> to vector<8x128xf32>
    %253 = vector.broadcast %49 : vector<1x128xf32> to vector<8x128xf32>
    %254 = arith.addf %252, %253 : vector<8x128xf32>
    %255 = arith.mulf %242, %254 : vector<8x128xf32>
    %256 = arith.addf %251, %255 : vector<8x128xf32>
    %257 = math.tanh %256 : vector<8x128xf32>
    %258 = arith.subf %230, %257 : vector<8x128xf32>
    %259 = arith.mulf %250, %258 : vector<8x128xf32>
    %260 = arith.addf %257, %259 : vector<8x128xf32>
    %c7_i32 = arith.constant 7 : i32
    %261 = arith.index_cast %c7_i32 : i32 to index
    %c0_64 = arith.constant 0 : index
    %c0_65 = arith.constant 0 : index
    %262 = vector.load %arg7[%261, %c0_64, %c0_65] : memref<8x8x384xf32, #tpu.memory_space<vmem>>, vector<1x8x384xf32>
    %263 = vector.shape_cast %262 : vector<1x8x384xf32> to vector<8x384xf32>
    %cst_66 = arith.constant dense<0.000000e+00> : vector<8x384xf32>
    %264 = tpu.matmul %260, %48, %cst_66 {dimension_numbers = #tpu.dot_dimension_numbers<[1], [0], [0], [1], [0, 0, 1, 1], [], []>} : vector<8x128xf32>, vector<128x384xf32>, vector<8x384xf32> -> vector<8x384xf32>
    %265 = vector.extract_strided_slice %263 {offsets = [0, 0], sizes = [8, 128], strides = [1, 1]} : vector<8x384xf32> to vector<8x128xf32>
    %266 = vector.extract_strided_slice %264 {offsets = [0, 0], sizes = [8, 128], strides = [1, 1]} : vector<8x384xf32> to vector<8x128xf32>
    %267 = arith.addf %265, %266 : vector<8x128xf32>
    %268 = arith.negf %267 : vector<8x128xf32>
    %269 = math.exp %268 : vector<8x128xf32>
    %cst_67 = arith.constant 1.000000e+00 : f32
    %270 = vector.broadcast %cst_67 : f32 to vector<8x128xf32>
    %271 = arith.addf %270, %269 : vector<8x128xf32>
    %272 = arith.divf %270, %271 : vector<8x128xf32>
    %273 = vector.extract_strided_slice %263 {offsets = [0, 128], sizes = [8, 128], strides = [1, 1]} : vector<8x384xf32> to vector<8x128xf32>
    %274 = vector.extract_strided_slice %264 {offsets = [0, 128], sizes = [8, 128], strides = [1, 1]} : vector<8x384xf32> to vector<8x128xf32>
    %275 = arith.addf %273, %274 : vector<8x128xf32>
    %276 = arith.negf %275 : vector<8x128xf32>
    %277 = math.exp %276 : vector<8x128xf32>
    %cst_68 = arith.constant 1.000000e+00 : f32
    %278 = vector.broadcast %cst_68 : f32 to vector<8x128xf32>
    %279 = arith.addf %278, %277 : vector<8x128xf32>
    %280 = arith.divf %278, %279 : vector<8x128xf32>
    %281 = vector.extract_strided_slice %263 {offsets = [0, 256], sizes = [8, 128], strides = [1, 1]} : vector<8x384xf32> to vector<8x128xf32>
    %282 = vector.extract_strided_slice %264 {offsets = [0, 256], sizes = [8, 128], strides = [1, 1]} : vector<8x384xf32> to vector<8x128xf32>
    %283 = vector.broadcast %49 : vector<1x128xf32> to vector<8x128xf32>
    %284 = arith.addf %282, %283 : vector<8x128xf32>
    %285 = arith.mulf %272, %284 : vector<8x128xf32>
    %286 = arith.addf %281, %285 : vector<8x128xf32>
    %287 = math.tanh %286 : vector<8x128xf32>
    %288 = arith.subf %260, %287 : vector<8x128xf32>
    %289 = arith.mulf %280, %288 : vector<8x128xf32>
    %290 = arith.addf %287, %289 : vector<8x128xf32>
    %c8_i32 = arith.constant 8 : i32
    %c0_69 = arith.constant 0 : index
    %c0_70 = arith.constant 0 : index
    %291 = vector.load %arg8[%c0_69, %c0_70] : memref<8x128xf32, #tpu.memory_space<vmem>>, vector<8x128xf32>
    tpu.vector_store %arg8[%c0_69, %c0_70], %290 {strides = array<i32>} : memref<8x128xf32, #tpu.memory_space<vmem>>, vector<8x128xf32>,
    %c1_i32_71 = arith.constant 1 : i32
    %292 = arith.cmpi eq, %arg1, %c1_i32_71 : i32
    %293 = arith.extui %292 : i1 to i32
    %c0_i32_72 = arith.constant 0 : i32
    %294 = arith.cmpi ne, %293, %c0_i32_72 : i32
    scf.if %294 {
      %c0_73 = arith.constant 0 : index
      %c0_74 = arith.constant 0 : index
      %295 = vector.load %arg6[%c0_73, %c0_74] : memref<8x128xf32, #tpu.memory_space<vmem>>, vector<8x128xf32>
      tpu.vector_store %arg6[%c0_73, %c0_74], %290 {strides = array<i32>} : memref<8x128xf32, #tpu.memory_space<vmem>>, vector<8x128xf32>,
    } else {
    }
    return
  }
  func.func @transform_0(%arg0: i32, %arg1: i32) -> (i32, i32, i32) {
    %c0_i32 = arith.constant 0 : i32
    %c0_i32_0 = arith.constant 0 : i32
    return %arg0, %arg1, %c0_i32 : i32, i32, i32
  }
  func.func @transform_1(%arg0: i32, %arg1: i32) -> (i32, i32) {
    %c0_i32 = arith.constant 0 : i32
    %c0_i32_0 = arith.constant 0 : i32
    %c0_i32_1 = arith.constant 0 : i32
    return %c0_i32, %c0_i32_0 : i32, i32
  }
  func.func @transform_2(%arg0: i32, %arg1: i32) -> (i32, i32) {
    %c0_i32 = arith.constant 0 : i32
    %c0_i32_0 = arith.constant 0 : i32
    %c0_i32_1 = arith.constant 0 : i32
    return %c0_i32, %c0_i32_0 : i32, i32
  }
  func.func @transform_3(%arg0: i32, %arg1: i32) -> (i32, i32) {
    %c0_i32 = arith.constant 0 : i32
    %c0_i32_0 = arith.constant 0 : i32
    %c0_i32_1 = arith.constant 0 : i32
    return %c0_i32, %c0_i32_0 : i32, i32
  }
  func.func @transform_4(%arg0: i32, %arg1: i32) -> (i32, i32) {
    %c0_i32 = arith.constant 0 : i32
    %c0_i32_0 = arith.constant 0 : i32
    return %arg0, %c0_i32 : i32, i32
  }
}

</mosaic_0001>

<llo_original>
// kernel: tpu_custom_call.1
$region0: #{tpu_custom_call.1}
  #allocation0 [shape = 'u32[]', space=smem, size = 0x4, offset = 0x4, fixed_abs, tag = 'smem constant byte address 0x4 - core index']
  #allocation1 [shape = 'u32[144,128]{1,0:T(1,128)}', space=vmem, size = 0x12000, scoped, tag = 'internal scratch']
  #allocation2 [shape = 'f32[8,8,384]{2,1,0:T(8,128)}', space=vmem, size = 0x18000, scoped, tag = 'scratch operand']
  #allocation3 [shape = 'f32[8,128]{1,0:T(8,128)}', space=vmem, size = 0x1000, scoped, tag = 'scratch operand']
  %s0 = inlined_call_operand.hbm [shape: f32[8,16,128], index: 0, kind: input, shape index: {}]
  %s1 = inlined_call_operand.hbm [shape: f32[128,384], index: 1, kind: input, shape index: {}]
  %s2 = inlined_call_operand.hbm [shape: f32[128,384], index: 2, kind: input, shape index: {}]
  %s3 = inlined_call_operand.vmem [shape: f32[1,128], index: 3, kind: input, shape index: {}]
  %s4 = inlined_call_operand.hbm [shape: f32[8,128], index: 4, kind: output, shape index: {}]
  %s5 = sld [smem:[#allocation0]]
  $region69: #{tpu_custom_call.1} parent=0
    _
  %s7 = ssub.s32 1, %s5
  %s8 = scalar_select 0, %s7, %s5
  $region1: #{tpu_custom_call.1} parent=0
    #allocation4 [shape = 'u8[65536]{0}', space=vmem, size = 0x10000, scoped, tag = 'input window, operand 0']
    #allocation5 [shape = 's32[2]{0}', space=sflag, size = 0x8, scoped, tag = 'scoped memory for tpu_custom_call.1']
    #allocation6 [shape = 's32[2]{0}', space=sflag, size = 0x8, scoped, tag = 'scoped memory for tpu_custom_call.1']
    #allocation7 [shape = 'u8[196608]{0}', space=vmem, size = 0x30000, scoped, tag = 'input window, operand 1, single buffered']
    #allocation8 [shape = 's32[1]{0}', space=sflag, size = 0x4, scoped, tag = 'scoped memory for tpu_custom_call.1']
    #allocation9 [shape = 'u8[196608]{0}', space=vmem, size = 0x30000, scoped, tag = 'input window, operand 2, single buffered']
    #allocation10 [shape = 'u8[4096]{0}', space=vmem, size = 0x1000, scoped, tag = 'output window, operand 0, single buffered']
    %9 = vsyncpa [#allocation5], 0
    %s10 = scalar_lea.sflag [#allocation5], 1
    %11 = vsyncpa %s10, 0
    %12 = vsyncpa [#allocation8], 0
    %13 = vsyncpa [#allocation6], 0
    loop: start=0, step=1, limit=4
    $region2: #{tpu_custom_call.1} parent=1 // loop_pre_header
      _
    $region3: #{tpu_custom_call.1} parent=1 // loop_header
      %s15 = sphi 0, %s19
      %p16 = scmp.ge.s32.totalorder %s15, 4
      %s22 = sphi 0, %s34
      %s23 = sphi 0, %s30
      %s24 = sphi 0, %s22
      %s25 = sphi 0, %s23
      %s26 = sphi 0, %s24
      %s27 = sphi 0, %s25
      %s39 = sphi 0, %s41
      %s42 = sphi 0, %s39
      %s43 = sphi 0, %s42
      %s59 = sphi 0, %s43
      %s63 = sphi 0, %s63
      %s65 = sphi 0, %s63
      %s66 = sphi 0, %s65
      %s80 = sphi 0, %s66
      %s84 = sphi 0, %s84
      %s86 = sphi 0, %s84
      %s87 = sphi 0, %s86
      %s101 = sphi 0, %s87
      %s105 = sphi 0, %s105
      %s107 = sphi 0, %s105
      %s108 = sphi 0, %s107
      %s122 = sphi 0, %s108
      %s128 = sphi 0, %s130
      %s131 = sphi 0, %s128
      %s132 = sphi 0, %s131
      %s148 = sphi 0, %s132
    $region4: #{tpu_custom_call.1} parent=1 // loop_header_branch
      %18 = sbr.rel (%p16) target = $region8
    $region5: #{tpu_custom_call.1} parent=1 // loop_body
      %s20 = ssub.s32 %s15, 1
      %s21 = ssub.s32 %s15, 2
      %s28 = sadd.s32 1, %s23
      %p29 = scmp.ge.s32.totalorder %s28, 2
      %s30 = scalar_select %p29, 0, %s28
      %s31 = sadd.s32 1, %s22
      %s32 = scalar_select %p29, %s31, %s22
      %p33 = scmp.ge.s32.totalorder %s32, 1
      %s34 = scalar_select %p33, 0, %s32
      %s35 = ssub.s32 %s22, %s34
      %s36 = ssub.s32 %s23, %s30
      %s37 = sor.u32 %s35, %s36
      %p38 = scmp.eq.s32.totalorder %s37, 0
      %s40 = sadd.s32 %s39, 1
      %s41 = scalar_select %p38, %s39, %s40
      %p44 = pneg %p38
      %p45 = scmp.eq.s32.totalorder %s15, 1
      %p46 = por %p44, %p45
      %p47 = scmp.ne.s32.totalorder %s39, %s42
      %p48 = scmp.eq.s32.totalorder %s15, 0
      %p49 = por %p47, %p48
      %p50 = scmp.ne.s32.totalorder %s39, %s42
      %p51 = scmp.eq.s32.totalorder %s20, 1
      %p52 = por %p50, %p51
      %p53 = scmp.ne.s32.totalorder %s42, %s43
      %p54 = scmp.eq.s32.totalorder %s20, 0
      %p55 = por %p53, %p54
      %p56 = scmp.ne.s32.totalorder %s42, %s43
      %p57 = scmp.eq.s32.totalorder %s21, 1
      %p58 = por %p56, %p57
      %p60 = scmp.ne.s32.totalorder %s43, %s59
      %p61 = scmp.eq.s32.totalorder %s21, 0
      %p62 = por %p60, %p61
      %s64 = sadd.s32 %s63, 1
      %p67 = scmp.eq.s32.totalorder %s15, 1
      %p68 = scmp.ne.s32.totalorder %s63, %s65
      %p69 = scmp.eq.s32.totalorder %s15, 0
      %p70 = por %p68, %p69
      %p71 = scmp.ne.s32.totalorder %s63, %s65
      %p72 = scmp.eq.s32.totalorder %s20, 1
      %p73 = por %p71, %p72
      %p74 = scmp.ne.s32.totalorder %s65, %s66
      %p75 = scmp.eq.s32.totalorder %s20, 0
      %p76 = por %p74, %p75
      %p77 = scmp.ne.s32.totalorder %s65, %s66
      %p78 = scmp.eq.s32.totalorder %s21, 1
      %p79 = por %p77, %p78
      %p81 = scmp.ne.s32.totalorder %s66, %s80
      %p82 = scmp.eq.s32.totalorder %s21, 0
      %p83 = por %p81, %p82
      %s85 = sadd.s32 %s84, 1
      %p88 = scmp.eq.s32.totalorder %s15, 1
      %p89 = scmp.ne.s32.totalorder %s84, %s86
      %p90 = scmp.eq.s32.totalorder %s15, 0
      %p91 = por %p89, %p90
      %p92 = scmp.ne.s32.totalorder %s84, %s86
      %p93 = scmp.eq.s32.totalorder %s20, 1
      %p94 = por %p92, %p93
      %p95 = scmp.ne.s32.totalorder %s86, %s87
      %p96 = scmp.eq.s32.totalorder %s20, 0
      %p97 = por %p95, %p96
      %p98 = scmp.ne.s32.totalorder %s86, %s87
      %p99 = scmp.eq.s32.totalorder %s21, 1
      %p100 = por %p98, %p99
      %p102 = scmp.ne.s32.totalorder %s87, %s101
      %p103 = scmp.eq.s32.totalorder %s21, 0
      %p104 = por %p102, %p103
      %s106 = sadd.s32 %s105, 1
      %p109 = scmp.eq.s32.totalorder %s15, 1
      %p110 = scmp.ne.s32.totalorder %s105, %s107
      %p111 = scmp.eq.s32.totalorder %s15, 0
      %p112 = por %p110, %p111
      %p113 = scmp.ne.s32.totalorder %s105, %s107
      %p114 = scmp.eq.s32.totalorder %s20, 1
      %p115 = por %p113, %p114
      %p116 = scmp.ne.s32.totalorder %s107, %s108
      %p117 = scmp.eq.s32.totalorder %s20, 0
      %p118 = por %p116, %p117
      %p119 = scmp.ne.s32.totalorder %s107, %s108
      %p120 = scmp.eq.s32.totalorder %s21, 1
      %p121 = por %p119, %p120
      %p123 = scmp.ne.s32.totalorder %s108, %s122
      %p124 = scmp.eq.s32.totalorder %s21, 0
      %p125 = por %p123, %p124
      %s126 = ssub.s32 %s22, %s34
      %p127 = scmp.eq.s32.totalorder %s126, 0
      %s129 = sadd.s32 %s128, 1
      %s130 = scalar_select %p127, %s128, %s129
      %p133 = pneg %p127
      %p134 = scmp.eq.s32.totalorder %s15, 1
      %p135 = por %p133, %p134
      %p136 = scmp.ne.s32.totalorder %s128, %s131
      %p137 = scmp.eq.s32.totalorder %s15, 0
      %p138 = por %p136, %p137
      %p139 = scmp.ne.s32.totalorder %s128, %s131
      %p140 = scmp.eq.s32.totalorder %s20, 1
      %p141 = por %p139, %p140
      %p142 = scmp.ne.s32.totalorder %s131, %s132
      %p143 = scmp.eq.s32.totalorder %s20, 0
      %p144 = por %p142, %p143
      %p145 = scmp.ne.s32.totalorder %s131, %s132
      %p146 = scmp.eq.s32.totalorder %s21, 1
      %p147 = por %p145, %p146
      %p149 = scmp.ne.s32.totalorder %s132, %s148
      %p150 = scmp.eq.s32.totalorder %s21, 0
      %p151 = por %p149, %p150
      %p152 = scmp.le.s32.totalorder 1, %s15
      %p153 = scmp.lt.s32.totalorder %s15, 3
      %p154 = pnand %p152, %p153
      %p155 = pneg %p154
      // Predicated region
      $region9: #{tpu_custom_call.1} parent=5 // pred_check
        _
      $region10: #{tpu_custom_call.1} parent=5 // pred_check_branch
        %157 = sbr.rel (%p154) target = $region12
      $region11: #{tpu_custom_call.1} parent=5 // pred_region
        %s158 = ssub.s32 %s15, 1
        // Predicated region
        $region13: #{tpu_custom_call.1} parent=11 // pred_check
          %p159 = pneg %p76
        $region14: #{tpu_custom_call.1} parent=11 // pred_check_branch
          %161 = sbr.rel (%p159) target = $region16
        $region15: #{tpu_custom_call.1} parent=11 // pred_region
          %s163 = ssub.s32 6144, 6144
          %164 = vsyncadd [#allocation8], %s163
          %s165 = sshll.u32 [#allocation7], 4
          %s166 = int_to_ptr.vmem [resolvable:$true] %s165
          %171 = dma.hbm_to_vmem [thread:$0]  %s1, 6144, %s166, [#allocation8], 384, 384, 24
        $region16: #{tpu_custom_call.1} parent=11 // pred_fallthru
          _
        // Predicated region
        $region17: #{tpu_custom_call.1} parent=11 // pred_check
          %p172 = pneg %p97
        $region18: #{tpu_custom_call.1} parent=11 // pred_check_branch
          %174 = sbr.rel (%p172) target = $region20
        $region19: #{tpu_custom_call.1} parent=11 // pred_region
          %s176 = ssub.s32 6144, 6144
          %177 = vsyncadd [#allocation8], %s176
          %s178 = sshll.u32 [#allocation9], 4
          %s179 = int_to_ptr.vmem [resolvable:$true] %s178
          %184 = dma.hbm_to_vmem [thread:$0]  %s2, 6144, %s179, [#allocation8], 384, 384, 24
        $region20: #{tpu_custom_call.1} parent=11 // pred_fallthru
          _
        // Predicated region
        $region21: #{tpu_custom_call.1} parent=11 // pred_check
          %p185 = pneg %p118
        $region22: #{tpu_custom_call.1} parent=11 // pred_check_branch
          %187 = sbr.rel (%p185) target = $region24
        $region23: #{tpu_custom_call.1} parent=11 // pred_region
          _
        $region24: #{tpu_custom_call.1} parent=11 // pred_fallthru
          _
      $region12: #{tpu_custom_call.1} parent=5 // pred_fallthru
        _
      %p188 = scmp.lt.s32.totalorder %s15, 2
      // Predicated region
      $region25: #{tpu_custom_call.1} parent=5 // pred_check
        %p189 = pneg %p188
      $region26: #{tpu_custom_call.1} parent=5 // pred_check_branch
        %191 = sbr.rel (%p189) target = $region28
      $region27: #{tpu_custom_call.1} parent=5 // pred_region
        // Predicated region
        $region29: #{tpu_custom_call.1} parent=27 // pred_check
          %p192 = pneg %p49
        $region30: #{tpu_custom_call.1} parent=27 // pred_check_branch
          %194 = sbr.rel (%p192) target = $region32
        $region31: #{tpu_custom_call.1} parent=27 // pred_region
          %s195 = sand.u32 %s39, 1
          %s196 = scalar_lea.sflag [#allocation5], %s195
          %s197 = sand.u32 %s39, 1
          %s198 = smul.addr %s197, 64
          %s199 = scalar_lea.vmem [#allocation4], %s198
          %s200 = smul.u32 8, %s22
          %s202 = ssub.s32 1024, 1024
          %203 = vsyncadd %s196, %s202
          %s204 = smul.addr %s200, 2
          %s205 = sadd.s32 %s23, %s204
          %s206 = smul.addr %s205, 128
          %s207 = scalar_lea.hbm %s0, %s206
          %s208 = sshll.u32 %s199, 4
          %s209 = int_to_ptr.vmem [resolvable:$true] %s208
          %214 = dma.hbm_to_vmem [thread:$0]  %s207, 1024, %s209, %s196, 256, 128, 8
        $region32: #{tpu_custom_call.1} parent=27 // pred_fallthru
          _
      $region28: #{tpu_custom_call.1} parent=5 // pred_fallthru
        _
      %p215 = scmp.le.s32.totalorder 1, %s15
      %p216 = scmp.lt.s32.totalorder %s15, 3
      %p217 = pnand %p215, %p216
      %p218 = pneg %p217
      // Predicated region
      $region33: #{tpu_custom_call.1} parent=5 // pred_check
        _
      $region34: #{tpu_custom_call.1} parent=5 // pred_check_branch
        %220 = sbr.rel (%p217) target = $region36
      $region35: #{tpu_custom_call.1} parent=5 // pred_region
        %s221 = ssub.s32 %s15, 1
        %s222 = sand.u32 %s42, 1
        %s223 = scalar_lea.sflag [#allocation5], %s222
        %s224 = sand.u32 %s42, 1
        %s225 = smul.addr %s224, 64
        %s226 = scalar_lea.vmem [#allocation4], %s225
        // Predicated region
        $region37: #{tpu_custom_call.1} parent=35 // pred_check
          %p227 = pneg %p55
        $region38: #{tpu_custom_call.1} parent=35 // pred_check_branch
          %229 = sbr.rel (%p227) target = $region40
        $region39: #{tpu_custom_call.1} parent=35 // pred_region
          %230 = dma.done %s223, 1024
        $region40: #{tpu_custom_call.1} parent=35 // pred_fallthru
          _
        // Predicated region
        $region41: #{tpu_custom_call.1} parent=35 // pred_check
          %p231 = pneg %p76
        $region42: #{tpu_custom_call.1} parent=35 // pred_check_branch
          %233 = sbr.rel (%p231) target = $region44
        $region43: #{tpu_custom_call.1} parent=35 // pred_region
          %234 = dma.done [#allocation8], 6144
        $region44: #{tpu_custom_call.1} parent=35 // pred_fallthru
          _
        // Predicated region
        $region45: #{tpu_custom_call.1} parent=35 // pred_check
          %p235 = pneg %p97
        $region46: #{tpu_custom_call.1} parent=35 // pred_check_branch
          %237 = sbr.rel (%p235) target = $region48
        $region47: #{tpu_custom_call.1} parent=35 // pred_region
          %238 = dma.done [#allocation8], 6144
        $region48: #{tpu_custom_call.1} parent=35 // pred_fallthru
          _
        %s239 = sand.u32 %s42, 1
        %s240 = scalar_lea.sflag [#allocation5], %s239
        %s241 = sand.u32 %s42, 1
        %s242 = smul.addr %s241, 64
        %s243 = scalar_lea.vmem [#allocation4], %s242
        %p244 = pneg %p55
        %p245 = pneg %p52
        %p246 = pneg %p76
        %p247 = pneg %p73
        %p248 = pneg %p97
        %p249 = pneg %p94
        %p250 = pneg %p118
        %p251 = pneg %p115
        %p252 = pneg %p144
        %p253 = pneg %p141
        %s254 = smul.u32 8, %s24
        %p255 = scmp.eq.s32.totalorder %s25, 0
        // Predicated region
        $region49: #{tpu_custom_call.1} parent=35 // pred_check
          %p256 = pneg %p255
        $region50: #{tpu_custom_call.1} parent=35 // pred_check_branch
          %258 = sbr.rel (%p256) target = $region52
        $region51: #{tpu_custom_call.1} parent=35 // pred_region
          %259 = vst [vmem:[#allocation3] sm:$0xff] 0.0
        $region52: #{tpu_custom_call.1} parent=35 // pred_fallthru
          _
        %v260 = vld [vmem:[%s226] sm:$0xff]
        %v261 = vld [vmem:[%s226 + $0x8] sm:$0xff]
        %v262 = vld [vmem:[%s226 + $0x10] sm:$0xff]
        %v263 = vld [vmem:[%s226 + $0x18] sm:$0xff]
        %v264 = vld [vmem:[%s226 + $0x20] sm:$0xff]
        %v265 = vld [vmem:[%s226 + $0x28] sm:$0xff]
        %v266 = vld [vmem:[%s226 + $0x30] sm:$0xff]
        %v267 = vld [vmem:[%s226 + $0x38] sm:$0xff]
        %v268 = vld [vmem:[#allocation7] sm:$0xff]
        %v269 = vld [vmem:[#allocation7 + $0x8] sm:$0xff]
        %v270 = vld [vmem:[#allocation7 + $0x10] sm:$0xff]
        %v271 = vld [vmem:[#allocation7 + $0x18] sm:$0xff]
        %v272 = vld [vmem:[#allocation7 + $0x20] sm:$0xff]
        %v273 = vld [vmem:[#allocation7 + $0x28] sm:$0xff]
        %v274 = vld [vmem:[#allocation7 + $0x30] sm:$0xff]
        %v275 = vld [vmem:[#allocation7 + $0x38] sm:$0xff]
        %v276 = vld [vmem:[#allocation7 + $0x40] sm:$0xff]
        %v277 = vld [vmem:[#allocation7 + $0x48] sm:$0xff]
        %v278 = vld [vmem:[#allocation7 + $0x50] sm:$0xff]
        %v279 = vld [vmem:[#allocation7 + $0x58] sm:$0xff]
        %v280 = vld [vmem:[#allocation7 + $0x60] sm:$0xff]
        %v281 = vld [vmem:[#allocation7 + $0x68] sm:$0xff]
        %v282 = vld [vmem:[#allocation7 + $0x70] sm:$0xff]
        %v283 = vld [vmem:[#allocation7 + $0x78] sm:$0xff]
        %v284 = vld [vmem:[#allocation7 + $0x80] sm:$0xff]
        %v285 = vld [vmem:[#allocation7 + $0x88] sm:$0xff]
        %v286 = vld [vmem:[#allocation7 + $0x90] sm:$0xff]
        %v287 = vld [vmem:[#allocation7 + $0x98] sm:$0xff]
        %v288 = vld [vmem:[#allocation7 + $0xa0] sm:$0xff]
        %v289 = vld [vmem:[#allocation7 + $0xa8] sm:$0xff]
        %v290 = vld [vmem:[#allocation7 + $0xb0] sm:$0xff]
        %v291 = vld [vmem:[#allocation7 + $0xb8] sm:$0xff]
        %v292 = vld [vmem:[#allocation7 + $0xc0] sm:$0xff]
        %v293 = vld [vmem:[#allocation7 + $0xc8] sm:$0xff]
        %v294 = vld [vmem:[#allocation7 + $0xd0] sm:$0xff]
        %v295 = vld [vmem:[#allocation7 + $0xd8] sm:$0xff]
        %v296 = vld [vmem:[#allocation7 + $0xe0] sm:$0xff]
        %v297 = vld [vmem:[#allocation7 + $0xe8] sm:$0xff]
        %v298 = vld [vmem:[#allocation7 + $0xf0] sm:$0xff]
        %v299 = vld [vmem:[#allocation7 + $0xf8] sm:$0xff]
        %v300 = vld [vmem:[#allocation7 + $0x100] sm:$0xff]
        %v301 = vld [vmem:[#allocation7 + $0x108] sm:$0xff]
        %v302 = vld [vmem:[#allocation7 + $0x110] sm:$0xff]
        %v303 = vld [vmem:[#allocation7 + $0x118] sm:$0xff]
        %v304 = vld [vmem:[#allocation7 + $0x120] sm:$0xff]
        %v305 = vld [vmem:[#allocation7 + $0x128] sm:$0xff]
        %v306 = vld [vmem:[#allocation7 + $0x130] sm:$0xff]
        %v307 = vld [vmem:[#allocation7 + $0x138] sm:$0xff]
        %v308 = vld [vmem:[#allocation7 + $0x140] sm:$0xff]
        %v309 = vld [vmem:[#allocation7 + $0x148] sm:$0xff]
        %v310 = vld [vmem:[#allocation7 + $0x150] sm:$0xff]
        %v311 = vld [vmem:[#allocation7 + $0x158] sm:$0xff]
        %v312 = vld [vmem:[#allocation7 + $0x160] sm:$0xff]
        %v313 = vld [vmem:[#allocation7 + $0x168] sm:$0xff]
        %v314 = vld [vmem:[#allocation7 + $0x170] sm:$0xff]
        %v315 = vld [vmem:[#allocation7 + $0x178] sm:$0xff]
        %316 = vmatprep.subr.mxu0 %v269
        %317 = vmatpush1.msra.mxu0 %v268
        %318 = vmatprep.subr.mxu0 %v272
        %319 = vmatpush1.msra.mxu0 %v271
        %320 = vmatprep.subr.mxu0 %v275
        %321 = vmatpush1.msra.mxu0 %v274
        %322 = vmatprep.subr.mxu0 %v278
        %323 = vmatpush1.msra.mxu0 %v277
        %324 = vmatprep.subr.mxu0 %v281
        %325 = vmatpush1.msra.mxu0 %v280
        %326 = vmatprep.subr.mxu0 %v284
        %327 = vmatpush1.msra.mxu0 %v283
        %328 = vmatprep.subr.mxu0 %v287
        %329 = vmatpush1.msra.mxu0 %v286
        %330 = vmatprep.subr.mxu0 %v290
        %331 = vmatpush1.msra.mxu0 %v289
        %332 = vmatprep.subr.mxu0 %v293
        %333 = vmatpush1.msra.mxu0 %v292
        %334 = vmatprep.subr.mxu0 %v296
        %335 = vmatpush1.msra.mxu0 %v295
        %336 = vmatprep.subr.mxu0 %v299
        %337 = vmatpush1.msra.mxu0 %v298
        %338 = vmatprep.subr.mxu0 %v302
        %339 = vmatpush1.msra.mxu0 %v301
        %340 = vmatprep.subr.mxu0 %v305
        %341 = vmatpush1.msra.mxu0 %v304
        %342 = vmatprep.subr.mxu0 %v308
        %343 = vmatpush1.msra.mxu0 %v307
        %344 = vmatprep.subr.mxu0 %v311
        %345 = vmatpush1.msra.mxu0 %v310
        %346 = vmatprep.subr.mxu0 %v314
        %347 = vmatpush1.msra.mxu0 %v313
        %348 = vmatprep.subr.mxu0 0.0
        %349 = vmatpush1.msra.mxu0 0.0
        %350 = vmatprep.subr.mxu0 0.0
        %351 = vmatpush1.msra.mxu0 0.0
        %352 = vmatprep.subr.mxu0 0.0
        %353 = vmatpush1.msra.mxu0 0.0
        %354 = vmatprep.subr.mxu0 0.0
        %355 = vmatpush1.msra.mxu0 0.0
        %356 = vmatprep.subr.mxu0 0.0
        %357 = vmatpush1.msra.mxu0 0.0
        %358 = vmatprep.subr.mxu0 0.0
        %359 = vmatpush1.msra.mxu0 0.0
        %360 = vmatprep.subr.mxu0 0.0
        %361 = vmatpush1.msra.mxu0 0.0
        %362 = vmatprep.subr.mxu0 0.0
        %363 = vmatpush1.msra.mxu0 0.0
        %364 = vmatprep.subr.mxu0 0.0
        %365 = vmatpush1.msra.mxu0 0.0
        %366 = vmatprep.subr.mxu0 0.0
        %367 = vmatpush1.msra.mxu0 0.0
        %368 = vmatprep.subr.mxu0 0.0
        %369 = vmatpush1.msra.mxu0 0.0
        %370 = vmatprep.subr.mxu0 0.0
        %371 = vmatpush1.msra.mxu0 0.0
        %372 = vmatprep.subr.mxu0 0.0
        %373 = vmatpush1.msra.mxu0 0.0
        %374 = vmatprep.subr.mxu0 0.0
        %375 = vmatpush1.msra.mxu0 0.0
        %376 = vmatprep.subr.mxu0 0.0
        %377 = vmatpush1.msra.mxu0 0.0
        %378 = vmatprep.subr.mxu0 0.0
        %379 = vmatpush1.msra.mxu0 0.0
        %380 = vmatprep.mubr.f32.mxu0 0.0
        %381 = vmatmul.mubr.f32.gmra.mrb[0].mxu0 %v260
        %v382 = vpop.f32.mrb[0].mxu0
        %v383 = vadd.f32 0.0, %v382
        %v384 = vpop.f32.mrb[0].mxu0
        %v385 = vadd.f32 0.0, %v384
        %386 = vmatprep.mubr.f32.mxu0 0.0
        %387 = vmatmul.mubr.f32.gmra.mrb[0].mxu0 %v261
        %v388 = vpop.f32.mrb[0].mxu0
        %v389 = vadd.f32 0.0, %v388
        %v390 = vpop.f32.mrb[0].mxu0
        %v391 = vadd.f32 0.0, %v390
        %392 = vmatprep.mubr.f32.mxu0 0.0
        %393 = vmatmul.mubr.f32.gmra.mrb[0].mxu0 %v262
        %v394 = vpop.f32.mrb[0].mxu0
        %v395 = vadd.f32 0.0, %v394
        %v396 = vpop.f32.mrb[0].mxu0
        %v397 = vadd.f32 0.0, %v396
        %398 = vmatprep.mubr.f32.mxu0 0.0
        %399 = vmatmul.mubr.f32.gmra.mrb[0].mxu0 %v263
        %v400 = vpop.f32.mrb[0].mxu0
        %v401 = vadd.f32 0.0, %v400
        %v402 = vpop.f32.mrb[0].mxu0
        %v403 = vadd.f32 0.0, %v402
        %404 = vmatprep.mubr.f32.mxu0 0.0
        %405 = vmatmul.mubr.f32.gmra.mrb[0].mxu0 %v264
        %v406 = vpop.f32.mrb[0].mxu0
        %v407 = vadd.f32 0.0, %v406
        %v408 = vpop.f32.mrb[0].mxu0
        %v409 = vadd.f32 0.0, %v408
        %410 = vmatprep.mubr.f32.mxu0 0.0
        %411 = vmatmul.mubr.f32.gmra.mrb[0].mxu0 %v265
        %v412 = vpop.f32.mrb[0].mxu0
        %v413 = vadd.f32 0.0, %v412
        %v414 = vpop.f32.mrb[0].mxu0
        %v415 = vadd.f32 0.0, %v414
        %416 = vmatprep.mubr.f32.mxu0 0.0
        %417 = vmatmul.mubr.f32.gmra.mrb[0].mxu0 %v266
        %v418 = vpop.f32.mrb[0].mxu0
        %v419 = vadd.f32 0.0, %v418
        %v420 = vpop.f32.mrb[0].mxu0
        %v421 = vadd.f32 0.0, %v420
        %422 = vmatprep.mubr.f32.mxu0 0.0
        %423 = vmatmul.mubr.f32.gmra.mrb[0].mxu0 %v267
        %v424 = vpop.f32.mrb[0].mxu0
        %v425 = vadd.f32 0.0, %v424
        %v426 = vpop.f32.mrb[0].mxu0
        %v427 = vadd.f32 0.0, %v426
        %428 = vdwg.mxu0
        %429 = vmatprep.subr.mxu0 0.0
        %430 = vmatpush1.msra.mxu0 %v270
        %431 = vmatprep.subr.mxu0 0.0
        %432 = vmatpush1.msra.mxu0 %v273
        %433 = vmatprep.subr.mxu0 0.0
        %434 = vmatpush1.msra.mxu0 %v276
        %435 = vmatprep.subr.mxu0 0.0
        %436 = vmatpush1.msra.mxu0 %v279
        %437 = vmatprep.subr.mxu0 0.0
        %438 = vmatpush1.msra.mxu0 %v282
        %439 = vmatprep.subr.mxu0 0.0
        %440 = vmatpush1.msra.mxu0 %v285
        %441 = vmatprep.subr.mxu0 0.0
        %442 = vmatpush1.msra.mxu0 %v288
        %443 = vmatprep.subr.mxu0 0.0
        %444 = vmatpush1.msra.mxu0 %v291
        %445 = vmatprep.subr.mxu0 0.0
        %446 = vmatpush1.msra.mxu0 %v294
        %447 = vmatprep.subr.mxu0 0.0
        %448 = vmatpush1.msra.mxu0 %v297
        %449 = vmatprep.subr.mxu0 0.0
        %450 = vmatpush1.msra.mxu0 %v300
        %451 = vmatprep.subr.mxu0 0.0
        %452 = vmatpush1.msra.mxu0 %v303
        %453 = vmatprep.subr.mxu0 0.0
        %454 = vmatpush1.msra.mxu0 %v306
        %455 = vmatprep.subr.mxu0 0.0
        %456 = vmatpush1.msra.mxu0 %v309
        %457 = vmatprep.subr.mxu0 0.0
        %458 = vmatpush1.msra.mxu0 %v312
        %459 = vmatprep.subr.mxu0 0.0
        %460 = vmatpush1.msra.mxu0 %v315
        %461 = vmatprep.subr.mxu0 0.0
        %462 = vmatpush1.msra.mxu0 0.0
        %463 = vmatprep.subr.mxu0 0.0
        %464 = vmatpush1.msra.mxu0 0.0
        %465 = vmatprep.subr.mxu0 0.0
        %466 = vmatpush1.msra.mxu0 0.0
        %467 = vmatprep.subr.mxu0 0.0
        %468 = vmatpush1.msra.mxu0 0.0
        %469 = vmatprep.subr.mxu0 0.0
        %470 = vmatpush1.msra.mxu0 0.0
        %471 = vmatprep.subr.mxu0 0.0
        %472 = vmatpush1.msra.mxu0 0.0
        %473 = vmatprep.subr.mxu0 0.0
        %474 = vmatpush1.msra.mxu0 0.0
        %475 = vmatprep.subr.mxu0 0.0
        %476 = vmatpush1.msra.mxu0 0.0
        %477 = vmatprep.subr.mxu0 0.0
        %478 = vmatpush1.msra.mxu0 0.0
        %479 = vmatprep.subr.mxu0 0.0
        %480 = vmatpush1.msra.mxu0 0.0
        %481 = vmatprep.subr.mxu0 0.0
        %482 = vmatpush1.msra.mxu0 0.0
        %483 = vmatprep.subr.mxu0 0.0
        %484 = vmatpush1.msra.mxu0 0.0
        %485 = vmatprep.subr.mxu0 0.0
        %486 = vmatpush1.msra.mxu0 0.0
        %487 = vmatprep.subr.mxu0 0.0
        %488 = vmatpush1.msra.mxu0 0.0
        %489 = vmatprep.subr.mxu0 0.0
        %490 = vmatpush1.msra.mxu0 0.0
        %491 = vmatprep.subr.mxu0 0.0
        %492 = vmatpush1.msra.mxu0 0.0
        %493 = vmatprep.mubr.f32.mxu0 0.0
        %494 = vmatmul.mubr.f32.gmra.mrb[0].mxu0 %v260
        %v495 = vpop.f32.mrb[0].mxu0
        %v496 = vadd.f32 0.0, %v495
        %v497 = vpop.f32.mrb[0].mxu0
        %498 = vmatprep.mubr.f32.mxu0 0.0
        %499 = vmatmul.mubr.f32.gmra.mrb[0].mxu0 %v261
        %v500 = vpop.f32.mrb[0].mxu0
        %v501 = vadd.f32 0.0, %v500
        %v502 = vpop.f32.mrb[0].mxu0
        %503 = vmatprep.mubr.f32.mxu0 0.0
        %504 = vmatmul.mubr.f32.gmra.mrb[0].mxu0 %v262
        %v505 = vpop.f32.mrb[0].mxu0
        %v506 = vadd.f32 0.0, %v505
        %v507 = vpop.f32.mrb[0].mxu0
        %508 = vmatprep.mubr.f32.mxu0 0.0
        %509 = vmatmul.mubr.f32.gmra.mrb[0].mxu0 %v263
        %v510 = vpop.f32.mrb[0].mxu0
        %v511 = vadd.f32 0.0, %v510
        %v512 = vpop.f32.mrb[0].mxu0
        %513 = vmatprep.mubr.f32.mxu0 0.0
        %514 = vmatmul.mubr.f32.gmra.mrb[0].mxu0 %v264
        %v515 = vpop.f32.mrb[0].mxu0
        %v516 = vadd.f32 0.0, %v515
        %v517 = vpop.f32.mrb[0].mxu0
        %518 = vmatprep.mubr.f32.mxu0 0.0
        %519 = vmatmul.mubr.f32.gmra.mrb[0].mxu0 %v265
        %v520 = vpop.f32.mrb[0].mxu0
        %v521 = vadd.f32 0.0, %v520
        %v522 = vpop.f32.mrb[0].mxu0
        %523 = vmatprep.mubr.f32.mxu0 0.0
        %524 = vmatmul.mubr.f32.gmra.mrb[0].mxu0 %v266
        %v525 = vpop.f32.mrb[0].mxu0
        %v526 = vadd.f32 0.0, %v525
        %v527 = vpop.f32.mrb[0].mxu0
        %528 = vmatprep.mubr.f32.mxu0 0.0
        %529 = vmatmul.mubr.f32.gmra.mrb[0].mxu0 %v267
        %v530 = vpop.f32.mrb[0].mxu0
        %v531 = vadd.f32 0.0, %v530
        %v532 = vpop.f32.mrb[0].mxu0
        %533 = vdwg.mxu0
        %v558 = vrot.slane %v389, 7
        %vm559 = vcmask 1041409
        %v560 = vsel %vm559, %v558, %v383
        %v561 = vrot.slane %v395, 6
        %vm562 = vcmask 1042434
        %v563 = vsel %vm562, %v561, %v560
        %v564 = vrot.slane %v401, 5
        %vm565 = vcmask 1043459
        %v566 = vsel %vm565, %v564, %v563
        %v567 = vrot.slane %v407, 4
        %vm568 = vcmask 1044484
        %v569 = vsel %vm568, %v567, %v566
        %v570 = vrot.slane %v413, 3
        %vm571 = vcmask 1045509
        %v572 = vsel %vm571, %v570, %v569
        %v573 = vrot.slane %v419, 2
        %vm574 = vcmask 1046534
        %v575 = vsel %vm574, %v573, %v572
        %v576 = vrot.slane %v425, 1
        %vm577 = vcmask 1047559
        %v578 = vsel %vm577, %v576, %v575
        %v579 = vrot.slane %v391, 7
        %v580 = vsel %vm559, %v579, %v385
        %v581 = vrot.slane %v397, 6
        %v582 = vsel %vm562, %v581, %v580
        %v583 = vrot.slane %v403, 5
        %v584 = vsel %vm565, %v583, %v582
        %v585 = vrot.slane %v409, 4
        %v586 = vsel %vm568, %v585, %v584
        %v587 = vrot.slane %v415, 3
        %v588 = vsel %vm571, %v587, %v586
        %v589 = vrot.slane %v421, 2
        %v590 = vsel %vm574, %v589, %v588
        %v591 = vrot.slane %v427, 1
        %v592 = vsel %vm577, %v591, %v590
        %v593 = vrot.slane %v501, 7
        %v594 = vsel %vm559, %v593, %v496
        %v595 = vrot.slane %v506, 6
        %v596 = vsel %vm562, %v595, %v594
        %v597 = vrot.slane %v511, 5
        %v598 = vsel %vm565, %v597, %v596
        %v599 = vrot.slane %v516, 4
        %v600 = vsel %vm568, %v599, %v598
        %v601 = vrot.slane %v521, 3
        %v602 = vsel %vm571, %v601, %v600
        %v603 = vrot.slane %v526, 2
        %v604 = vsel %vm574, %v603, %v602
        %v605 = vrot.slane %v531, 1
        %v606 = vsel %vm577, %v605, %v604
        %610 = vst [vmem:[#allocation2] sm:$0xff] %v578
        %611 = vst [vmem:[#allocation2 + $0x8] sm:$0xff] %v592
        %612 = vst [vmem:[#allocation2 + $0x10] sm:$0xff] %v606
        %v613 = vrot.slane %v383, 1
        %v614 = vsel %vm559, %v389, %v613
        %v615 = vrot.slane %v395, 7
        %v616 = vsel %vm562, %v615, %v614
        %v617 = vrot.slane %v401, 6
        %v618 = vsel %vm565, %v617, %v616
        %v619 = vrot.slane %v407, 5
        %v620 = vsel %vm568, %v619, %v618
        %v621 = vrot.slane %v413, 4
        %v622 = vsel %vm571, %v621, %v620
        %v623 = vrot.slane %v419, 3
        %v624 = vsel %vm574, %v623, %v622
        %v625 = vrot.slane %v425, 2
        %v626 = vsel %vm577, %v625, %v624
        %v627 = vrot.slane %v385, 1
        %v628 = vsel %vm559, %v391, %v627
        %v629 = vrot.slane %v397, 7
        %v630 = vsel %vm562, %v629, %v628
        %v631 = vrot.slane %v403, 6
        %v632 = vsel %vm565, %v631, %v630
        %v633 = vrot.slane %v409, 5
        %v634 = vsel %vm568, %v633, %v632
        %v635 = vrot.slane %v415, 4
        %v636 = vsel %vm571, %v635, %v634
        %v637 = vrot.slane %v421, 3
        %v638 = vsel %vm574, %v637, %v636
        %v639 = vrot.slane %v427, 2
        %v640 = vsel %vm577, %v639, %v638
        %v641 = vrot.slane %v496, 1
        %v642 = vsel %vm559, %v501, %v641
        %v643 = vrot.slane %v506, 7
        %v644 = vsel %vm562, %v643, %v642
        %v645 = vrot.slane %v511, 6
        %v646 = vsel %vm565, %v645, %v644
        %v647 = vrot.slane %v516, 5
        %v648 = vsel %vm568, %v647, %v646
        %v649 = vrot.slane %v521, 4
        %v650 = vsel %vm571, %v649, %v648
        %v651 = vrot.slane %v526, 3
        %v652 = vsel %vm574, %v651, %v650
        %v653 = vrot.slane %v531, 2
        %v654 = vsel %vm577, %v653, %v652
        %s658 = scalar_lea.vmem [#allocation2], 24
        %659 = vst [vmem:[%s658] sm:$0xff] %v626
        %660 = vst [vmem:[%s658 + $0x8] sm:$0xff] %v640
        %661 = vst [vmem:[%s658 + $0x10] sm:$0xff] %v654
        %v662 = vrot.slane %v383, 2
        %v663 = vrot.slane %v389, 1
        %v664 = vsel %vm559, %v663, %v662
        %v665 = vsel %vm562, %v395, %v664
        %v666 = vrot.slane %v401, 7
        %v667 = vsel %vm565, %v666, %v665
        %v668 = vrot.slane %v407, 6
        %v669 = vsel %vm568, %v668, %v667
        %v670 = vrot.slane %v413, 5
        %v671 = vsel %vm571, %v670, %v669
        %v672 = vrot.slane %v419, 4
        %v673 = vsel %vm574, %v672, %v671
        %v674 = vrot.slane %v425, 3
        %v675 = vsel %vm577, %v674, %v673
        %v676 = vrot.slane %v385, 2
        %v677 = vrot.slane %v391, 1
        %v678 = vsel %vm559, %v677, %v676
        %v679 = vsel %vm562, %v397, %v678
        %v680 = vrot.slane %v403, 7
        %v681 = vsel %vm565, %v680, %v679
        %v682 = vrot.slane %v409, 6
        %v683 = vsel %vm568, %v682, %v681
        %v684 = vrot.slane %v415, 5
        %v685 = vsel %vm571, %v684, %v683
        %v686 = vrot.slane %v421, 4
        %v687 = vsel %vm574, %v686, %v685
        %v688 = vrot.slane %v427, 3
        %v689 = vsel %vm577, %v688, %v687
        %v690 = vrot.slane %v496, 2
        %v691 = vrot.slane %v501, 1
        %v692 = vsel %vm559, %v691, %v690
        %v693 = vsel %vm562, %v506, %v692
        %v694 = vrot.slane %v511, 7
        %v695 = vsel %vm565, %v694, %v693
        %v696 = vrot.slane %v516, 6
        %v697 = vsel %vm568, %v696, %v695
        %v698 = vrot.slane %v521, 5
        %v699 = vsel %vm571, %v698, %v697
        %v700 = vrot.slane %v526, 4
        %v701 = vsel %vm574, %v700, %v699
        %v702 = vrot.slane %v531, 3
        %v703 = vsel %vm577, %v702, %v701
        %s707 = scalar_lea.vmem [#allocation2], 48
        %708 = vst [vmem:[%s707] sm:$0xff] %v675
        %709 = vst [vmem:[%s707 + $0x8] sm:$0xff] %v689
        %710 = vst [vmem:[%s707 + $0x10] sm:$0xff] %v703
        %v711 = vrot.slane %v383, 3
        %v712 = vrot.slane %v389, 2
        %v713 = vsel %vm559, %v712, %v711
        %v714 = vrot.slane %v395, 1
        %v715 = vsel %vm562, %v714, %v713
        %v716 = vsel %vm565, %v401, %v715
        %v717 = vrot.slane %v407, 7
        %v718 = vsel %vm568, %v717, %v716
        %v719 = vrot.slane %v413, 6
        %v720 = vsel %vm571, %v719, %v718
        %v721 = vrot.slane %v419, 5
        %v722 = vsel %vm574, %v721, %v720
        %v723 = vrot.slane %v425, 4
        %v724 = vsel %vm577, %v723, %v722
        %v725 = vrot.slane %v385, 3
        %v726 = vrot.slane %v391, 2
        %v727 = vsel %vm559, %v726, %v725
        %v728 = vrot.slane %v397, 1
        %v729 = vsel %vm562, %v728, %v727
        %v730 = vsel %vm565, %v403, %v729
        %v731 = vrot.slane %v409, 7
        %v732 = vsel %vm568, %v731, %v730
        %v733 = vrot.slane %v415, 6
        %v734 = vsel %vm571, %v733, %v732
        %v735 = vrot.slane %v421, 5
        %v736 = vsel %vm574, %v735, %v734
        %v737 = vrot.slane %v427, 4
        %v738 = vsel %vm577, %v737, %v736
        %v739 = vrot.slane %v496, 3
        %v740 = vrot.slane %v501, 2
        %v741 = vsel %vm559, %v740, %v739
        %v742 = vrot.slane %v506, 1
        %v743 = vsel %vm562, %v742, %v741
        %v744 = vsel %vm565, %v511, %v743
        %v745 = vrot.slane %v516, 7
        %v746 = vsel %vm568, %v745, %v744
        %v747 = vrot.slane %v521, 6
        %v748 = vsel %vm571, %v747, %v746
        %v749 = vrot.slane %v526, 5
        %v750 = vsel %vm574, %v749, %v748
        %v751 = vrot.slane %v531, 4
        %v752 = vsel %vm577, %v751, %v750
        %s756 = scalar_lea.vmem [#allocation2], 72
        %757 = vst [vmem:[%s756] sm:$0xff] %v724
        %758 = vst [vmem:[%s756 + $0x8] sm:$0xff] %v738
        %759 = vst [vmem:[%s756 + $0x10] sm:$0xff] %v752
        %v760 = vrot.slane %v383, 4
        %v761 = vrot.slane %v389, 3
        %v762 = vsel %vm559, %v761, %v760
        %v763 = vrot.slane %v395, 2
        %v764 = vsel %vm562, %v763, %v762
        %v765 = vrot.slane %v401, 1
        %v766 = vsel %vm565, %v765, %v764
        %v767 = vsel %vm568, %v407, %v766
        %v768 = vrot.slane %v413, 7
        %v769 = vsel %vm571, %v768, %v767
        %v770 = vrot.slane %v419, 6
        %v771 = vsel %vm574, %v770, %v769
        %v772 = vrot.slane %v425, 5
        %v773 = vsel %vm577, %v772, %v771
        %v774 = vrot.slane %v385, 4
        %v775 = vrot.slane %v391, 3
        %v776 = vsel %vm559, %v775, %v774
        %v777 = vrot.slane %v397, 2
        %v778 = vsel %vm562, %v777, %v776
        %v779 = vrot.slane %v403, 1
        %v780 = vsel %vm565, %v779, %v778
        %v781 = vsel %vm568, %v409, %v780
        %v782 = vrot.slane %v415, 7
        %v783 = vsel %vm571, %v782, %v781
        %v784 = vrot.slane %v421, 6
        %v785 = vsel %vm574, %v784, %v783
        %v786 = vrot.slane %v427, 5
        %v787 = vsel %vm577, %v786, %v785
        %v788 = vrot.slane %v496, 4
        %v789 = vrot.slane %v501, 3
        %v790 = vsel %vm559, %v789, %v788
        %v791 = vrot.slane %v506, 2
        %v792 = vsel %vm562, %v791, %v790
        %v793 = vrot.slane %v511, 1
        %v794 = vsel %vm565, %v793, %v792
        %v795 = vsel %vm568, %v516, %v794
        %v796 = vrot.slane %v521, 7
        %v797 = vsel %vm571, %v796, %v795
        %v798 = vrot.slane %v526, 6
        %v799 = vsel %vm574, %v798, %v797
        %v800 = vrot.slane %v531, 5
        %v801 = vsel %vm577, %v800, %v799
        %s805 = scalar_lea.vmem [#allocation2], 96
        %806 = vst [vmem:[%s805] sm:$0xff] %v773
        %807 = vst [vmem:[%s805 + $0x8] sm:$0xff] %v787
        %808 = vst [vmem:[%s805 + $0x10] sm:$0xff] %v801
        %v809 = vrot.slane %v383, 5
        %v810 = vrot.slane %v389, 4
        %v811 = vsel %vm559, %v810, %v809
        %v812 = vrot.slane %v395, 3
        %v813 = vsel %vm562, %v812, %v811
        %v814 = vrot.slane %v401, 2
        %v815 = vsel %vm565, %v814, %v813
        %v816 = vrot.slane %v407, 1
        %v817 = vsel %vm568, %v816, %v815
        %v818 = vsel %vm571, %v413, %v817
        %v819 = vrot.slane %v419, 7
        %v820 = vsel %vm574, %v819, %v818
        %v821 = vrot.slane %v425, 6
        %v822 = vsel %vm577, %v821, %v820
        %v823 = vrot.slane %v385, 5
        %v824 = vrot.slane %v391, 4
        %v825 = vsel %vm559, %v824, %v823
        %v826 = vrot.slane %v397, 3
        %v827 = vsel %vm562, %v826, %v825
        %v828 = vrot.slane %v403, 2
        %v829 = vsel %vm565, %v828, %v827
        %v830 = vrot.slane %v409, 1
        %v831 = vsel %vm568, %v830, %v829
        %v832 = vsel %vm571, %v415, %v831
        %v833 = vrot.slane %v421, 7
        %v834 = vsel %vm574, %v833, %v832
        %v835 = vrot.slane %v427, 6
        %v836 = vsel %vm577, %v835, %v834
        %v837 = vrot.slane %v496, 5
        %v838 = vrot.slane %v501, 4
        %v839 = vsel %vm559, %v838, %v837
        %v840 = vrot.slane %v506, 3
        %v841 = vsel %vm562, %v840, %v839
        %v842 = vrot.slane %v511, 2
        %v843 = vsel %vm565, %v842, %v841
        %v844 = vrot.slane %v516, 1
        %v845 = vsel %vm568, %v844, %v843
        %v846 = vsel %vm571, %v521, %v845
        %v847 = vrot.slane %v526, 7
        %v848 = vsel %vm574, %v847, %v846
        %v849 = vrot.slane %v531, 6
        %v850 = vsel %vm577, %v849, %v848
        %s854 = scalar_lea.vmem [#allocation2], 120
        %855 = vst [vmem:[%s854] sm:$0xff] %v822
        %856 = vst [vmem:[%s854 + $0x8] sm:$0xff] %v836
        %857 = vst [vmem:[%s854 + $0x10] sm:$0xff] %v850
        %v858 = vrot.slane %v383, 6
        %v859 = vrot.slane %v389, 5
        %v860 = vsel %vm559, %v859, %v858
        %v861 = vrot.slane %v395, 4
        %v862 = vsel %vm562, %v861, %v860
        %v863 = vrot.slane %v401, 3
        %v864 = vsel %vm565, %v863, %v862
        %v865 = vrot.slane %v407, 2
        %v866 = vsel %vm568, %v865, %v864
        %v867 = vrot.slane %v413, 1
        %v868 = vsel %vm571, %v867, %v866
        %v869 = vsel %vm574, %v419, %v868
        %v870 = vrot.slane %v425, 7
        %v871 = vsel %vm577, %v870, %v869
        %v872 = vrot.slane %v385, 6
        %v873 = vrot.slane %v391, 5
        %v874 = vsel %vm559, %v873, %v872
        %v875 = vrot.slane %v397, 4
        %v876 = vsel %vm562, %v875, %v874
        %v877 = vrot.slane %v403, 3
        %v878 = vsel %vm565, %v877, %v876
        %v879 = vrot.slane %v409, 2
        %v880 = vsel %vm568, %v879, %v878
        %v881 = vrot.slane %v415, 1
        %v882 = vsel %vm571, %v881, %v880
        %v883 = vsel %vm574, %v421, %v882
        %v884 = vrot.slane %v427, 7
        %v885 = vsel %vm577, %v884, %v883
        %v886 = vrot.slane %v496, 6
        %v887 = vrot.slane %v501, 5
        %v888 = vsel %vm559, %v887, %v886
        %v889 = vrot.slane %v506, 4
        %v890 = vsel %vm562, %v889, %v888
        %v891 = vrot.slane %v511, 3
        %v892 = vsel %vm565, %v891, %v890
        %v893 = vrot.slane %v516, 2
        %v894 = vsel %vm568, %v893, %v892
        %v895 = vrot.slane %v521, 1
        %v896 = vsel %vm571, %v895, %v894
        %v897 = vsel %vm574, %v526, %v896
        %v898 = vrot.slane %v531, 7
        %v899 = vsel %vm577, %v898, %v897
        %s903 = scalar_lea.vmem [#allocation2], 144
        %904 = vst [vmem:[%s903] sm:$0xff] %v871
        %905 = vst [vmem:[%s903 + $0x8] sm:$0xff] %v885
        %906 = vst [vmem:[%s903 + $0x10] sm:$0xff] %v899
        %v907 = vrot.slane %v383, 7
        %v908 = vrot.slane %v389, 6
        %v909 = vsel %vm559, %v908, %v907
        %v910 = vrot.slane %v395, 5
        %v911 = vsel %vm562, %v910, %v909
        %v912 = vrot.slane %v401, 4
        %v913 = vsel %vm565, %v912, %v911
        %v914 = vrot.slane %v407, 3
        %v915 = vsel %vm568, %v914, %v913
        %v916 = vrot.slane %v413, 2
        %v917 = vsel %vm571, %v916, %v915
        %v918 = vrot.slane %v419, 1
        %v919 = vsel %vm574, %v918, %v917
        %v920 = vsel %vm577, %v425, %v919
        %v921 = vrot.slane %v385, 7
        %v922 = vrot.slane %v391, 6
        %v923 = vsel %vm559, %v922, %v921
        %v924 = vrot.slane %v397, 5
        %v925 = vsel %vm562, %v924, %v923
        %v926 = vrot.slane %v403, 4
        %v927 = vsel %vm565, %v926, %v925
        %v928 = vrot.slane %v409, 3
        %v929 = vsel %vm568, %v928, %v927
        %v930 = vrot.slane %v415, 2
        %v931 = vsel %vm571, %v930, %v929
        %v932 = vrot.slane %v421, 1
        %v933 = vsel %vm574, %v932, %v931
        %v934 = vsel %vm577, %v427, %v933
        %v935 = vrot.slane %v496, 7
        %v936 = vrot.slane %v501, 6
        %v937 = vsel %vm559, %v936, %v935
        %v938 = vrot.slane %v506, 5
        %v939 = vsel %vm562, %v938, %v937
        %v940 = vrot.slane %v511, 4
        %v941 = vsel %vm565, %v940, %v939
        %v942 = vrot.slane %v516, 3
        %v943 = vsel %vm568, %v942, %v941
        %v944 = vrot.slane %v521, 2
        %v945 = vsel %vm571, %v944, %v943
        %v946 = vrot.slane %v526, 1
        %v947 = vsel %vm574, %v946, %v945
        %v948 = vsel %vm577, %v531, %v947
        %s952 = scalar_lea.vmem [#allocation2], 168
        %953 = vst [vmem:[%s952] sm:$0xff] %v920
        %954 = vst [vmem:[%s952 + $0x8] sm:$0xff] %v934
        %955 = vst [vmem:[%s952 + $0x10] sm:$0xff] %v948
        %v956 = vld [vmem:[#allocation9] sm:$0xff]
        %v957 = vld [vmem:[#allocation9 + $0x8] sm:$0xff]
        %v958 = vld [vmem:[#allocation9 + $0x10] sm:$0xff]
        %v959 = vld [vmem:[#allocation9 + $0x18] sm:$0xff]
        %v960 = vld [vmem:[#allocation9 + $0x20] sm:$0xff]
        %v961 = vld [vmem:[#allocation9 + $0x28] sm:$0xff]
        %v962 = vld [vmem:[#allocation9 + $0x30] sm:$0xff]
        %v963 = vld [vmem:[#allocation9 + $0x38] sm:$0xff]
        %v964 = vld [vmem:[#allocation9 + $0x40] sm:$0xff]
        %v965 = vld [vmem:[#allocation9 + $0x48] sm:$0xff]
        %v966 = vld [vmem:[#allocation9 + $0x50] sm:$0xff]
        %v967 = vld [vmem:[#allocation9 + $0x58] sm:$0xff]
        %v968 = vld [vmem:[#allocation9 + $0x60] sm:$0xff]
        %v969 = vld [vmem:[#allocation9 + $0x68] sm:$0xff]
        %v970 = vld [vmem:[#allocation9 + $0x70] sm:$0xff]
        %v971 = vld [vmem:[#allocation9 + $0x78] sm:$0xff]
        %v972 = vld [vmem:[#allocation9 + $0x80] sm:$0xff]
        %v973 = vld [vmem:[#allocation9 + $0x88] sm:$0xff]
        %v974 = vld [vmem:[#allocation9 + $0x90] sm:$0xff]
        %v975 = vld [vmem:[#allocation9 + $0x98] sm:$0xff]
        %v976 = vld [vmem:[#allocation9 + $0xa0] sm:$0xff]
        %v977 = vld [vmem:[#allocation9 + $0xa8] sm:$0xff]
        %v978 = vld [vmem:[#allocation9 + $0xb0] sm:$0xff]
        %v979 = vld [vmem:[#allocation9 + $0xb8] sm:$0xff]
        %v980 = vld [vmem:[#allocation9 + $0xc0] sm:$0xff]
        %v981 = vld [vmem:[#allocation9 + $0xc8] sm:$0xff]
        %v982 = vld [vmem:[#allocation9 + $0xd0] sm:$0xff]
        %v983 = vld [vmem:[#allocation9 + $0xd8] sm:$0xff]
        %v984 = vld [vmem:[#allocation9 + $0xe0] sm:$0xff]
        %v985 = vld [vmem:[#allocation9 + $0xe8] sm:$0xff]
        %v986 = vld [vmem:[#allocation9 + $0xf0] sm:$0xff]
        %v987 = vld [vmem:[#allocation9 + $0xf8] sm:$0xff]
        %v988 = vld [vmem:[#allocation9 + $0x100] sm:$0xff]
        %v989 = vld [vmem:[#allocation9 + $0x108] sm:$0xff]
        %v990 = vld [vmem:[#allocation9 + $0x110] sm:$0xff]
        %v991 = vld [vmem:[#allocation9 + $0x118] sm:$0xff]
        %v992 = vld [vmem:[#allocation9 + $0x120] sm:$0xff]
        %v993 = vld [vmem:[#allocation9 + $0x128] sm:$0xff]
        %v994 = vld [vmem:[#allocation9 + $0x130] sm:$0xff]
        %v995 = vld [vmem:[#allocation9 + $0x138] sm:$0xff]
        %v996 = vld [vmem:[#allocation9 + $0x140] sm:$0xff]
        %v997 = vld [vmem:[#allocation9 + $0x148] sm:$0xff]
        %v998 = vld [vmem:[#allocation9 + $0x150] sm:$0xff]
        %v999 = vld [vmem:[#allocation9 + $0x158] sm:$0xff]
        %v1000 = vld [vmem:[#allocation9 + $0x160] sm:$0xff]
        %v1001 = vld [vmem:[#allocation9 + $0x168] sm:$0xff]
        %v1002 = vld [vmem:[#allocation9 + $0x170] sm:$0xff]
        %v1003 = vld [vmem:[#allocation9 + $0x178] sm:$0xff]
        %v1004 = vld [vmem:[%s3] sm:$0x1]
        %v1005 = vld [vmem:[#allocation3] sm:$0xff]
        %v1006 = vld [vmem:[#allocation2] sm:$0xff]
        %v1007 = vld [vmem:[#allocation2 + $0x8] sm:$0xff]
        %v1008 = vld [vmem:[#allocation2 + $0x10] sm:$0xff]
        %1009 = vmatprep.subr.mxu0 %v957
        %1010 = vmatpush1.msra.mxu0 %v956
        %1011 = vmatprep.subr.mxu0 %v960
        %1012 = vmatpush1.msra.mxu0 %v959
        %1013 = vmatprep.subr.mxu0 %v963
        %1014 = vmatpush1.msra.mxu0 %v962
        %1015 = vmatprep.subr.mxu0 %v966
        %1016 = vmatpush1.msra.mxu0 %v965
        %1017 = vmatprep.subr.mxu0 %v969
        %1018 = vmatpush1.msra.mxu0 %v968
        %1019 = vmatprep.subr.mxu0 %v972
        %1020 = vmatpush1.msra.mxu0 %v971
        %1021 = vmatprep.subr.mxu0 %v975
        %1022 = vmatpush1.msra.mxu0 %v974
        %1023 = vmatprep.subr.mxu0 %v978
        %1024 = vmatpush1.msra.mxu0 %v977
        %1025 = vmatprep.subr.mxu0 %v981
        %1026 = vmatpush1.msra.mxu0 %v980
        %1027 = vmatprep.subr.mxu0 %v984
        %1028 = vmatpush1.msra.mxu0 %v983
        %1029 = vmatprep.subr.mxu0 %v987
        %1030 = vmatpush1.msra.mxu0 %v986
        %1031 = vmatprep.subr.mxu0 %v990
        %1032 = vmatpush1.msra.mxu0 %v989
        %1033 = vmatprep.subr.mxu0 %v993
        %1034 = vmatpush1.msra.mxu0 %v992
        %1035 = vmatprep.subr.mxu0 %v996
        %1036 = vmatpush1.msra.mxu0 %v995
        %1037 = vmatprep.subr.mxu0 %v999
        %1038 = vmatpush1.msra.mxu0 %v998
        %1039 = vmatprep.subr.mxu0 %v1002
        %1040 = vmatpush1.msra.mxu0 %v1001
        %1041 = vmatprep.subr.mxu0 0.0
        %1042 = vmatpush1.msra.mxu0 0.0
        %1043 = vmatprep.subr.mxu0 0.0
        %1044 = vmatpush1.msra.mxu0 0.0
        %1045 = vmatprep.subr.mxu0 0.0
        %1046 = vmatpush1.msra.mxu0 0.0
        %1047 = vmatprep.subr.mxu0 0.0
        %1048 = vmatpush1.msra.mxu0 0.0
        %1049 = vmatprep.subr.mxu0 0.0
        %1050 = vmatpush1.msra.mxu0 0.0
        %1051 = vmatprep.subr.mxu0 0.0
        %1052 = vmatpush1.msra.mxu0 0.0
        %1053 = vmatprep.subr.mxu0 0.0
        %1054 = vmatpush1.msra.mxu0 0.0
        %1055 = vmatprep.subr.mxu0 0.0
        %1056 = vmatpush1.msra.mxu0 0.0
        %1057 = vmatprep.subr.mxu0 0.0
        %1058 = vmatpush1.msra.mxu0 0.0
        %1059 = vmatprep.subr.mxu0 0.0
        %1060 = vmatpush1.msra.mxu0 0.0
        %1061 = vmatprep.subr.mxu0 0.0
        %1062 = vmatpush1.msra.mxu0 0.0
        %1063 = vmatprep.subr.mxu0 0.0
        %1064 = vmatpush1.msra.mxu0 0.0
        %1065 = vmatprep.subr.mxu0 0.0
        %1066 = vmatpush1.msra.mxu0 0.0
        %1067 = vmatprep.subr.mxu0 0.0
        %1068 = vmatpush1.msra.mxu0 0.0
        %1069 = vmatprep.subr.mxu0 0.0
        %1070 = vmatpush1.msra.mxu0 0.0
        %1071 = vmatprep.subr.mxu0 0.0
        %1072 = vmatpush1.msra.mxu0 0.0
        %1073 = vmatprep.mubr.f32.mxu0 0.0
        %1074 = vmatmul.mubr.f32.gmra.mrb[0].mxu0 %v1005
        %v1075 = vpop.f32.mrb[0].mxu0
        %v1076 = vadd.f32 0.0, %v1075
        %v1077 = vpop.f32.mrb[0].mxu0
        %v1078 = vadd.f32 0.0, %v1077
        %1079 = vdwg.mxu0
        %1080 = vmatprep.subr.mxu0 0.0
        %1081 = vmatpush1.msra.mxu0 %v958
        %1082 = vmatprep.subr.mxu0 0.0
        %1083 = vmatpush1.msra.mxu0 %v961
        %1084 = vmatprep.subr.mxu0 0.0
        %1085 = vmatpush1.msra.mxu0 %v964
        %1086 = vmatprep.subr.mxu0 0.0
        %1087 = vmatpush1.msra.mxu0 %v967
        %1088 = vmatprep.subr.mxu0 0.0
        %1089 = vmatpush1.msra.mxu0 %v970
        %1090 = vmatprep.subr.mxu0 0.0
        %1091 = vmatpush1.msra.mxu0 %v973
        %1092 = vmatprep.subr.mxu0 0.0
        %1093 = vmatpush1.msra.mxu0 %v976
        %1094 = vmatprep.subr.mxu0 0.0
        %1095 = vmatpush1.msra.mxu0 %v979
        %1096 = vmatprep.subr.mxu0 0.0
        %1097 = vmatpush1.msra.mxu0 %v982
        %1098 = vmatprep.subr.mxu0 0.0
        %1099 = vmatpush1.msra.mxu0 %v985
        %1100 = vmatprep.subr.mxu0 0.0
        %1101 = vmatpush1.msra.mxu0 %v988
        %1102 = vmatprep.subr.mxu0 0.0
        %1103 = vmatpush1.msra.mxu0 %v991
        %1104 = vmatprep.subr.mxu0 0.0
        %1105 = vmatpush1.msra.mxu0 %v994
        %1106 = vmatprep.subr.mxu0 0.0
        %1107 = vmatpush1.msra.mxu0 %v997
        %1108 = vmatprep.subr.mxu0 0.0
        %1109 = vmatpush1.msra.mxu0 %v1000
        %1110 = vmatprep.subr.mxu0 0.0
        %1111 = vmatpush1.msra.mxu0 %v1003
        %1112 = vmatprep.subr.mxu0 0.0
        %1113 = vmatpush1.msra.mxu0 0.0
        %1114 = vmatprep.subr.mxu0 0.0
        %1115 = vmatpush1.msra.mxu0 0.0
        %1116 = vmatprep.subr.mxu0 0.0
        %1117 = vmatpush1.msra.mxu0 0.0
        %1118 = vmatprep.subr.mxu0 0.0
        %1119 = vmatpush1.msra.mxu0 0.0
        %1120 = vmatprep.subr.mxu0 0.0
        %1121 = vmatpush1.msra.mxu0 0.0
        %1122 = vmatprep.subr.mxu0 0.0
        %1123 = vmatpush1.msra.mxu0 0.0
        %1124 = vmatprep.subr.mxu0 0.0
        %1125 = vmatpush1.msra.mxu0 0.0
        %1126 = vmatprep.subr.mxu0 0.0
        %1127 = vmatpush1.msra.mxu0 0.0
        %1128 = vmatprep.subr.mxu0 0.0
        %1129 = vmatpush1.msra.mxu0 0.0
        %1130 = vmatprep.subr.mxu0 0.0
        %1131 = vmatpush1.msra.mxu0 0.0
        %1132 = vmatprep.subr.mxu0 0.0
        %1133 = vmatpush1.msra.mxu0 0.0
        %1134 = vmatprep.subr.mxu0 0.0
        %1135 = vmatpush1.msra.mxu0 0.0
        %1136 = vmatprep.subr.mxu0 0.0
        %1137 = vmatpush1.msra.mxu0 0.0
        %1138 = vmatprep.subr.mxu0 0.0
        %1139 = vmatpush1.msra.mxu0 0.0
        %1140 = vmatprep.subr.mxu0 0.0
        %1141 = vmatpush1.msra.mxu0 0.0
        %1142 = vmatprep.subr.mxu0 0.0
        %1143 = vmatpush1.msra.mxu0 0.0
        %1144 = vmatprep.mubr.f32.mxu0 0.0
        %1145 = vmatmul.mubr.f32.gmra.mrb[0].mxu0 %v1005
        %v1146 = vpop.f32.mrb[0].mxu0
        %v1147 = vadd.f32 0.0, %v1146
        %v1148 = vpop.f32.mrb[0].mxu0
        %1149 = vdwg.mxu0
        %v1150 = vadd.f32 %v1006, %v1076
        %v1151 = vxor.u32 %v1150, 2147483648
        %v1152 = vmul.f32 %v1151, 1.442695
        %v1153 = vpow.pop %v1152
        %v1154 = vadd.f32 %v1153, 1.0
        %v1155 = vrcp.pop %v1154
        %v1156 = vmul.f32 1.0, %v1155
        %v1157 = vadd.f32 %v1007, %v1078
        %v1158 = vxor.u32 %v1157, 2147483648
        %v1159 = vmul.f32 %v1158, 1.442695
        %v1160 = vpow.pop %v1159
        %v1161 = vadd.f32 %v1160, 1.0
        %v1162 = vrcp.pop %v1161
        %v1163 = vmul.f32 1.0, %v1162
        %v1165 = vlaneseq
        %v1166 = vshrl.u32 %v1165, 7
        %v1167 = vsub.s32 0, %v1166
        %v1168 = vrot.slane %v1004, %v1167
        %v1170 = vadd.f32 %v1147, %v1168
        %v1171 = vmul.f32 %v1156, %v1170
        %v1172 = vadd.f32 %v1008, %v1171
        %v1173 = vtanh.pop %v1172
        %v1174 = vsub.f32 %v1005, %v1173
        %v1175 = vmul.f32 %v1163, %v1174
        %v1176 = vadd.f32 %v1173, %v1175
        %v1177 = vld [vmem:[%s658] sm:$0xff]
        %v1178 = vld [vmem:[%s658 + $0x8] sm:$0xff]
        %v1179 = vld [vmem:[%s658 + $0x10] sm:$0xff]
        %1180 = vmatprep.subr.mxu0 %v957
        %1181 = vmatpush1.msra.mxu0 %v956
        %1182 = vmatprep.subr.mxu0 %v960
        %1183 = vmatpush1.msra.mxu0 %v959
        %1184 = vmatprep.subr.mxu0 %v963
        %1185 = vmatpush1.msra.mxu0 %v962
        %1186 = vmatprep.subr.mxu0 %v966
        %1187 = vmatpush1.msra.mxu0 %v965
        %1188 = vmatprep.subr.mxu0 %v969
        %1189 = vmatpush1.msra.mxu0 %v968
        %1190 = vmatprep.subr.mxu0 %v972
        %1191 = vmatpush1.msra.mxu0 %v971
        %1192 = vmatprep.subr.mxu0 %v975
        %1193 = vmatpush1.msra.mxu0 %v974
        %1194 = vmatprep.subr.mxu0 %v978
        %1195 = vmatpush1.msra.mxu0 %v977
        %1196 = vmatprep.subr.mxu0 %v981
        %1197 = vmatpush1.msra.mxu0 %v980
        %1198 = vmatprep.subr.mxu0 %v984
        %1199 = vmatpush1.msra.mxu0 %v983
        %1200 = vmatprep.subr.mxu0 %v987
        %1201 = vmatpush1.msra.mxu0 %v986
        %1202 = vmatprep.subr.mxu0 %v990
        %1203 = vmatpush1.msra.mxu0 %v989
        %1204 = vmatprep.subr.mxu0 %v993
        %1205 = vmatpush1.msra.mxu0 %v992
        %1206 = vmatprep.subr.mxu0 %v996
        %1207 = vmatpush1.msra.mxu0 %v995
        %1208 = vmatprep.subr.mxu0 %v999
        %1209 = vmatpush1.msra.mxu0 %v998
        %1210 = vmatprep.subr.mxu0 %v1002
        %1211 = vmatpush1.msra.mxu0 %v1001
        %1212 = vmatprep.subr.mxu0 0.0
        %1213 = vmatpush1.msra.mxu0 0.0
        %1214 = vmatprep.subr.mxu0 0.0
        %1215 = vmatpush1.msra.mxu0 0.0
        %1216 = vmatprep.subr.mxu0 0.0
        %1217 = vmatpush1.msra.mxu0 0.0
        %1218 = vmatprep.subr.mxu0 0.0
        %1219 = vmatpush1.msra.mxu0 0.0
        %1220 = vmatprep.subr.mxu0 0.0
        %1221 = vmatpush1.msra.mxu0 0.0
        %1222 = vmatprep.subr.mxu0 0.0
        %1223 = vmatpush1.msra.mxu0 0.0
        %1224 = vmatprep.subr.mxu0 0.0
        %1225 = vmatpush1.msra.mxu0 0.0
        %1226 = vmatprep.subr.mxu0 0.0
        %1227 = vmatpush1.msra.mxu0 0.0
        %1228 = vmatprep.subr.mxu0 0.0
        %1229 = vmatpush1.msra.mxu0 0.0
        %1230 = vmatprep.subr.mxu0 0.0
        %1231 = vmatpush1.msra.mxu0 0.0
        %1232 = vmatprep.subr.mxu0 0.0
        %1233 = vmatpush1.msra.mxu0 0.0
        %1234 = vmatprep.subr.mxu0 0.0
        %1235 = vmatpush1.msra.mxu0 0.0
        %1236 = vmatprep.subr.mxu0 0.0
        %1237 = vmatpush1.msra.mxu0 0.0
        %1238 = vmatprep.subr.mxu0 0.0
        %1239 = vmatpush1.msra.mxu0 0.0
        %1240 = vmatprep.subr.mxu0 0.0
        %1241 = vmatpush1.msra.mxu0 0.0
        %1242 = vmatprep.subr.mxu0 0.0
        %1243 = vmatpush1.msra.mxu0 0.0
        %1244 = vmatprep.mubr.f32.mxu0 0.0
        %1245 = vmatmul.mubr.f32.gmra.mrb[0].mxu0 %v1176
        %v1246 = vpop.f32.mrb[0].mxu0
        %v1247 = vadd.f32 0.0, %v1246
        %v1248 = vpop.f32.mrb[0].mxu0
        %v1249 = vadd.f32 0.0, %v1248
        %1250 = vdwg.mxu0
        %1251 = vmatprep.subr.mxu0 0.0
        %1252 = vmatpush1.msra.mxu0 %v958
        %1253 = vmatprep.subr.mxu0 0.0
        %1254 = vmatpush1.msra.mxu0 %v961
        %1255 = vmatprep.subr.mxu0 0.0
        %1256 = vmatpush1.msra.mxu0 %v964
        %1257 = vmatprep.subr.mxu0 0.0
        %1258 = vmatpush1.msra.mxu0 %v967
        %1259 = vmatprep.subr.mxu0 0.0
        %1260 = vmatpush1.msra.mxu0 %v970
        %1261 = vmatprep.subr.mxu0 0.0
        %1262 = vmatpush1.msra.mxu0 %v973
        %1263 = vmatprep.subr.mxu0 0.0
        %1264 = vmatpush1.msra.mxu0 %v976
        %1265 = vmatprep.subr.mxu0 0.0
        %1266 = vmatpush1.msra.mxu0 %v979
        %1267 = vmatprep.subr.mxu0 0.0
        %1268 = vmatpush1.msra.mxu0 %v982
        %1269 = vmatprep.subr.mxu0 0.0
        %1270 = vmatpush1.msra.mxu0 %v985
        %1271 = vmatprep.subr.mxu0 0.0
        %1272 = vmatpush1.msra.mxu0 %v988
        %1273 = vmatprep.subr.mxu0 0.0
        %1274 = vmatpush1.msra.mxu0 %v991
        %1275 = vmatprep.subr.mxu0 0.0
        %1276 = vmatpush1.msra.mxu0 %v994
        %1277 = vmatprep.subr.mxu0 0.0
        %1278 = vmatpush1.msra.mxu0 %v997
        %1279 = vmatprep.subr.mxu0 0.0
        %1280 = vmatpush1.msra.mxu0 %v1000
        %1281 = vmatprep.subr.mxu0 0.0
        %1282 = vmatpush1.msra.mxu0 %v1003
        %1283 = vmatprep.subr.mxu0 0.0
        %1284 = vmatpush1.msra.mxu0 0.0
        %1285 = vmatprep.subr.mxu0 0.0
        %1286 = vmatpush1.msra.mxu0 0.0
        %1287 = vmatprep.subr.mxu0 0.0
        %1288 = vmatpush1.msra.mxu0 0.0
        %1289 = vmatprep.subr.mxu0 0.0
        %1290 = vmatpush1.msra.mxu0 0.0
        %1291 = vmatprep.subr.mxu0 0.0
        %1292 = vmatpush1.msra.mxu0 0.0
        %1293 = vmatprep.subr.mxu0 0.0
        %1294 = vmatpush1.msra.mxu0 0.0
        %1295 = vmatprep.subr.mxu0 0.0
        %1296 = vmatpush1.msra.mxu0 0.0
        %1297 = vmatprep.subr.mxu0 0.0
        %1298 = vmatpush1.msra.mxu0 0.0
        %1299 = vmatprep.subr.mxu0 0.0
        %1300 = vmatpush1.msra.mxu0 0.0
        %1301 = vmatprep.subr.mxu0 0.0
        %1302 = vmatpush1.msra.mxu0 0.0
        %1303 = vmatprep.subr.mxu0 0.0
        %1304 = vmatpush1.msra.mxu0 0.0
        %1305 = vmatprep.subr.mxu0 0.0
        %1306 = vmatpush1.msra.mxu0 0.0
        %1307 = vmatprep.subr.mxu0 0.0
        %1308 = vmatpush1.msra.mxu0 0.0
        %1309 = vmatprep.subr.mxu0 0.0
        %1310 = vmatpush1.msra.mxu0 0.0
        %1311 = vmatprep.subr.mxu0 0.0
        %1312 = vmatpush1.msra.mxu0 0.0
        %1313 = vmatprep.subr.mxu0 0.0
        %1314 = vmatpush1.msra.mxu0 0.0
        %1315 = vmatprep.mubr.f32.mxu0 0.0
        %1316 = vmatmul.mubr.f32.gmra.mrb[0].mxu0 %v1176
        %v1317 = vpop.f32.mrb[0].mxu0
        %v1318 = vadd.f32 0.0, %v1317
        %v1319 = vpop.f32.mrb[0].mxu0
        %1320 = vdwg.mxu0
        %v1321 = vadd.f32 %v1177, %v1247
        %v1322 = vxor.u32 %v1321, 2147483648
        %v1323 = vmul.f32 %v1322, 1.442695
        %v1324 = vpow.pop %v1323
        %v1325 = vadd.f32 %v1324, 1.0
        %v1326 = vrcp.pop %v1325
        %v1327 = vmul.f32 1.0, %v1326
        %v1328 = vadd.f32 %v1178, %v1249
        %v1329 = vxor.u32 %v1328, 2147483648
        %v1330 = vmul.f32 %v1329, 1.442695
        %v1331 = vpow.pop %v1330
        %v1332 = vadd.f32 %v1331, 1.0
        %v1333 = vrcp.pop %v1332
        %v1334 = vmul.f32 1.0, %v1333
        %v1335 = vadd.f32 %v1318, %v1168
        %v1336 = vmul.f32 %v1327, %v1335
        %v1337 = vadd.f32 %v1179, %v1336
        %v1338 = vtanh.pop %v1337
        %v1339 = vsub.f32 %v1176, %v1338
        %v1340 = vmul.f32 %v1334, %v1339
        %v1341 = vadd.f32 %v1338, %v1340
        %v1342 = vld [vmem:[%s707] sm:$0xff]
        %v1343 = vld [vmem:[%s707 + $0x8] sm:$0xff]
        %v1344 = vld [vmem:[%s707 + $0x10] sm:$0xff]
        %1345 = vmatprep.subr.mxu0 %v957
        %1346 = vmatpush1.msra.mxu0 %v956
        %1347 = vmatprep.subr.mxu0 %v960
        %1348 = vmatpush1.msra.mxu0 %v959
        %1349 = vmatprep.subr.mxu0 %v963
        %1350 = vmatpush1.msra.mxu0 %v962
        %1351 = vmatprep.subr.mxu0 %v966
        %1352 = vmatpush1.msra.mxu0 %v965
        %1353 = vmatprep.subr.mxu0 %v969
        %1354 = vmatpush1.msra.mxu0 %v968
        %1355 = vmatprep.subr.mxu0 %v972
        %1356 = vmatpush1.msra.mxu0 %v971
        %1357 = vmatprep.subr.mxu0 %v975
        %1358 = vmatpush1.msra.mxu0 %v974
        %1359 = vmatprep.subr.mxu0 %v978
        %1360 = vmatpush1.msra.mxu0 %v977
        %1361 = vmatprep.subr.mxu0 %v981
        %1362 = vmatpush1.msra.mxu0 %v980
        %1363 = vmatprep.subr.mxu0 %v984
        %1364 = vmatpush1.msra.mxu0 %v983
        %1365 = vmatprep.subr.mxu0 %v987
        %1366 = vmatpush1.msra.mxu0 %v986
        %1367 = vmatprep.subr.mxu0 %v990
        %1368 = vmatpush1.msra.mxu0 %v989
        %1369 = vmatprep.subr.mxu0 %v993
        %1370 = vmatpush1.msra.mxu0 %v992
        %1371 = vmatprep.subr.mxu0 %v996
        %1372 = vmatpush1.msra.mxu0 %v995
        %1373 = vmatprep.subr.mxu0 %v999
        %1374 = vmatpush1.msra.mxu0 %v998
        %1375 = vmatprep.subr.mxu0 %v1002
        %1376 = vmatpush1.msra.mxu0 %v1001
        %1377 = vmatprep.subr.mxu0 0.0
        %1378 = vmatpush1.msra.mxu0 0.0
        %1379 = vmatprep.subr.mxu0 0.0
        %1380 = vmatpush1.msra.mxu0 0.0
        %1381 = vmatprep.subr.mxu0 0.0
        %1382 = vmatpush1.msra.mxu0 0.0
        %1383 = vmatprep.subr.mxu0 0.0
        %1384 = vmatpush1.msra.mxu0 0.0
        %1385 = vmatprep.subr.mxu0 0.0
        %1386 = vmatpush1.msra.mxu0 0.0
        %1387 = vmatprep.subr.mxu0 0.0
        %1388 = vmatpush1.msra.mxu0 0.0
        %1389 = vmatprep.subr.mxu0 0.0
        %1390 = vmatpush1.msra.mxu0 0.0
        %1391 = vmatprep.subr.mxu0 0.0
        %1392 = vmatpush1.msra.mxu0 0.0
        %1393 = vmatprep.subr.mxu0 0.0
        %1394 = vmatpush1.msra.mxu0 0.0
        %1395 = vmatprep.subr.mxu0 0.0
        %1396 = vmatpush1.msra.mxu0 0.0
        %1397 = vmatprep.subr.mxu0 0.0
        %1398 = vmatpush1.msra.mxu0 0.0
        %1399 = vmatprep.subr.mxu0 0.0
        %1400 = vmatpush1.msra.mxu0 0.0
        %1401 = vmatprep.subr.mxu0 0.0
        %1402 = vmatpush1.msra.mxu0 0.0
        %1403 = vmatprep.subr.mxu0 0.0
        %1404 = vmatpush1.msra.mxu0 0.0
        %1405 = vmatprep.subr.mxu0 0.0
        %1406 = vmatpush1.msra.mxu0 0.0
        %1407 = vmatprep.subr.mxu0 0.0
        %1408 = vmatpush1.msra.mxu0 0.0
        %1409 = vmatprep.mubr.f32.mxu0 0.0
        %1410 = vmatmul.mubr.f32.gmra.mrb[0].mxu0 %v1341
        %v1411 = vpop.f32.mrb[0].mxu0
        %v1412 = vadd.f32 0.0, %v1411
        %v1413 = vpop.f32.mrb[0].mxu0
        %v1414 = vadd.f32 0.0, %v1413
        %1415 = vdwg.mxu0
        %1416 = vmatprep.subr.mxu0 0.0
        %1417 = vmatpush1.msra.mxu0 %v958
        %1418 = vmatprep.subr.mxu0 0.0
        %1419 = vmatpush1.msra.mxu0 %v961
        %1420 = vmatprep.subr.mxu0 0.0
        %1421 = vmatpush1.msra.mxu0 %v964
        %1422 = vmatprep.subr.mxu0 0.0
        %1423 = vmatpush1.msra.mxu0 %v967
        %1424 = vmatprep.subr.mxu0 0.0
        %1425 = vmatpush1.msra.mxu0 %v970
        %1426 = vmatprep.subr.mxu0 0.0
        %1427 = vmatpush1.msra.mxu0 %v973
        %1428 = vmatprep.subr.mxu0 0.0
        %1429 = vmatpush1.msra.mxu0 %v976
        %1430 = vmatprep.subr.mxu0 0.0
        %1431 = vmatpush1.msra.mxu0 %v979
        %1432 = vmatprep.subr.mxu0 0.0
        %1433 = vmatpush1.msra.mxu0 %v982
        %1434 = vmatprep.subr.mxu0 0.0
        %1435 = vmatpush1.msra.mxu0 %v985
        %1436 = vmatprep.subr.mxu0 0.0
        %1437 = vmatpush1.msra.mxu0 %v988
        %1438 = vmatprep.subr.mxu0 0.0
        %1439 = vmatpush1.msra.mxu0 %v991
        %1440 = vmatprep.subr.mxu0 0.0
        %1441 = vmatpush1.msra.mxu0 %v994
        %1442 = vmatprep.subr.mxu0 0.0
        %1443 = vmatpush1.msra.mxu0 %v997
        %1444 = vmatprep.subr.mxu0 0.0
        %1445 = vmatpush1.msra.mxu0 %v1000
        %1446 = vmatprep.subr.mxu0 0.0
        %1447 = vmatpush1.msra.mxu0 %v1003
        %1448 = vmatprep.subr.mxu0 0.0
        %1449 = vmatpush1.msra.mxu0 0.0
        %1450 = vmatprep.subr.mxu0 0.0
        %1451 = vmatpush1.msra.mxu0 0.0
        %1452 = vmatprep.subr.mxu0 0.0
        %1453 = vmatpush1.msra.mxu0 0.0
        %1454 = vmatprep.subr.mxu0 0.0
        %1455 = vmatpush1.msra.mxu0 0.0
        %1456 = vmatprep.subr.mxu0 0.0
        %1457 = vmatpush1.msra.mxu0 0.0
        %1458 = vmatprep.subr.mxu0 0.0
        %1459 = vmatpush1.msra.mxu0 0.0
        %1460 = vmatprep.subr.mxu0 0.0
        %1461 = vmatpush1.msra.mxu0 0.0
        %1462 = vmatprep.subr.mxu0 0.0
        %1463 = vmatpush1.msra.mxu0 0.0
        %1464 = vmatprep.subr.mxu0 0.0
        %1465 = vmatpush1.msra.mxu0 0.0
        %1466 = vmatprep.subr.mxu0 0.0
        %1467 = vmatpush1.msra.mxu0 0.0
        %1468 = vmatprep.subr.mxu0 0.0
        %1469 = vmatpush1.msra.mxu0 0.0
        %1470 = vmatprep.subr.mxu0 0.0
        %1471 = vmatpush1.msra.mxu0 0.0
        %1472 = vmatprep.subr.mxu0 0.0
        %1473 = vmatpush1.msra.mxu0 0.0
        %1474 = vmatprep.subr.mxu0 0.0
        %1475 = vmatpush1.msra.mxu0 0.0
        %1476 = vmatprep.subr.mxu0 0.0
        %1477 = vmatpush1.msra.mxu0 0.0
        %1478 = vmatprep.subr.mxu0 0.0
        %1479 = vmatpush1.msra.mxu0 0.0
        %1480 = vmatprep.mubr.f32.mxu0 0.0
        %1481 = vmatmul.mubr.f32.gmra.mrb[0].mxu0 %v1341
        %v1482 = vpop.f32.mrb[0].mxu0
        %v1483 = vadd.f32 0.0, %v1482
        %v1484 = vpop.f32.mrb[0].mxu0
        %1485 = vdwg.mxu0
        %v1486 = vadd.f32 %v1342, %v1412
        %v1487 = vxor.u32 %v1486, 2147483648
        %v1488 = vmul.f32 %v1487, 1.442695
        %v1489 = vpow.pop %v1488
        %v1490 = vadd.f32 %v1489, 1.0
        %v1491 = vrcp.pop %v1490
        %v1492 = vmul.f32 1.0, %v1491
        %v1493 = vadd.f32 %v1343, %v1414
        %v1494 = vxor.u32 %v1493, 2147483648
        %v1495 = vmul.f32 %v1494, 1.442695
        %v1496 = vpow.pop %v1495
        %v1497 = vadd.f32 %v1496, 1.0
        %v1498 = vrcp.pop %v1497
        %v1499 = vmul.f32 1.0, %v1498
        %v1500 = vadd.f32 %v1483, %v1168
        %v1501 = vmul.f32 %v1492, %v1500
        %v1502 = vadd.f32 %v1344, %v1501
        %v1503 = vtanh.pop %v1502
        %v1504 = vsub.f32 %v1341, %v1503
        %v1505 = vmul.f32 %v1499, %v1504
        %v1506 = vadd.f32 %v1503, %v1505
        %v1507 = vld [vmem:[%s756] sm:$0xff]
        %v1508 = vld [vmem:[%s756 + $0x8] sm:$0xff]
        %v1509 = vld [vmem:[%s756 + $0x10] sm:$0xff]
        %1510 = vmatprep.subr.mxu0 %v957
        %1511 = vmatpush1.msra.mxu0 %v956
        %1512 = vmatprep.subr.mxu0 %v960
        %1513 = vmatpush1.msra.mxu0 %v959
        %1514 = vmatprep.subr.mxu0 %v963
        %1515 = vmatpush1.msra.mxu0 %v962
        %1516 = vmatprep.subr.mxu0 %v966
        %1517 = vmatpush1.msra.mxu0 %v965
        %1518 = vmatprep.subr.mxu0 %v969
        %1519 = vmatpush1.msra.mxu0 %v968
        %1520 = vmatprep.subr.mxu0 %v972
        %1521 = vmatpush1.msra.mxu0 %v971
        %1522 = vmatprep.subr.mxu0 %v975
        %1523 = vmatpush1.msra.mxu0 %v974
        %1524 = vmatprep.subr.mxu0 %v978
        %1525 = vmatpush1.msra.mxu0 %v977
        %1526 = vmatprep.subr.mxu0 %v981
        %1527 = vmatpush1.msra.mxu0 %v980
        %1528 = vmatprep.subr.mxu0 %v984
        %1529 = vmatpush1.msra.mxu0 %v983
        %1530 = vmatprep.subr.mxu0 %v987
        %1531 = vmatpush1.msra.mxu0 %v986
        %1532 = vmatprep.subr.mxu0 %v990
        %1533 = vmatpush1.msra.mxu0 %v989
        %1534 = vmatprep.subr.mxu0 %v993
        %1535 = vmatpush1.msra.mxu0 %v992
        %1536 = vmatprep.subr.mxu0 %v996
        %1537 = vmatpush1.msra.mxu0 %v995
        %1538 = vmatprep.subr.mxu0 %v999
        %1539 = vmatpush1.msra.mxu0 %v998
        %1540 = vmatprep.subr.mxu0 %v1002
        %1541 = vmatpush1.msra.mxu0 %v1001
        %1542 = vmatprep.subr.mxu0 0.0
        %1543 = vmatpush1.msra.mxu0 0.0
        %1544 = vmatprep.subr.mxu0 0.0
        %1545 = vmatpush1.msra.mxu0 0.0
        %1546 = vmatprep.subr.mxu0 0.0
        %1547 = vmatpush1.msra.mxu0 0.0
        %1548 = vmatprep.subr.mxu0 0.0
        %1549 = vmatpush1.msra.mxu0 0.0
        %1550 = vmatprep.subr.mxu0 0.0
        %1551 = vmatpush1.msra.mxu0 0.0
        %1552 = vmatprep.subr.mxu0 0.0
        %1553 = vmatpush1.msra.mxu0 0.0
        %1554 = vmatprep.subr.mxu0 0.0
        %1555 = vmatpush1.msra.mxu0 0.0
        %1556 = vmatprep.subr.mxu0 0.0
        %1557 = vmatpush1.msra.mxu0 0.0
        %1558 = vmatprep.subr.mxu0 0.0
        %1559 = vmatpush1.msra.mxu0 0.0
        %1560 = vmatprep.subr.mxu0 0.0
        %1561 = vmatpush1.msra.mxu0 0.0
        %1562 = vmatprep.subr.mxu0 0.0
        %1563 = vmatpush1.msra.mxu0 0.0
        %1564 = vmatprep.subr.mxu0 0.0
        %1565 = vmatpush1.msra.mxu0 0.0
        %1566 = vmatprep.subr.mxu0 0.0
        %1567 = vmatpush1.msra.mxu0 0.0
        %1568 = vmatprep.subr.mxu0 0.0
        %1569 = vmatpush1.msra.mxu0 0.0
        %1570 = vmatprep.subr.mxu0 0.0
        %1571 = vmatpush1.msra.mxu0 0.0
        %1572 = vmatprep.subr.mxu0 0.0
        %1573 = vmatpush1.msra.mxu0 0.0
        %1574 = vmatprep.mubr.f32.mxu0 0.0
        %1575 = vmatmul.mubr.f32.gmra.mrb[0].mxu0 %v1506
        %v1576 = vpop.f32.mrb[0].mxu0
        %v1577 = vadd.f32 0.0, %v1576
        %v1578 = vpop.f32.mrb[0].mxu0
        %v1579 = vadd.f32 0.0, %v1578
        %1580 = vdwg.mxu0
        %1581 = vmatprep.subr.mxu0 0.0
        %1582 = vmatpush1.msra.mxu0 %v958
        %1583 = vmatprep.subr.mxu0 0.0
        %1584 = vmatpush1.msra.mxu0 %v961
        %1585 = vmatprep.subr.mxu0 0.0
        %1586 = vmatpush1.msra.mxu0 %v964
        %1587 = vmatprep.subr.mxu0 0.0
        %1588 = vmatpush1.msra.mxu0 %v967
        %1589 = vmatprep.subr.mxu0 0.0
        %1590 = vmatpush1.msra.mxu0 %v970
        %1591 = vmatprep.subr.mxu0 0.0
        %1592 = vmatpush1.msra.mxu0 %v973
        %1593 = vmatprep.subr.mxu0 0.0
        %1594 = vmatpush1.msra.mxu0 %v976
        %1595 = vmatprep.subr.mxu0 0.0
        %1596 = vmatpush1.msra.mxu0 %v979
        %1597 = vmatprep.subr.mxu0 0.0
        %1598 = vmatpush1.msra.mxu0 %v982
        %1599 = vmatprep.subr.mxu0 0.0
        %1600 = vmatpush1.msra.mxu0 %v985
        %1601 = vmatprep.subr.mxu0 0.0
        %1602 = vmatpush1.msra.mxu0 %v988
        %1603 = vmatprep.subr.mxu0 0.0
        %1604 = vmatpush1.msra.mxu0 %v991
        %1605 = vmatprep.subr.mxu0 0.0
        %1606 = vmatpush1.msra.mxu0 %v994
        %1607 = vmatprep.subr.mxu0 0.0
        %1608 = vmatpush1.msra.mxu0 %v997
        %1609 = vmatprep.subr.mxu0 0.0
        %1610 = vmatpush1.msra.mxu0 %v1000
        %1611 = vmatprep.subr.mxu0 0.0
        %1612 = vmatpush1.msra.mxu0 %v1003
        %1613 = vmatprep.subr.mxu0 0.0
        %1614 = vmatpush1.msra.mxu0 0.0
        %1615 = vmatprep.subr.mxu0 0.0
        %1616 = vmatpush1.msra.mxu0 0.0
        %1617 = vmatprep.subr.mxu0 0.0
        %1618 = vmatpush1.msra.mxu0 0.0
        %1619 = vmatprep.subr.mxu0 0.0
        %1620 = vmatpush1.msra.mxu0 0.0
        %1621 = vmatprep.subr.mxu0 0.0
        %1622 = vmatpush1.msra.mxu0 0.0
        %1623 = vmatprep.subr.mxu0 0.0
        %1624 = vmatpush1.msra.mxu0 0.0
        %1625 = vmatprep.subr.mxu0 0.0
        %1626 = vmatpush1.msra.mxu0 0.0
        %1627 = vmatprep.subr.mxu0 0.0
        %1628 = vmatpush1.msra.mxu0 0.0
        %1629 = vmatprep.subr.mxu0 0.0
        %1630 = vmatpush1.msra.mxu0 0.0
        %1631 = vmatprep.subr.mxu0 0.0
        %1632 = vmatpush1.msra.mxu0 0.0
        %1633 = vmatprep.subr.mxu0 0.0
        %1634 = vmatpush1.msra.mxu0 0.0
        %1635 = vmatprep.subr.mxu0 0.0
        %1636 = vmatpush1.msra.mxu0 0.0
        %1637 = vmatprep.subr.mxu0 0.0
        %1638 = vmatpush1.msra.mxu0 0.0
        %1639 = vmatprep.subr.mxu0 0.0
        %1640 = vmatpush1.msra.mxu0 0.0
        %1641 = vmatprep.subr.mxu0 0.0
        %1642 = vmatpush1.msra.mxu0 0.0
        %1643 = vmatprep.subr.mxu0 0.0
        %1644 = vmatpush1.msra.mxu0 0.0
        %1645 = vmatprep.mubr.f32.mxu0 0.0
        %1646 = vmatmul.mubr.f32.gmra.mrb[0].mxu0 %v1506
        %v1647 = vpop.f32.mrb[0].mxu0
        %v1648 = vadd.f32 0.0, %v1647
        %v1649 = vpop.f32.mrb[0].mxu0
        %1650 = vdwg.mxu0
        %v1651 = vadd.f32 %v1507, %v1577
        %v1652 = vxor.u32 %v1651, 2147483648
        %v1653 = vmul.f32 %v1652, 1.442695
        %v1654 = vpow.pop %v1653
        %v1655 = vadd.f32 %v1654, 1.0
        %v1656 = vrcp.pop %v1655
        %v1657 = vmul.f32 1.0, %v1656
        %v1658 = vadd.f32 %v1508, %v1579
        %v1659 = vxor.u32 %v1658, 2147483648
        %v1660 = vmul.f32 %v1659, 1.442695
        %v1661 = vpow.pop %v1660
        %v1662 = vadd.f32 %v1661, 1.0
        %v1663 = vrcp.pop %v1662
        %v1664 = vmul.f32 1.0, %v1663
        %v1665 = vadd.f32 %v1648, %v1168
        %v1666 = vmul.f32 %v1657, %v1665
        %v1667 = vadd.f32 %v1509, %v1666
        %v1668 = vtanh.pop %v1667
        %v1669 = vsub.f32 %v1506, %v1668
        %v1670 = vmul.f32 %v1664, %v1669
        %v1671 = vadd.f32 %v1668, %v1670
        %v1672 = vld [vmem:[%s805] sm:$0xff]
        %v1673 = vld [vmem:[%s805 + $0x8] sm:$0xff]
        %v1674 = vld [vmem:[%s805 + $0x10] sm:$0xff]
        %1675 = vmatprep.subr.mxu0 %v957
        %1676 = vmatpush1.msra.mxu0 %v956
        %1677 = vmatprep.subr.mxu0 %v960
        %1678 = vmatpush1.msra.mxu0 %v959
        %1679 = vmatprep.subr.mxu0 %v963
        %1680 = vmatpush1.msra.mxu0 %v962
        %1681 = vmatprep.subr.mxu0 %v966
        %1682 = vmatpush1.msra.mxu0 %v965
        %1683 = vmatprep.subr.mxu0 %v969
        %1684 = vmatpush1.msra.mxu0 %v968
        %1685 = vmatprep.subr.mxu0 %v972
        %1686 = vmatpush1.msra.mxu0 %v971
        %1687 = vmatprep.subr.mxu0 %v975
        %1688 = vmatpush1.msra.mxu0 %v974
        %1689 = vmatprep.subr.mxu0 %v978
        %1690 = vmatpush1.msra.mxu0 %v977
        %1691 = vmatprep.subr.mxu0 %v981
        %1692 = vmatpush1.msra.mxu0 %v980
        %1693 = vmatprep.subr.mxu0 %v984
        %1694 = vmatpush1.msra.mxu0 %v983
        %1695 = vmatprep.subr.mxu0 %v987
        %1696 = vmatpush1.msra.mxu0 %v986
        %1697 = vmatprep.subr.mxu0 %v990
        %1698 = vmatpush1.msra.mxu0 %v989
        %1699 = vmatprep.subr.mxu0 %v993
        %1700 = vmatpush1.msra.mxu0 %v992
        %1701 = vmatprep.subr.mxu0 %v996
        %1702 = vmatpush1.msra.mxu0 %v995
        %1703 = vmatprep.subr.mxu0 %v999
        %1704 = vmatpush1.msra.mxu0 %v998
        %1705 = vmatprep.subr.mxu0 %v1002
        %1706 = vmatpush1.msra.mxu0 %v1001
        %1707 = vmatprep.subr.mxu0 0.0
        %1708 = vmatpush1.msra.mxu0 0.0
        %1709 = vmatprep.subr.mxu0 0.0
        %1710 = vmatpush1.msra.mxu0 0.0
        %1711 = vmatprep.subr.mxu0 0.0
        %1712 = vmatpush1.msra.mxu0 0.0
        %1713 = vmatprep.subr.mxu0 0.0
        %1714 = vmatpush1.msra.mxu0 0.0
        %1715 = vmatprep.subr.mxu0 0.0
        %1716 = vmatpush1.msra.mxu0 0.0
        %1717 = vmatprep.subr.mxu0 0.0
        %1718 = vmatpush1.msra.mxu0 0.0
        %1719 = vmatprep.subr.mxu0 0.0
        %1720 = vmatpush1.msra.mxu0 0.0
        %1721 = vmatprep.subr.mxu0 0.0
        %1722 = vmatpush1.msra.mxu0 0.0
        %1723 = vmatprep.subr.mxu0 0.0
        %1724 = vmatpush1.msra.mxu0 0.0
        %1725 = vmatprep.subr.mxu0 0.0
        %1726 = vmatpush1.msra.mxu0 0.0
        %1727 = vmatprep.subr.mxu0 0.0
        %1728 = vmatpush1.msra.mxu0 0.0
        %1729 = vmatprep.subr.mxu0 0.0
        %1730 = vmatpush1.msra.mxu0 0.0
        %1731 = vmatprep.subr.mxu0 0.0
        %1732 = vmatpush1.msra.mxu0 0.0
        %1733 = vmatprep.subr.mxu0 0.0
        %1734 = vmatpush1.msra.mxu0 0.0
        %1735 = vmatprep.subr.mxu0 0.0
        %1736 = vmatpush1.msra.mxu0 0.0
        %1737 = vmatprep.subr.mxu0 0.0
        %1738 = vmatpush1.msra.mxu0 0.0
        %1739 = vmatprep.mubr.f32.mxu0 0.0
        %1740 = vmatmul.mubr.f32.gmra.mrb[0].mxu0 %v1671
        %v1741 = vpop.f32.mrb[0].mxu0
        %v1742 = vadd.f32 0.0, %v1741
        %v1743 = vpop.f32.mrb[0].mxu0
        %v1744 = vadd.f32 0.0, %v1743
        %1745 = vdwg.mxu0
        %1746 = vmatprep.subr.mxu0 0.0
        %1747 = vmatpush1.msra.mxu0 %v958
        %1748 = vmatprep.subr.mxu0 0.0
        %1749 = vmatpush1.msra.mxu0 %v961
        %1750 = vmatprep.subr.mxu0 0.0
        %1751 = vmatpush1.msra.mxu0 %v964
        %1752 = vmatprep.subr.mxu0 0.0
        %1753 = vmatpush1.msra.mxu0 %v967
        %1754 = vmatprep.subr.mxu0 0.0
        %1755 = vmatpush1.msra.mxu0 %v970
        %1756 = vmatprep.subr.mxu0 0.0
        %1757 = vmatpush1.msra.mxu0 %v973
        %1758 = vmatprep.subr.mxu0 0.0
        %1759 = vmatpush1.msra.mxu0 %v976
        %1760 = vmatprep.subr.mxu0 0.0
        %1761 = vmatpush1.msra.mxu0 %v979
        %1762 = vmatprep.subr.mxu0 0.0
        %1763 = vmatpush1.msra.mxu0 %v982
        %1764 = vmatprep.subr.mxu0 0.0
        %1765 = vmatpush1.msra.mxu0 %v985
        %1766 = vmatprep.subr.mxu0 0.0
        %1767 = vmatpush1.msra.mxu0 %v988
        %1768 = vmatprep.subr.mxu0 0.0
        %1769 = vmatpush1.msra.mxu0 %v991
        %1770 = vmatprep.subr.mxu0 0.0
        %1771 = vmatpush1.msra.mxu0 %v994
        %1772 = vmatprep.subr.mxu0 0.0
        %1773 = vmatpush1.msra.mxu0 %v997
        %1774 = vmatprep.subr.mxu0 0.0
        %1775 = vmatpush1.msra.mxu0 %v1000
        %1776 = vmatprep.subr.mxu0 0.0
        %1777 = vmatpush1.msra.mxu0 %v1003
        %1778 = vmatprep.subr.mxu0 0.0
        %1779 = vmatpush1.msra.mxu0 0.0
        %1780 = vmatprep.subr.mxu0 0.0
        %1781 = vmatpush1.msra.mxu0 0.0
        %1782 = vmatprep.subr.mxu0 0.0
        %1783 = vmatpush1.msra.mxu0 0.0
        %1784 = vmatprep.subr.mxu0 0.0
        %1785 = vmatpush1.msra.mxu0 0.0
        %1786 = vmatprep.subr.mxu0 0.0
        %1787 = vmatpush1.msra.mxu0 0.0
        %1788 = vmatprep.subr.mxu0 0.0
        %1789 = vmatpush1.msra.mxu0 0.0
        %1790 = vmatprep.subr.mxu0 0.0
        %1791 = vmatpush1.msra.mxu0 0.0
        %1792 = vmatprep.subr.mxu0 0.0
        %1793 = vmatpush1.msra.mxu0 0.0
        %1794 = vmatprep.subr.mxu0 0.0
        %1795 = vmatpush1.msra.mxu0 0.0
        %1796 = vmatprep.subr.mxu0 0.0
        %1797 = vmatpush1.msra.mxu0 0.0
        %1798 = vmatprep.subr.mxu0 0.0
        %1799 = vmatpush1.msra.mxu0 0.0
        %1800 = vmatprep.subr.mxu0 0.0
        %1801 = vmatpush1.msra.mxu0 0.0
        %1802 = vmatprep.subr.mxu0 0.0
        %1803 = vmatpush1.msra.mxu0 0.0
        %1804 = vmatprep.subr.mxu0 0.0
        %1805 = vmatpush1.msra.mxu0 0.0
        %1806 = vmatprep.subr.mxu0 0.0
        %1807 = vmatpush1.msra.mxu0 0.0
        %1808 = vmatprep.subr.mxu0 0.0
        %1809 = vmatpush1.msra.mxu0 0.0
        %1810 = vmatprep.mubr.f32.mxu0 0.0
        %1811 = vmatmul.mubr.f32.gmra.mrb[0].mxu0 %v1671
        %v1812 = vpop.f32.mrb[0].mxu0
        %v1813 = vadd.f32 0.0, %v1812
        %v1814 = vpop.f32.mrb[0].mxu0
        %1815 = vdwg.mxu0
        %v1816 = vadd.f32 %v1672, %v1742
        %v1817 = vxor.u32 %v1816, 2147483648
        %v1818 = vmul.f32 %v1817, 1.442695
        %v1819 = vpow.pop %v1818
        %v1820 = vadd.f32 %v1819, 1.0
        %v1821 = vrcp.pop %v1820
        %v1822 = vmul.f32 1.0, %v1821
        %v1823 = vadd.f32 %v1673, %v1744
        %v1824 = vxor.u32 %v1823, 2147483648
        %v1825 = vmul.f32 %v1824, 1.442695
        %v1826 = vpow.pop %v1825
        %v1827 = vadd.f32 %v1826, 1.0
        %v1828 = vrcp.pop %v1827
        %v1829 = vmul.f32 1.0, %v1828
        %v1830 = vadd.f32 %v1813, %v1168
        %v1831 = vmul.f32 %v1822, %v1830
        %v1832 = vadd.f32 %v1674, %v1831
        %v1833 = vtanh.pop %v1832
        %v1834 = vsub.f32 %v1671, %v1833
        %v1835 = vmul.f32 %v1829, %v1834
        %v1836 = vadd.f32 %v1833, %v1835
        %v1837 = vld [vmem:[%s854] sm:$0xff]
        %v1838 = vld [vmem:[%s854 + $0x8] sm:$0xff]
        %v1839 = vld [vmem:[%s854 + $0x10] sm:$0xff]
        %1840 = vmatprep.subr.mxu0 %v957
        %1841 = vmatpush1.msra.mxu0 %v956
        %1842 = vmatprep.subr.mxu0 %v960
        %1843 = vmatpush1.msra.mxu0 %v959
        %1844 = vmatprep.subr.mxu0 %v963
        %1845 = vmatpush1.msra.mxu0 %v962
        %1846 = vmatprep.subr.mxu0 %v966
        %1847 = vmatpush1.msra.mxu0 %v965
        %1848 = vmatprep.subr.mxu0 %v969
        %1849 = vmatpush1.msra.mxu0 %v968
        %1850 = vmatprep.subr.mxu0 %v972
        %1851 = vmatpush1.msra.mxu0 %v971
        %1852 = vmatprep.subr.mxu0 %v975
        %1853 = vmatpush1.msra.mxu0 %v974
        %1854 = vmatprep.subr.mxu0 %v978
        %1855 = vmatpush1.msra.mxu0 %v977
        %1856 = vmatprep.subr.mxu0 %v981
        %1857 = vmatpush1.msra.mxu0 %v980
        %1858 = vmatprep.subr.mxu0 %v984
        %1859 = vmatpush1.msra.mxu0 %v983
        %1860 = vmatprep.subr.mxu0 %v987
        %1861 = vmatpush1.msra.mxu0 %v986
        %1862 = vmatprep.subr.mxu0 %v990
        %1863 = vmatpush1.msra.mxu0 %v989
        %1864 = vmatprep.subr.mxu0 %v993
        %1865 = vmatpush1.msra.mxu0 %v992
        %1866 = vmatprep.subr.mxu0 %v996
        %1867 = vmatpush1.msra.mxu0 %v995
        %1868 = vmatprep.subr.mxu0 %v999
        %1869 = vmatpush1.msra.mxu0 %v998
        %1870 = vmatprep.subr.mxu0 %v1002
        %1871 = vmatpush1.msra.mxu0 %v1001
        %1872 = vmatprep.subr.mxu0 0.0
        %1873 = vmatpush1.msra.mxu0 0.0
        %1874 = vmatprep.subr.mxu0 0.0
        %1875 = vmatpush1.msra.mxu0 0.0
        %1876 = vmatprep.subr.mxu0 0.0
        %1877 = vmatpush1.msra.mxu0 0.0
        %1878 = vmatprep.subr.mxu0 0.0
        %1879 = vmatpush1.msra.mxu0 0.0
        %1880 = vmatprep.subr.mxu0 0.0
        %1881 = vmatpush1.msra.mxu0 0.0
        %1882 = vmatprep.subr.mxu0 0.0
        %1883 = vmatpush1.msra.mxu0 0.0
        %1884 = vmatprep.subr.mxu0 0.0
        %1885 = vmatpush1.msra.mxu0 0.0
        %1886 = vmatprep.subr.mxu0 0.0
        %1887 = vmatpush1.msra.mxu0 0.0
        %1888 = vmatprep.subr.mxu0 0.0
        %1889 = vmatpush1.msra.mxu0 0.0
        %1890 = vmatprep.subr.mxu0 0.0
        %1891 = vmatpush1.msra.mxu0 0.0
        %1892 = vmatprep.subr.mxu0 0.0
        %1893 = vmatpush1.msra.mxu0 0.0
        %1894 = vmatprep.subr.mxu0 0.0
        %1895 = vmatpush1.msra.mxu0 0.0
        %1896 = vmatprep.subr.mxu0 0.0
        %1897 = vmatpush1.msra.mxu0 0.0
        %1898 = vmatprep.subr.mxu0 0.0
        %1899 = vmatpush1.msra.mxu0 0.0
        %1900 = vmatprep.subr.mxu0 0.0
        %1901 = vmatpush1.msra.mxu0 0.0
        %1902 = vmatprep.subr.mxu0 0.0
        %1903 = vmatpush1.msra.mxu0 0.0
        %1904 = vmatprep.mubr.f32.mxu0 0.0
        %1905 = vmatmul.mubr.f32.gmra.mrb[0].mxu0 %v1836
        %v1906 = vpop.f32.mrb[0].mxu0
        %v1907 = vadd.f32 0.0, %v1906
        %v1908 = vpop.f32.mrb[0].mxu0
        %v1909 = vadd.f32 0.0, %v1908
        %1910 = vdwg.mxu0
        %1911 = vmatprep.subr.mxu0 0.0
        %1912 = vmatpush1.msra.mxu0 %v958
        %1913 = vmatprep.subr.mxu0 0.0
        %1914 = vmatpush1.msra.mxu0 %v961
        %1915 = vmatprep.subr.mxu0 0.0
        %1916 = vmatpush1.msra.mxu0 %v964
        %1917 = vmatprep.subr.mxu0 0.0
        %1918 = vmatpush1.msra.mxu0 %v967
        %1919 = vmatprep.subr.mxu0 0.0
        %1920 = vmatpush1.msra.mxu0 %v970
        %1921 = vmatprep.subr.mxu0 0.0
        %1922 = vmatpush1.msra.mxu0 %v973
        %1923 = vmatprep.subr.mxu0 0.0
        %1924 = vmatpush1.msra.mxu0 %v976
        %1925 = vmatprep.subr.mxu0 0.0
        %1926 = vmatpush1.msra.mxu0 %v979
        %1927 = vmatprep.subr.mxu0 0.0
        %1928 = vmatpush1.msra.mxu0 %v982
        %1929 = vmatprep.subr.mxu0 0.0
        %1930 = vmatpush1.msra.mxu0 %v985
        %1931 = vmatprep.subr.mxu0 0.0
        %1932 = vmatpush1.msra.mxu0 %v988
        %1933 = vmatprep.subr.mxu0 0.0
        %1934 = vmatpush1.msra.mxu0 %v991
        %1935 = vmatprep.subr.mxu0 0.0
        %1936 = vmatpush1.msra.mxu0 %v994
        %1937 = vmatprep.subr.mxu0 0.0
        %1938 = vmatpush1.msra.mxu0 %v997
        %1939 = vmatprep.subr.mxu0 0.0
        %1940 = vmatpush1.msra.mxu0 %v1000
        %1941 = vmatprep.subr.mxu0 0.0
        %1942 = vmatpush1.msra.mxu0 %v1003
        %1943 = vmatprep.subr.mxu0 0.0
        %1944 = vmatpush1.msra.mxu0 0.0
        %1945 = vmatprep.subr.mxu0 0.0
        %1946 = vmatpush1.msra.mxu0 0.0
        %1947 = vmatprep.subr.mxu0 0.0
        %1948 = vmatpush1.msra.mxu0 0.0
        %1949 = vmatprep.subr.mxu0 0.0
        %1950 = vmatpush1.msra.mxu0 0.0
        %1951 = vmatprep.subr.mxu0 0.0
        %1952 = vmatpush1.msra.mxu0 0.0
        %1953 = vmatprep.subr.mxu0 0.0
        %1954 = vmatpush1.msra.mxu0 0.0
        %1955 = vmatprep.subr.mxu0 0.0
        %1956 = vmatpush1.msra.mxu0 0.0
        %1957 = vmatprep.subr.mxu0 0.0
        %1958 = vmatpush1.msra.mxu0 0.0
        %1959 = vmatprep.subr.mxu0 0.0
        %1960 = vmatpush1.msra.mxu0 0.0
        %1961 = vmatprep.subr.mxu0 0.0
        %1962 = vmatpush1.msra.mxu0 0.0
        %1963 = vmatprep.subr.mxu0 0.0
        %1964 = vmatpush1.msra.mxu0 0.0
        %1965 = vmatprep.subr.mxu0 0.0
        %1966 = vmatpush1.msra.mxu0 0.0
        %1967 = vmatprep.subr.mxu0 0.0
        %1968 = vmatpush1.msra.mxu0 0.0
        %1969 = vmatprep.subr.mxu0 0.0
        %1970 = vmatpush1.msra.mxu0 0.0
        %1971 = vmatprep.subr.mxu0 0.0
        %1972 = vmatpush1.msra.mxu0 0.0
        %1973 = vmatprep.subr.mxu0 0.0
        %1974 = vmatpush1.msra.mxu0 0.0
        %1975 = vmatprep.mubr.f32.mxu0 0.0
        %1976 = vmatmul.mubr.f32.gmra.mrb[0].mxu0 %v1836
        %v1977 = vpop.f32.mrb[0].mxu0
        %v1978 = vadd.f32 0.0, %v1977
        %v1979 = vpop.f32.mrb[0].mxu0
        %1980 = vdwg.mxu0
        %v1981 = vadd.f32 %v1837, %v1907
        %v1982 = vxor.u32 %v1981, 2147483648
        %v1983 = vmul.f32 %v1982, 1.442695
        %v1984 = vpow.pop %v1983
        %v1985 = vadd.f32 %v1984, 1.0
        %v1986 = vrcp.pop %v1985
        %v1987 = vmul.f32 1.0, %v1986
        %v1988 = vadd.f32 %v1838, %v1909
        %v1989 = vxor.u32 %v1988, 2147483648
        %v1990 = vmul.f32 %v1989, 1.442695
        %v1991 = vpow.pop %v1990
        %v1992 = vadd.f32 %v1991, 1.0
        %v1993 = vrcp.pop %v1992
        %v1994 = vmul.f32 1.0, %v1993
        %v1995 = vadd.f32 %v1978, %v1168
        %v1996 = vmul.f32 %v1987, %v1995
        %v1997 = vadd.f32 %v1839, %v1996
        %v1998 = vtanh.pop %v1997
        %v1999 = vsub.f32 %v1836, %v1998
        %v2000 = vmul.f32 %v1994, %v1999
        %v2001 = vadd.f32 %v1998, %v2000
        %v2002 = vld [vmem:[%s903] sm:$0xff]
        %v2003 = vld [vmem:[%s903 + $0x8] sm:$0xff]
        %v2004 = vld [vmem:[%s903 + $0x10] sm:$0xff]
        %2005 = vmatprep.subr.mxu0 %v957
        %2006 = vmatpush1.msra.mxu0 %v956
        %2007 = vmatprep.subr.mxu0 %v960
        %2008 = vmatpush1.msra.mxu0 %v959
        %2009 = vmatprep.subr.mxu0 %v963
        %2010 = vmatpush1.msra.mxu0 %v962
        %2011 = vmatprep.subr.mxu0 %v966
        %2012 = vmatpush1.msra.mxu0 %v965
        %2013 = vmatprep.subr.mxu0 %v969
        %2014 = vmatpush1.msra.mxu0 %v968
        %2015 = vmatprep.subr.mxu0 %v972
        %2016 = vmatpush1.msra.mxu0 %v971
        %2017 = vmatprep.subr.mxu0 %v975
        %2018 = vmatpush1.msra.mxu0 %v974
        %2019 = vmatprep.subr.mxu0 %v978
        %2020 = vmatpush1.msra.mxu0 %v977
        %2021 = vmatprep.subr.mxu0 %v981
        %2022 = vmatpush1.msra.mxu0 %v980
        %2023 = vmatprep.subr.mxu0 %v984
        %2024 = vmatpush1.msra.mxu0 %v983
        %2025 = vmatprep.subr.mxu0 %v987
        %2026 = vmatpush1.msra.mxu0 %v986
        %2027 = vmatprep.subr.mxu0 %v990
        %2028 = vmatpush1.msra.mxu0 %v989
        %2029 = vmatprep.subr.mxu0 %v993
        %2030 = vmatpush1.msra.mxu0 %v992
        %2031 = vmatprep.subr.mxu0 %v996
        %2032 = vmatpush1.msra.mxu0 %v995
        %2033 = vmatprep.subr.mxu0 %v999
        %2034 = vmatpush1.msra.mxu0 %v998
        %2035 = vmatprep.subr.mxu0 %v1002
        %2036 = vmatpush1.msra.mxu0 %v1001
        %2037 = vmatprep.subr.mxu0 0.0
        %2038 = vmatpush1.msra.mxu0 0.0
        %2039 = vmatprep.subr.mxu0 0.0
        %2040 = vmatpush1.msra.mxu0 0.0
        %2041 = vmatprep.subr.mxu0 0.0
        %2042 = vmatpush1.msra.mxu0 0.0
        %2043 = vmatprep.subr.mxu0 0.0
        %2044 = vmatpush1.msra.mxu0 0.0
        %2045 = vmatprep.subr.mxu0 0.0
        %2046 = vmatpush1.msra.mxu0 0.0
        %2047 = vmatprep.subr.mxu0 0.0
        %2048 = vmatpush1.msra.mxu0 0.0
        %2049 = vmatprep.subr.mxu0 0.0
        %2050 = vmatpush1.msra.mxu0 0.0
        %2051 = vmatprep.subr.mxu0 0.0
        %2052 = vmatpush1.msra.mxu0 0.0
        %2053 = vmatprep.subr.mxu0 0.0
        %2054 = vmatpush1.msra.mxu0 0.0
        %2055 = vmatprep.subr.mxu0 0.0
        %2056 = vmatpush1.msra.mxu0 0.0
        %2057 = vmatprep.subr.mxu0 0.0
        %2058 = vmatpush1.msra.mxu0 0.0
        %2059 = vmatprep.subr.mxu0 0.0
        %2060 = vmatpush1.msra.mxu0 0.0
        %2061 = vmatprep.subr.mxu0 0.0
        %2062 = vmatpush1.msra.mxu0 0.0
        %2063 = vmatprep.subr.mxu0 0.0
        %2064 = vmatpush1.msra.mxu0 0.0
        %2065 = vmatprep.subr.mxu0 0.0
        %2066 = vmatpush1.msra.mxu0 0.0
        %2067 = vmatprep.subr.mxu0 0.0
        %2068 = vmatpush1.msra.mxu0 0.0
        %2069 = vmatprep.mubr.f32.mxu0 0.0
        %2070 = vmatmul.mubr.f32.gmra.mrb[0].mxu0 %v2001
        %v2071 = vpop.f32.mrb[0].mxu0
        %v2072 = vadd.f32 0.0, %v2071
        %v2073 = vpop.f32.mrb[0].mxu0
        %v2074 = vadd.f32 0.0, %v2073
        %2075 = vdwg.mxu0
        %2076 = vmatprep.subr.mxu0 0.0
        %2077 = vmatpush1.msra.mxu0 %v958
        %2078 = vmatprep.subr.mxu0 0.0
        %2079 = vmatpush1.msra.mxu0 %v961
        %2080 = vmatprep.subr.mxu0 0.0
        %2081 = vmatpush1.msra.mxu0 %v964
        %2082 = vmatprep.subr.mxu0 0.0
        %2083 = vmatpush1.msra.mxu0 %v967
        %2084 = vmatprep.subr.mxu0 0.0
        %2085 = vmatpush1.msra.mxu0 %v970
        %2086 = vmatprep.subr.mxu0 0.0
        %2087 = vmatpush1.msra.mxu0 %v973
        %2088 = vmatprep.subr.mxu0 0.0
        %2089 = vmatpush1.msra.mxu0 %v976
        %2090 = vmatprep.subr.mxu0 0.0
        %2091 = vmatpush1.msra.mxu0 %v979
        %2092 = vmatprep.subr.mxu0 0.0
        %2093 = vmatpush1.msra.mxu0 %v982
        %2094 = vmatprep.subr.mxu0 0.0
        %2095 = vmatpush1.msra.mxu0 %v985
        %2096 = vmatprep.subr.mxu0 0.0
        %2097 = vmatpush1.msra.mxu0 %v988
        %2098 = vmatprep.subr.mxu0 0.0
        %2099 = vmatpush1.msra.mxu0 %v991
        %2100 = vmatprep.subr.mxu0 0.0
        %2101 = vmatpush1.msra.mxu0 %v994
        %2102 = vmatprep.subr.mxu0 0.0
        %2103 = vmatpush1.msra.mxu0 %v997
        %2104 = vmatprep.subr.mxu0 0.0
        %2105 = vmatpush1.msra.mxu0 %v1000
        %2106 = vmatprep.subr.mxu0 0.0
        %2107 = vmatpush1.msra.mxu0 %v1003
        %2108 = vmatprep.subr.mxu0 0.0
        %2109 = vmatpush1.msra.mxu0 0.0
        %2110 = vmatprep.subr.mxu0 0.0
        %2111 = vmatpush1.msra.mxu0 0.0
        %2112 = vmatprep.subr.mxu0 0.0
        %2113 = vmatpush1.msra.mxu0 0.0
        %2114 = vmatprep.subr.mxu0 0.0
        %2115 = vmatpush1.msra.mxu0 0.0
        %2116 = vmatprep.subr.mxu0 0.0
        %2117 = vmatpush1.msra.mxu0 0.0
        %2118 = vmatprep.subr.mxu0 0.0
        %2119 = vmatpush1.msra.mxu0 0.0
        %2120 = vmatprep.subr.mxu0 0.0
        %2121 = vmatpush1.msra.mxu0 0.0
        %2122 = vmatprep.subr.mxu0 0.0
        %2123 = vmatpush1.msra.mxu0 0.0
        %2124 = vmatprep.subr.mxu0 0.0
        %2125 = vmatpush1.msra.mxu0 0.0
        %2126 = vmatprep.subr.mxu0 0.0
        %2127 = vmatpush1.msra.mxu0 0.0
        %2128 = vmatprep.subr.mxu0 0.0
        %2129 = vmatpush1.msra.mxu0 0.0
        %2130 = vmatprep.subr.mxu0 0.0
        %2131 = vmatpush1.msra.mxu0 0.0
        %2132 = vmatprep.subr.mxu0 0.0
        %2133 = vmatpush1.msra.mxu0 0.0
        %2134 = vmatprep.subr.mxu0 0.0
        %2135 = vmatpush1.msra.mxu0 0.0
        %2136 = vmatprep.subr.mxu0 0.0
        %2137 = vmatpush1.msra.mxu0 0.0
        %2138 = vmatprep.subr.mxu0 0.0
        %2139 = vmatpush1.msra.mxu0 0.0
        %2140 = vmatprep.mubr.f32.mxu0 0.0
        %2141 = vmatmul.mubr.f32.gmra.mrb[0].mxu0 %v2001
        %v2142 = vpop.f32.mrb[0].mxu0
        %v2143 = vadd.f32 0.0, %v2142
        %v2144 = vpop.f32.mrb[0].mxu0
        %2145 = vdwg.mxu0
        %v2146 = vadd.f32 %v2002, %v2072
        %v2147 = vxor.u32 %v2146, 2147483648
        %v2148 = vmul.f32 %v2147, 1.442695
        %v2149 = vpow.pop %v2148
        %v2150 = vadd.f32 %v2149, 1.0
        %v2151 = vrcp.pop %v2150
        %v2152 = vmul.f32 1.0, %v2151
        %v2153 = vadd.f32 %v2003, %v2074
        %v2154 = vxor.u32 %v2153, 2147483648
        %v2155 = vmul.f32 %v2154, 1.442695
        %v2156 = vpow.pop %v2155
        %v2157 = vadd.f32 %v2156, 1.0
        %v2158 = vrcp.pop %v2157
        %v2159 = vmul.f32 1.0, %v2158
        %v2160 = vadd.f32 %v2143, %v1168
        %v2161 = vmul.f32 %v2152, %v2160
        %v2162 = vadd.f32 %v2004, %v2161
        %v2163 = vtanh.pop %v2162
        %v2164 = vsub.f32 %v2001, %v2163
        %v2165 = vmul.f32 %v2159, %v2164
        %v2166 = vadd.f32 %v2163, %v2165
        %v2167 = vld [vmem:[%s952] sm:$0xff]
        %v2168 = vld [vmem:[%s952 + $0x8] sm:$0xff]
        %v2169 = vld [vmem:[%s952 + $0x10] sm:$0xff]
        %2170 = vmatprep.subr.mxu0 %v957
        %2171 = vmatpush1.msra.mxu0 %v956
        %2172 = vmatprep.subr.mxu0 %v960
        %2173 = vmatpush1.msra.mxu0 %v959
        %2174 = vmatprep.subr.mxu0 %v963
        %2175 = vmatpush1.msra.mxu0 %v962
        %2176 = vmatprep.subr.mxu0 %v966
        %2177 = vmatpush1.msra.mxu0 %v965
        %2178 = vmatprep.subr.mxu0 %v969
        %2179 = vmatpush1.msra.mxu0 %v968
        %2180 = vmatprep.subr.mxu0 %v972
        %2181 = vmatpush1.msra.mxu0 %v971
        %2182 = vmatprep.subr.mxu0 %v975
        %2183 = vmatpush1.msra.mxu0 %v974
        %2184 = vmatprep.subr.mxu0 %v978
        %2185 = vmatpush1.msra.mxu0 %v977
        %2186 = vmatprep.subr.mxu0 %v981
        %2187 = vmatpush1.msra.mxu0 %v980
        %2188 = vmatprep.subr.mxu0 %v984
        %2189 = vmatpush1.msra.mxu0 %v983
        %2190 = vmatprep.subr.mxu0 %v987
        %2191 = vmatpush1.msra.mxu0 %v986
        %2192 = vmatprep.subr.mxu0 %v990
        %2193 = vmatpush1.msra.mxu0 %v989
        %2194 = vmatprep.subr.mxu0 %v993
        %2195 = vmatpush1.msra.mxu0 %v992
        %2196 = vmatprep.subr.mxu0 %v996
        %2197 = vmatpush1.msra.mxu0 %v995
        %2198 = vmatprep.subr.mxu0 %v999
        %2199 = vmatpush1.msra.mxu0 %v998
        %2200 = vmatprep.subr.mxu0 %v1002
        %2201 = vmatpush1.msra.mxu0 %v1001
        %2202 = vmatprep.subr.mxu0 0.0
        %2203 = vmatpush1.msra.mxu0 0.0
        %2204 = vmatprep.subr.mxu0 0.0
        %2205 = vmatpush1.msra.mxu0 0.0
        %2206 = vmatprep.subr.mxu0 0.0
        %2207 = vmatpush1.msra.mxu0 0.0
        %2208 = vmatprep.subr.mxu0 0.0
        %2209 = vmatpush1.msra.mxu0 0.0
        %2210 = vmatprep.subr.mxu0 0.0
        %2211 = vmatpush1.msra.mxu0 0.0
        %2212 = vmatprep.subr.mxu0 0.0
        %2213 = vmatpush1.msra.mxu0 0.0
        %2214 = vmatprep.subr.mxu0 0.0
        %2215 = vmatpush1.msra.mxu0 0.0
        %2216 = vmatprep.subr.mxu0 0.0
        %2217 = vmatpush1.msra.mxu0 0.0
        %2218 = vmatprep.subr.mxu0 0.0
        %2219 = vmatpush1.msra.mxu0 0.0
        %2220 = vmatprep.subr.mxu0 0.0
        %2221 = vmatpush1.msra.mxu0 0.0
        %2222 = vmatprep.subr.mxu0 0.0
        %2223 = vmatpush1.msra.mxu0 0.0
        %2224 = vmatprep.subr.mxu0 0.0
        %2225 = vmatpush1.msra.mxu0 0.0
        %2226 = vmatprep.subr.mxu0 0.0
        %2227 = vmatpush1.msra.mxu0 0.0
        %2228 = vmatprep.subr.mxu0 0.0
        %2229 = vmatpush1.msra.mxu0 0.0
        %2230 = vmatprep.subr.mxu0 0.0
        %2231 = vmatpush1.msra.mxu0 0.0
        %2232 = vmatprep.subr.mxu0 0.0
        %2233 = vmatpush1.msra.mxu0 0.0
        %2234 = vmatprep.mubr.f32.mxu0 0.0
        %2235 = vmatmul.mubr.f32.gmra.mrb[0].mxu0 %v2166
        %v2236 = vpop.f32.mrb[0].mxu0
        %v2237 = vadd.f32 0.0, %v2236
        %v2238 = vpop.f32.mrb[0].mxu0
        %v2239 = vadd.f32 0.0, %v2238
        %2240 = vdwg.mxu0
        %2241 = vmatprep.subr.mxu0 0.0
        %2242 = vmatpush1.msra.mxu0 %v958
        %2243 = vmatprep.subr.mxu0 0.0
        %2244 = vmatpush1.msra.mxu0 %v961
        %2245 = vmatprep.subr.mxu0 0.0
        %2246 = vmatpush1.msra.mxu0 %v964
        %2247 = vmatprep.subr.mxu0 0.0
        %2248 = vmatpush1.msra.mxu0 %v967
        %2249 = vmatprep.subr.mxu0 0.0
        %2250 = vmatpush1.msra.mxu0 %v970
        %2251 = vmatprep.subr.mxu0 0.0
        %2252 = vmatpush1.msra.mxu0 %v973
        %2253 = vmatprep.subr.mxu0 0.0
        %2254 = vmatpush1.msra.mxu0 %v976
        %2255 = vmatprep.subr.mxu0 0.0
        %2256 = vmatpush1.msra.mxu0 %v979
        %2257 = vmatprep.subr.mxu0 0.0
        %2258 = vmatpush1.msra.mxu0 %v982
        %2259 = vmatprep.subr.mxu0 0.0
        %2260 = vmatpush1.msra.mxu0 %v985
        %2261 = vmatprep.subr.mxu0 0.0
        %2262 = vmatpush1.msra.mxu0 %v988
        %2263 = vmatprep.subr.mxu0 0.0
        %2264 = vmatpush1.msra.mxu0 %v991
        %2265 = vmatprep.subr.mxu0 0.0
        %2266 = vmatpush1.msra.mxu0 %v994
        %2267 = vmatprep.subr.mxu0 0.0
        %2268 = vmatpush1.msra.mxu0 %v997
        %2269 = vmatprep.subr.mxu0 0.0
        %2270 = vmatpush1.msra.mxu0 %v1000
        %2271 = vmatprep.subr.mxu0 0.0
        %2272 = vmatpush1.msra.mxu0 %v1003
        %2273 = vmatprep.subr.mxu0 0.0
        %2274 = vmatpush1.msra.mxu0 0.0
        %2275 = vmatprep.subr.mxu0 0.0
        %2276 = vmatpush1.msra.mxu0 0.0
        %2277 = vmatprep.subr.mxu0 0.0
        %2278 = vmatpush1.msra.mxu0 0.0
        %2279 = vmatprep.subr.mxu0 0.0
        %2280 = vmatpush1.msra.mxu0 0.0
        %2281 = vmatprep.subr.mxu0 0.0
        %2282 = vmatpush1.msra.mxu0 0.0
        %2283 = vmatprep.subr.mxu0 0.0
        %2284 = vmatpush1.msra.mxu0 0.0
        %2285 = vmatprep.subr.mxu0 0.0
        %2286 = vmatpush1.msra.mxu0 0.0
        %2287 = vmatprep.subr.mxu0 0.0
        %2288 = vmatpush1.msra.mxu0 0.0
        %2289 = vmatprep.subr.mxu0 0.0
        %2290 = vmatpush1.msra.mxu0 0.0
        %2291 = vmatprep.subr.mxu0 0.0
        %2292 = vmatpush1.msra.mxu0 0.0
        %2293 = vmatprep.subr.mxu0 0.0
        %2294 = vmatpush1.msra.mxu0 0.0
        %2295 = vmatprep.subr.mxu0 0.0
        %2296 = vmatpush1.msra.mxu0 0.0
        %2297 = vmatprep.subr.mxu0 0.0
        %2298 = vmatpush1.msra.mxu0 0.0
        %2299 = vmatprep.subr.mxu0 0.0
        %2300 = vmatpush1.msra.mxu0 0.0
        %2301 = vmatprep.subr.mxu0 0.0
        %2302 = vmatpush1.msra.mxu0 0.0
        %2303 = vmatprep.subr.mxu0 0.0
        %2304 = vmatpush1.msra.mxu0 0.0
        %2305 = vmatprep.mubr.f32.mxu0 0.0
        %2306 = vmatmul.mubr.f32.gmra.mrb[0].mxu0 %v2166
        %v2307 = vpop.f32.mrb[0].mxu0
        %v2308 = vadd.f32 0.0, %v2307
        %v2309 = vpop.f32.mrb[0].mxu0
        %2310 = vdwg.mxu0
        %v2311 = vadd.f32 %v2167, %v2237
        %v2312 = vxor.u32 %v2311, 2147483648
        %v2313 = vmul.f32 %v2312, 1.442695
        %v2314 = vpow.pop %v2313
        %v2315 = vadd.f32 %v2314, 1.0
        %v2316 = vrcp.pop %v2315
        %v2317 = vmul.f32 1.0, %v2316
        %v2318 = vadd.f32 %v2168, %v2239
        %v2319 = vxor.u32 %v2318, 2147483648
        %v2320 = vmul.f32 %v2319, 1.442695
        %v2321 = vpow.pop %v2320
        %v2322 = vadd.f32 %v2321, 1.0
        %v2323 = vrcp.pop %v2322
        %v2324 = vmul.f32 1.0, %v2323
        %v2325 = vadd.f32 %v2308, %v1168
        %v2326 = vmul.f32 %v2317, %v2325
        %v2327 = vadd.f32 %v2169, %v2326
        %v2328 = vtanh.pop %v2327
        %v2329 = vsub.f32 %v2166, %v2328
        %v2330 = vmul.f32 %v2324, %v2329
        %v2331 = vadd.f32 %v2328, %v2330
        %2332 = vst [vmem:[#allocation3] sm:$0xff] %v2331
        %p2333 = scmp.eq.s32.totalorder %s25, 1
        // Predicated region
        $region53: #{tpu_custom_call.1} parent=35 // pred_check
          %p2334 = pneg %p2333
        $region54: #{tpu_custom_call.1} parent=35 // pred_check_branch
          %2336 = sbr.rel (%p2334) target = $region56
        $region55: #{tpu_custom_call.1} parent=35 // pred_region
          %2337 = vst [vmem:[#allocation10] sm:$0xff] %v2331
        $region56: #{tpu_custom_call.1} parent=35 // pred_fallthru
          _
        // Predicated region
        $region57: #{tpu_custom_call.1} parent=35 // pred_check
          %p2338 = pneg %p141
        $region58: #{tpu_custom_call.1} parent=35 // pred_check_branch
          %2340 = sbr.rel (%p2338) target = $region60
        $region59: #{tpu_custom_call.1} parent=35 // pred_region
          %s2342 = ssub.s32 128, 128
          %2343 = vsyncadd [#allocation6], %s2342
          %s2344 = smul.addr %s24, 128
          %s2345 = scalar_lea.hbm %s4, %s2344
          %s2347 = sshll.u32 [#allocation10], 4
          %s2348 = int_to_ptr.vmem [resolvable:$true] %s2347
          %2350 = dma.vmem_to_hbm [thread:$0]  %s2348, 128, %s2345, [#allocation6]
        $region60: #{tpu_custom_call.1} parent=35 // pred_fallthru
          _
        // Predicated region
        $region61: #{tpu_custom_call.1} parent=35 // pred_check
          %p2351 = pneg %p141
        $region62: #{tpu_custom_call.1} parent=35 // pred_check_branch
          %2353 = sbr.rel (%p2351) target = $region64
        $region63: #{tpu_custom_call.1} parent=35 // pred_region
          %2354 = dma.done [#allocation6], 128
        $region64: #{tpu_custom_call.1} parent=35 // pred_fallthru
          _
      $region36: #{tpu_custom_call.1} parent=5 // pred_fallthru
        _
      %p2355 = scmp.le.s32.totalorder 2, %s15
      // Predicated region
      $region65: #{tpu_custom_call.1} parent=5 // pred_check
        %p2356 = pneg %p2355
      $region66: #{tpu_custom_call.1} parent=5 // pred_check_branch
        %2358 = sbr.rel (%p2356) target = $region68
      $region67: #{tpu_custom_call.1} parent=5 // pred_region
        %s2359 = ssub.s32 %s15, 2
      $region68: #{tpu_custom_call.1} parent=5 // pred_fallthru
        _
    $region6: #{tpu_custom_call.1} parent=1 // loop_footer
      %s19 = sadd.s32 1, %s15
    $region7: #{tpu_custom_call.1} parent=1 // loop_footer_branch
      %14 = sbr.rel target = $region3
    $region8: #{tpu_custom_call.1} parent=1 // loop_exit
      _
    %2360 = vsyncpa [#allocation5], 1
    %s2361 = scalar_lea.sflag [#allocation5], 1
    %2362 = vsyncpa %s2361, 1
    %2363 = vsyncpa [#allocation8], 1
    %2364 = vsyncpa [#allocation6], 1
    %s2365 = scalar_lea.sflag [#allocation6], 1
    %2366 = vsyncpa %s2365, 1

// kernel: tpu_custom_call.1
$region0: #{tpu_custom_call.1}
  #allocation0 [shape = 'u32[]', space=smem, size = 0x4, offset = 0x4, fixed_abs, tag = 'smem constant byte address 0x4 - core index']
  #allocation1 [shape = 'u32[144,128]{1,0:T(1,128)}', space=vmem, size = 0x12000, scoped, tag = 'internal scratch']
  #allocation2 [shape = 'f32[8,8,384]{2,1,0:T(8,128)}', space=vmem, size = 0x18000, scoped, tag = 'scratch operand']
  #allocation3 [shape = 'f32[8,128]{1,0:T(8,128)}', space=vmem, size = 0x1000, scoped, tag = 'scratch operand']
  %s0 = inlined_call_operand.hbm [shape: f32[8,16,128], index: 0, kind: input, shape index: {}]
  %s1 = inlined_call_operand.hbm [shape: f32[128,384], index: 1, kind: input, shape index: {}]
  %s2 = inlined_call_operand.hbm [shape: f32[128,384], index: 2, kind: input, shape index: {}]
  %s3 = inlined_call_operand.vmem [shape: f32[1,128], index: 3, kind: input, shape index: {}]
  %s4 = inlined_call_operand.hbm [shape: f32[8,128], index: 4, kind: output, shape index: {}]
  %s5 = sld [smem:[#allocation0]]
  $region69: #{tpu_custom_call.1} parent=0
    _
  %s7 = ssub.s32 1, %s5
  %s8 = scalar_select 0, %s7, %s5
  $region1: #{tpu_custom_call.1} parent=0
    #allocation4 [shape = 'u8[65536]{0}', space=vmem, size = 0x10000, scoped, tag = 'input window, operand 0']
    #allocation5 [shape = 's32[2]{0}', space=sflag, size = 0x8, scoped, tag = 'scoped memory for tpu_custom_call.1']
    #allocation6 [shape = 's32[2]{0}', space=sflag, size = 0x8, scoped, tag = 'scoped memory for tpu_custom_call.1']
    #allocation7 [shape = 'u8[196608]{0}', space=vmem, size = 0x30000, scoped, tag = 'input window, operand 1, single buffered']
    #allocation8 [shape = 's32[1]{0}', space=sflag, size = 0x4, scoped, tag = 'scoped memory for tpu_custom_call.1']
    #allocation9 [shape = 'u8[196608]{0}', space=vmem, size = 0x30000, scoped, tag = 'input window, operand 2, single buffered']
    #allocation10 [shape = 'u8[4096]{0}', space=vmem, size = 0x1000, scoped, tag = 'output window, operand 0, single buffered']
    %9 = vsyncpa [#allocation5], 0
    %s10 = scalar_lea.sflag [#allocation5], 1
    %11 = vsyncpa %s10, 0
    %12 = vsyncpa [#allocation8], 0
    %13 = vsyncpa [#allocation6], 0
    loop: start=0, step=1, limit=4
    $region2: #{tpu_custom_call.1} parent=1 // loop_pre_header
      _
    $region3: #{tpu_custom_call.1} parent=1 // loop_header
      %s15 = sphi 0, %s19
      %p16 = scmp.ge.s32.totalorder %s15, 4
      %s22 = sphi 0, %s34
      %s23 = sphi 0, %s30
      %s24 = sphi 0, %s22
      %s25 = sphi 0, %s23
      %s26 = sphi 0, %s24
      %s27 = sphi 0, %s25
      %s39 = sphi 0, %s41
      %s42 = sphi 0, %s39
      %s43 = sphi 0, %s42
      %s59 = sphi 0, %s43
      %s63 = sphi 0, %s63
      %s65 = sphi 0, %s63
      %s66 = sphi 0, %s65
      %s80 = sphi 0, %s66
      %s84 = sphi 0, %s84
      %s86 = sphi 0, %s84
      %s87 = sphi 0, %s86
      %s101 = sphi 0, %s87
      %s105 = sphi 0, %s105
      %s107 = sphi 0, %s105
      %s108 = sphi 0, %s107
      %s122 = sphi 0, %s108
      %s128 = sphi 0, %s130
      %s131 = sphi 0, %s128
      %s132 = sphi 0, %s131
      %s148 = sphi 0, %s132
    $region4: #{tpu_custom_call.1} parent=1 // loop_header_branch
      %18 = sbr.rel (%p16) target = $region8
    $region5: #{tpu_custom_call.1} parent=1 // loop_body
      %s20 = ssub.s32 %s15, 1
      %s21 = ssub.s32 %s15, 2
      %s28 = sadd.s32 1, %s23
      %p29 = scmp.ge.s32.totalorder %s28, 2
      %s30 = scalar_select %p29, 0, %s28
      %s31 = sadd.s32 1, %s22
      %s32 = scalar_select %p29, %s31, %s22
      %p33 = scmp.ge.s32.totalorder %s32, 1
      %s34 = scalar_select %p33, 0, %s32
      %s35 = ssub.s32 %s22, %s34
      %s36 = ssub.s32 %s23, %s30
      %s37 = sor.u32 %s35, %s36
      %p38 = scmp.eq.s32.totalorder %s37, 0
      %s40 = sadd.s32 %s39, 1
      %s41 = scalar_select %p38, %s39, %s40
      %p44 = pneg %p38
      %p45 = scmp.eq.s32.totalorder %s15, 1
      %p46 = por %p44, %p45
      %p47 = scmp.ne.s32.totalorder %s39, %s42
      %p48 = scmp.eq.s32.totalorder %s15, 0
      %p49 = por %p47, %p48
      %p50 = scmp.ne.s32.totalorder %s39, %s42
      %p51 = scmp.eq.s32.totalorder %s20, 1
      %p52 = por %p50, %p51
      %p53 = scmp.ne.s32.totalorder %s42, %s43
      %p54 = scmp.eq.s32.totalorder %s20, 0
      %p55 = por %p53, %p54
      %p56 = scmp.ne.s32.totalorder %s42, %s43
      %p57 = scmp.eq.s32.totalorder %s21, 1
      %p58 = por %p56, %p57
      %p60 = scmp.ne.s32.totalorder %s43, %s59
      %p61 = scmp.eq.s32.totalorder %s21, 0
      %p62 = por %p60, %p61
      %s64 = sadd.s32 %s63, 1
      %p67 = scmp.eq.s32.totalorder %s15, 1
      %p68 = scmp.ne.s32.totalorder %s63, %s65
      %p69 = scmp.eq.s32.totalorder %s15, 0
      %p70 = por %p68, %p69
      %p71 = scmp.ne.s32.totalorder %s63, %s65
      %p72 = scmp.eq.s32.totalorder %s20, 1
      %p73 = por %p71, %p72
      %p74 = scmp.ne.s32.totalorder %s65, %s66
      %p75 = scmp.eq.s32.totalorder %s20, 0
      %p76 = por %p74, %p75
      %p77 = scmp.ne.s32.totalorder %s65, %s66
      %p78 = scmp.eq.s32.totalorder %s21, 1
      %p79 = por %p77, %p78
      %p81 = scmp.ne.s32.totalorder %s66, %s80
      %p82 = scmp.eq.s32.totalorder %s21, 0
      %p83 = por %p81, %p82
      %s85 = sadd.s32 %s84, 1
      %p88 = scmp.eq.s32.totalorder %s15, 1
      %p89 = scmp.ne.s32.totalorder %s84, %s86
      %p90 = scmp.eq.s32.totalorder %s15, 0
      %p91 = por %p89, %p90
      %p92 = scmp.ne.s32.totalorder %s84, %s86
      %p93 = scmp.eq.s32.totalorder %s20, 1
      %p94 = por %p92, %p93
      %p95 = scmp.ne.s32.totalorder %s86, %s87
      %p96 = scmp.eq.s32.totalorder %s20, 0
      %p97 = por %p95, %p96
      %p98 = scmp.ne.s32.totalorder %s86, %s87
      %p99 = scmp.eq.s32.totalorder %s21, 1
      %p100 = por %p98, %p99
      %p102 = scmp.ne.s32.totalorder %s87, %s101
      %p103 = scmp.eq.s32.totalorder %s21, 0
      %p104 = por %p102, %p103
      %s106 = sadd.s32 %s105, 1
      %p109 = scmp.eq.s32.totalorder %s15, 1
      %p110 = scmp.ne.s32.totalorder %s105, %s107
      %p111 = scmp.eq.s32.totalorder %s15, 0
      %p112 = por %p110, %p111
      %p113 = scmp.ne.s32.totalorder %s105, %s107
      %p114 = scmp.eq.s32.totalorder %s20, 1
      %p115 = por %p113, %p114
      %p116 = scmp.ne.s32.totalorder %s107, %s108
      %p117 = scmp.eq.s32.totalorder %s20, 0
      %p118 = por %p116, %p117
      %p119 = scmp.ne.s32.totalorder %s107, %s108
      %p120 = scmp.eq.s32.totalorder %s21, 1
      %p121 = por %p119, %p120
      %p123 = scmp.ne.s32.totalorder %s108, %s122
      %p124 = scmp.eq.s32.totalorder %s21, 0
      %p125 = por %p123, %p124
      %s126 = ssub.s32 %s22, %s34
      %p127 = scmp.eq.s32.totalorder %s126, 0
      %s129 = sadd.s32 %s128, 1
      %s130 = scalar_select %p127, %s128, %s129
      %p133 = pneg %p127
      %p134 = scmp.eq.s32.totalorder %s15, 1
      %p135 = por %p133, %p134
      %p136 = scmp.ne.s32.totalorder %s128, %s131
      %p137 = scmp.eq.s32.totalorder %s15, 0
      %p138 = por %p136, %p137
      %p139 = scmp.ne.s32.totalorder %s128, %s131
      %p140 = scmp.eq.s32.totalorder %s20, 1
      %p141 = por %p139, %p140
      %p142 = scmp.ne.s32.totalorder %s131, %s132
      %p143 = scmp.eq.s32.totalorder %s20, 0
      %p144 = por %p142, %p143
      %p145 = scmp.ne.s32.totalorder %s131, %s132
      %p146 = scmp.eq.s32.totalorder %s21, 1
      %p147 = por %p145, %p146
      %p149 = scmp.ne.s32.totalorder %s132, %s148
      %p150 = scmp.eq.s32.totalorder %s21, 0
      %p151 = por %p149, %p150
      %p152 = scmp.le.s32.totalorder 1, %s15
      %p153 = scmp.lt.s32.totalorder %s15, 3
      %p154 = pnand %p152, %p153
      %p155 = pneg %p154
      // Predicated region
      $region9: #{tpu_custom_call.1} parent=5 // pred_check
        _
      $region10: #{tpu_custom_call.1} parent=5 // pred_check_branch
        %157 = sbr.rel (%p154) target = $region12
      $region11: #{tpu_custom_call.1} parent=5 // pred_region
        %s158 = ssub.s32 %s15, 1
        // Predicated region
        $region13: #{tpu_custom_call.1} parent=11 // pred_check
          %p159 = pneg %p76
        $region14: #{tpu_custom_call.1} parent=11 // pred_check_branch
          %161 = sbr.rel (%p159) target = $region16
        $region15: #{tpu_custom_call.1} parent=11 // pred_region
          %s163 = ssub.s32 6144, 6144
          %164 = vsyncadd [#allocation8], %s163
          %s165 = sshll.u32 [#allocation7], 4
          %s166 = int_to_ptr.vmem [resolvable:$true] %s165
          %171 = dma.hbm_to_vmem [thread:$0]  %s1, 6144, %s166, [#allocation8], 384, 384, 24
        $region16: #{tpu_custom_call.1} parent=11 // pred_fallthru
          _
        // Predicated region
        $region17: #{tpu_custom_call.1} parent=11 // pred_check
          %p172 = pneg %p97
        $region18: #{tpu_custom_call.1} parent=11 // pred_check_branch
          %174 = sbr.rel (%p172) target = $region20
        $region19: #{tpu_custom_call.1} parent=11 // pred_region
          %s176 = ssub.s32 6144, 6144
          %177 = vsyncadd [#allocation8], %s176
          %s178 = sshll.u32 [#allocation9], 4
          %s179 = int_to_ptr.vmem [resolvable:$true] %s178
          %184 = dma.hbm_to_vmem [thread:$0]  %s2, 6144, %s179, [#allocation8], 384, 384, 24
        $region20: #{tpu_custom_call.1} parent=11 // pred_fallthru
          _
        // Predicated region
        $region21: #{tpu_custom_call.1} parent=11 // pred_check
          %p185 = pneg %p118
        $region22: #{tpu_custom_call.1} parent=11 // pred_check_branch
          %187 = sbr.rel (%p185) target = $region24
        $region23: #{tpu_custom_call.1} parent=11 // pred_region
          _
        $region24: #{tpu_custom_call.1} parent=11 // pred_fallthru
          _
      $region12: #{tpu_custom_call.1} parent=5 // pred_fallthru
        _
      %p188 = scmp.lt.s32.totalorder %s15, 2
      // Predicated region
      $region25: #{tpu_custom_call.1} parent=5 // pred_check
        %p189 = pneg %p188
      $region26: #{tpu_custom_call.1} parent=5 // pred_check_branch
        %191 = sbr.rel (%p189) target = $region28
      $region27: #{tpu_custom_call.1} parent=5 // pred_region
        // Predicated region
        $region29: #{tpu_custom_call.1} parent=27 // pred_check
          %p192 = pneg %p49
        $region30: #{tpu_custom_call.1} parent=27 // pred_check_branch
          %194 = sbr.rel (%p192) target = $region32
        $region31: #{tpu_custom_call.1} parent=27 // pred_region
          %s195 = sand.u32 %s39, 1
          %s196 = scalar_lea.sflag [#allocation5], %s195
          %s197 = sand.u32 %s39, 1
          %s198 = smul.addr %s197, 64
          %s199 = scalar_lea.vmem [#allocation4], %s198
          %s200 = smul.u32 8, %s22
          %s202 = ssub.s32 1024, 1024
          %203 = vsyncadd %s196, %s202
          %s204 = smul.addr %s200, 2
          %s205 = sadd.s32 %s23, %s204
          %s206 = smul.addr %s205, 128
          %s207 = scalar_lea.hbm %s0, %s206
          %s208 = sshll.u32 %s199, 4
          %s209 = int_to_ptr.vmem [resolvable:$true] %s208
          %214 = dma.hbm_to_vmem [thread:$0]  %s207, 1024, %s209, %s196, 256, 128, 8
        $region32: #{tpu_custom_call.1} parent=27 // pred_fallthru
          _
      $region28: #{tpu_custom_call.1} parent=5 // pred_fallthru
        _
      %p215 = scmp.le.s32.totalorder 1, %s15
      %p216 = scmp.lt.s32.totalorder %s15, 3
      %p217 = pnand %p215, %p216
      %p218 = pneg %p217
      // Predicated region
      $region33: #{tpu_custom_call.1} parent=5 // pred_check
        _
      $region34: #{tpu_custom_call.1} parent=5 // pred_check_branch
        %220 = sbr.rel (%p217) target = $region36
      $region35: #{tpu_custom_call.1} parent=5 // pred_region
        %s221 = ssub.s32 %s15, 1
        %s222 = sand.u32 %s42, 1
        %s223 = scalar_lea.sflag [#allocation5], %s222
        %s224 = sand.u32 %s42, 1
        %s225 = smul.addr %s224, 64
        %s226 = scalar_lea.vmem [#allocation4], %s225
        // Predicated region
        $region37: #{tpu_custom_call.1} parent=35 // pred_check
          %p227 = pneg %p55
        $region38: #{tpu_custom_call.1} parent=35 // pred_check_branch
          %229 = sbr.rel (%p227) target = $region40
        $region39: #{tpu_custom_call.1} parent=35 // pred_region
          %230 = dma.done %s223, 1024
        $region40: #{tpu_custom_call.1} parent=35 // pred_fallthru
          _
        // Predicated region
        $region41: #{tpu_custom_call.1} parent=35 // pred_check
          %p231 = pneg %p76
        $region42: #{tpu_custom_call.1} parent=35 // pred_check_branch
          %233 = sbr.rel (%p231) target = $region44
        $region43: #{tpu_custom_call.1} parent=35 // pred_region
          %234 = dma.done [#allocation8], 6144
        $region44: #{tpu_custom_call.1} parent=35 // pred_fallthru
          _
        // Predicated region
        $region45: #{tpu_custom_call.1} parent=35 // pred_check
          %p235 = pneg %p97
        $region46: #{tpu_custom_call.1} parent=35 // pred_check_branch
          %237 = sbr.rel (%p235) target = $region48
        $region47: #{tpu_custom_call.1} parent=35 // pred_region
          %238 = dma.done [#allocation8], 6144
        $region48: #{tpu_custom_call.1} parent=35 // pred_fallthru
          _
        %s239 = sand.u32 %s42, 1
        %s240 = scalar_lea.sflag [#allocation5], %s239
        %s241 = sand.u32 %s42, 1
        %s242 = smul.addr %s241, 64
        %s243 = scalar_lea.vmem [#allocation4], %s242
        %p244 = pneg %p55
        %p245 = pneg %p52
        %p246 = pneg %p76
        %p247 = pneg %p73
        %p248 = pneg %p97
        %p249 = pneg %p94
        %p250 = pneg %p118
        %p251 = pneg %p115
        %p252 = pneg %p144
        %p253 = pneg %p141
        %s254 = smul.u32 8, %s24
        %p255 = scmp.eq.s32.totalorder %s25, 0
        // Predicated region
        $region49: #{tpu_custom_call.1} parent=35 // pred_check
          %p256 = pneg %p255
        $region50: #{tpu_custom_call.1} parent=35 // pred_check_branch
          %258 = sbr.rel (%p256) target = $region52
        $region51: #{tpu_custom_call.1} parent=35 // pred_region
          %259 = vst [vmem:[#allocation3] sm:$0xff] 0.0
        $region52: #{tpu_custom_call.1} parent=35 // pred_fallthru
          _
        %v260 = vld [vmem:[%s226] sm:$0xff]
        %v261 = vld [vmem:[%s226 + $0x8] sm:$0xff]
        %v262 = vld [vmem:[%s226 + $0x10] sm:$0xff]
        %v263 = vld [vmem:[%s226 + $0x18] sm:$0xff]
        %v264 = vld [vmem:[%s226 + $0x20] sm:$0xff]
        %v265 = vld [vmem:[%s226 + $0x28] sm:$0xff]
        %v266 = vld [vmem:[%s226 + $0x30] sm:$0xff]
        %v267 = vld [vmem:[%s226 + $0x38] sm:$0xff]
        %v268 = vld [vmem:[#allocation7] sm:$0xff]
        %v269 = vld [vmem:[#allocation7 + $0x8] sm:$0xff]
        %v270 = vld [vmem:[#allocation7 + $0x10] sm:$0xff]
        %v271 = vld [vmem:[#allocation7 + $0x18] sm:$0xff]
        %v272 = vld [vmem:[#allocation7 + $0x20] sm:$0xff]
        %v273 = vld [vmem:[#allocation7 + $0x28] sm:$0xff]
        %v274 = vld [vmem:[#allocation7 + $0x30] sm:$0xff]
        %v275 = vld [vmem:[#allocation7 + $0x38] sm:$0xff]
        %v276 = vld [vmem:[#allocation7 + $0x40] sm:$0xff]
        %v277 = vld [vmem:[#allocation7 + $0x48] sm:$0xff]
        %v278 = vld [vmem:[#allocation7 + $0x50] sm:$0xff]
        %v279 = vld [vmem:[#allocation7 + $0x58] sm:$0xff]
        %v280 = vld [vmem:[#allocation7 + $0x60] sm:$0xff]
        %v281 = vld [vmem:[#allocation7 + $0x68] sm:$0xff]
        %v282 = vld [vmem:[#allocation7 + $0x70] sm:$0xff]
        %v283 = vld [vmem:[#allocation7 + $0x78] sm:$0xff]
        %v284 = vld [vmem:[#allocation7 + $0x80] sm:$0xff]
        %v285 = vld [vmem:[#allocation7 + $0x88] sm:$0xff]
        %v286 = vld [vmem:[#allocation7 + $0x90] sm:$0xff]
        %v287 = vld [vmem:[#allocation7 + $0x98] sm:$0xff]
        %v288 = vld [vmem:[#allocation7 + $0xa0] sm:$0xff]
        %v289 = vld [vmem:[#allocation7 + $0xa8] sm:$0xff]
        %v290 = vld [vmem:[#allocation7 + $0xb0] sm:$0xff]
        %v291 = vld [vmem:[#allocation7 + $0xb8] sm:$0xff]
        %v292 = vld [vmem:[#allocation7 + $0xc0] sm:$0xff]
        %v293 = vld [vmem:[#allocation7 + $0xc8] sm:$0xff]
        %v294 = vld [vmem:[#allocation7 + $0xd0] sm:$0xff]
        %v295 = vld [vmem:[#allocation7 + $0xd8] sm:$0xff]
        %v296 = vld [vmem:[#allocation7 + $0xe0] sm:$0xff]
        %v297 = vld [vmem:[#allocation7 + $0xe8] sm:$0xff]
        %v298 = vld [vmem:[#allocation7 + $0xf0] sm:$0xff]
        %v299 = vld [vmem:[#allocation7 + $0xf8] sm:$0xff]
        %v300 = vld [vmem:[#allocation7 + $0x100] sm:$0xff]
        %v301 = vld [vmem:[#allocation7 + $0x108] sm:$0xff]
        %v302 = vld [vmem:[#allocation7 + $0x110] sm:$0xff]
        %v303 = vld [vmem:[#allocation7 + $0x118] sm:$0xff]
        %v304 = vld [vmem:[#allocation7 + $0x120] sm:$0xff]
        %v305 = vld [vmem:[#allocation7 + $0x128] sm:$0xff]
        %v306 = vld [vmem:[#allocation7 + $0x130] sm:$0xff]
        %v307 = vld [vmem:[#allocation7 + $0x138] sm:$0xff]
        %v308 = vld [vmem:[#allocation7 + $0x140] sm:$0xff]
        %v309 = vld [vmem:[#allocation7 + $0x148] sm:$0xff]
        %v310 = vld [vmem:[#allocation7 + $0x150] sm:$0xff]
        %v311 = vld [vmem:[#allocation7 + $0x158] sm:$0xff]
        %v312 = vld [vmem:[#allocation7 + $0x160] sm:$0xff]
        %v313 = vld [vmem:[#allocation7 + $0x168] sm:$0xff]
        %v314 = vld [vmem:[#allocation7 + $0x170] sm:$0xff]
        %v315 = vld [vmem:[#allocation7 + $0x178] sm:$0xff]
        %316 = vmatprep.subr.mxu0 %v269
        %317 = vmatpush1.msra.mxu0 %v268
        %318 = vmatprep.subr.mxu0 %v272
        %319 = vmatpush1.msra.mxu0 %v271
        %320 = vmatprep.subr.mxu0 %v275
        %321 = vmatpush1.msra.mxu0 %v274
        %322 = vmatprep.subr.mxu0 %v278
        %323 = vmatpush1.msra.mxu0 %v277
        %324 = vmatprep.subr.mxu0 %v281
        %325 = vmatpush1.msra.mxu0 %v280
        %326 = vmatprep.subr.mxu0 %v284
        %327 = vmatpush1.msra.mxu0 %v283
        %328 = vmatprep.subr.mxu0 %v287
        %329 = vmatpush1.msra.mxu0 %v286
        %330 = vmatprep.subr.mxu0 %v290
        %331 = vmatpush1.msra.mxu0 %v289
        %332 = vmatprep.subr.mxu0 %v293
        %333 = vmatpush1.msra.mxu0 %v292
        %334 = vmatprep.subr.mxu0 %v296
        %335 = vmatpush1.msra.mxu0 %v295
        %336 = vmatprep.subr.mxu0 %v299
        %337 = vmatpush1.msra.mxu0 %v298
        %338 = vmatprep.subr.mxu0 %v302
        %339 = vmatpush1.msra.mxu0 %v301
        %340 = vmatprep.subr.mxu0 %v305
        %341 = vmatpush1.msra.mxu0 %v304
        %342 = vmatprep.subr.mxu0 %v308
        %343 = vmatpush1.msra.mxu0 %v307
        %344 = vmatprep.subr.mxu0 %v311
        %345 = vmatpush1.msra.mxu0 %v310
        %346 = vmatprep.subr.mxu0 %v314
        %347 = vmatpush1.msra.mxu0 %v313
        %348 = vmatprep.subr.mxu0 0.0
        %349 = vmatpush1.msra.mxu0 0.0
        %350 = vmatprep.subr.mxu0 0.0
        %351 = vmatpush1.msra.mxu0 0.0
        %352 = vmatprep.subr.mxu0 0.0
        %353 = vmatpush1.msra.mxu0 0.0
        %354 = vmatprep.subr.mxu0 0.0
        %355 = vmatpush1.msra.mxu0 0.0
        %356 = vmatprep.subr.mxu0 0.0
        %357 = vmatpush1.msra.mxu0 0.0
        %358 = vmatprep.subr.mxu0 0.0
        %359 = vmatpush1.msra.mxu0 0.0
        %360 = vmatprep.subr.mxu0 0.0
        %361 = vmatpush1.msra.mxu0 0.0
        %362 = vmatprep.subr.mxu0 0.0
        %363 = vmatpush1.msra.mxu0 0.0
        %364 = vmatprep.subr.mxu0 0.0
        %365 = vmatpush1.msra.mxu0 0.0
        %366 = vmatprep.subr.mxu0 0.0
        %367 = vmatpush1.msra.mxu0 0.0
        %368 = vmatprep.subr.mxu0 0.0
        %369 = vmatpush1.msra.mxu0 0.0
        %370 = vmatprep.subr.mxu0 0.0
        %371 = vmatpush1.msra.mxu0 0.0
        %372 = vmatprep.subr.mxu0 0.0
        %373 = vmatpush1.msra.mxu0 0.0
        %374 = vmatprep.subr.mxu0 0.0
        %375 = vmatpush1.msra.mxu0 0.0
        %376 = vmatprep.subr.mxu0 0.0
        %377 = vmatpush1.msra.mxu0 0.0
        %378 = vmatprep.subr.mxu0 0.0
        %379 = vmatpush1.msra.mxu0 0.0
        %380 = vmatprep.mubr.f32.mxu0 0.0
        %381 = vmatmul.mubr.f32.gmra.mrb[0].mxu0 %v260
        %v382 = vpop.f32.mrb[0].mxu0
        %v383 = vadd.f32 0.0, %v382
        %v384 = vpop.f32.mrb[0].mxu0
        %v385 = vadd.f32 0.0, %v384
        %386 = vmatprep.mubr.f32.mxu0 0.0
        %387 = vmatmul.mubr.f32.gmra.mrb[0].mxu0 %v261
        %v388 = vpop.f32.mrb[0].mxu0
        %v389 = vadd.f32 0.0, %v388
        %v390 = vpop.f32.mrb[0].mxu0
        %v391 = vadd.f32 0.0, %v390
        %392 = vmatprep.mubr.f32.mxu0 0.0
        %393 = vmatmul.mubr.f32.gmra.mrb[0].mxu0 %v262
        %v394 = vpop.f32.mrb[0].mxu0
        %v395 = vadd.f32 0.0, %v394
        %v396 = vpop.f32.mrb[0].mxu0
        %v397 = vadd.f32 0.0, %v396
        %398 = vmatprep.mubr.f32.mxu0 0.0
        %399 = vmatmul.mubr.f32.gmra.mrb[0].mxu0 %v263
        %v400 = vpop.f32.mrb[0].mxu0
        %v401 = vadd.f32 0.0, %v400
        %v402 = vpop.f32.mrb[0].mxu0
        %v403 = vadd.f32 0.0, %v402
        %404 = vmatprep.mubr.f32.mxu0 0.0
        %405 = vmatmul.mubr.f32.gmra.mrb[0].mxu0 %v264
        %v406 = vpop.f32.mrb[0].mxu0
        %v407 = vadd.f32 0.0, %v406
        %v408 = vpop.f32.mrb[0].mxu0
        %v409 = vadd.f32 0.0, %v408
        %410 = vmatprep.mubr.f32.mxu0 0.0
        %411 = vmatmul.mubr.f32.gmra.mrb[0].mxu0 %v265
        %v412 = vpop.f32.mrb[0].mxu0
        %v413 = vadd.f32 0.0, %v412
        %v414 = vpop.f32.mrb[0].mxu0
        %v415 = vadd.f32 0.0, %v414
        %416 = vmatprep.mubr.f32.mxu0 0.0
        %417 = vmatmul.mubr.f32.gmra.mrb[0].mxu0 %v266
        %v418 = vpop.f32.mrb[0].mxu0
        %v419 = vadd.f32 0.0, %v418
        %v420 = vpop.f32.mrb[0].mxu0
        %v421 = vadd.f32 0.0, %v420
        %422 = vmatprep.mubr.f32.mxu0 0.0
        %423 = vmatmul.mubr.f32.gmra.mrb[0].mxu0 %v267
        %v424 = vpop.f32.mrb[0].mxu0
        %v425 = vadd.f32 0.0, %v424
        %v426 = vpop.f32.mrb[0].mxu0
        %v427 = vadd.f32 0.0, %v426
        %428 = vdwg.mxu0
        %429 = vmatprep.subr.mxu0 0.0
        %430 = vmatpush1.msra.mxu0 %v270
        %431 = vmatprep.subr.mxu0 0.0
        %432 = vmatpush1.msra.mxu0 %v273
        %433 = vmatprep.subr.mxu0 0.0
        %434 = vmatpush1.msra.mxu0 %v276
        %435 = vmatprep.subr.mxu0 0.0
        %436 = vmatpush1.msra.mxu0 %v279
        %437 = vmatprep.subr.mxu0 0.0
        %438 = vmatpush1.msra.mxu0 %v282
        %439 = vmatprep.subr.mxu0 0.0
        %440 = vmatpush1.msra.mxu0 %v285
        %441 = vmatprep.subr.mxu0 0.0
        %442 = vmatpush1.msra.mxu0 %v288
        %443 = vmatprep.subr.mxu0 0.0
        %444 = vmatpush1.msra.mxu0 %v291
        %445 = vmatprep.subr.mxu0 0.0
        %446 = vmatpush1.msra.mxu0 %v294
        %447 = vmatprep.subr.mxu0 0.0
        %448 = vmatpush1.msra.mxu0 %v297
        %449 = vmatprep.subr.mxu0 0.0
        %450 = vmatpush1.msra.mxu0 %v300
        %451 = vmatprep.subr.mxu0 0.0
        %452 = vmatpush1.msra.mxu0 %v303
        %453 = vmatprep.subr.mxu0 0.0
        %454 = vmatpush1.msra.mxu0 %v306
        %455 = vmatprep.subr.mxu0 0.0
        %456 = vmatpush1.msra.mxu0 %v309
        %457 = vmatprep.subr.mxu0 0.0
        %458 = vmatpush1.msra.mxu0 %v312
        %459 = vmatprep.subr.mxu0 0.0
        %460 = vmatpush1.msra.mxu0 %v315
        %461 = vmatprep.subr.mxu0 0.0
        %462 = vmatpush1.msra.mxu0 0.0
        %463 = vmatprep.subr.mxu0 0.0
        %464 = vmatpush1.msra.mxu0 0.0
        %465 = vmatprep.subr.mxu0 0.0
        %466 = vmatpush1.msra.mxu0 0.0
        %467 = vmatprep.subr.mxu0 0.0
        %468 = vmatpush1.msra.mxu0 0.0
        %469 = vmatprep.subr.mxu0 0.0
        %470 = vmatpush1.msra.mxu0 0.0
        %471 = vmatprep.subr.mxu0 0.0
        %472 = vmatpush1.msra.mxu0 0.0
        %473 = vmatprep.subr.mxu0 0.0
        %474 = vmatpush1.msra.mxu0 0.0
        %475 = vmatprep.subr.mxu0 0.0
        %476 = vmatpush1.msra.mxu0 0.0
        %477 = vmatprep.subr.mxu0 0.0
        %478 = vmatpush1.msra.mxu0 0.0
        %479 = vmatprep.subr.mxu0 0.0
        %480 = vmatpush1.msra.mxu0 0.0
        %481 = vmatprep.subr.mxu0 0.0
        %482 = vmatpush1.msra.mxu0 0.0
        %483 = vmatprep.subr.mxu0 0.0
        %484 = vmatpush1.msra.mxu0 0.0
        %485 = vmatprep.subr.mxu0 0.0
        %486 = vmatpush1.msra.mxu0 0.0
        %487 = vmatprep.subr.mxu0 0.0
        %488 = vmatpush1.msra.mxu0 0.0
        %489 = vmatprep.subr.mxu0 0.0
        %490 = vmatpush1.msra.mxu0 0.0
        %491 = vmatprep.subr.mxu0 0.0
        %492 = vmatpush1.msra.mxu0 0.0
        %493 = vmatprep.mubr.f32.mxu0 0.0
        %494 = vmatmul.mubr.f32.gmra.mrb[0].mxu0 %v260
        %v495 = vpop.f32.mrb[0].mxu0
        %v496 = vadd.f32 0.0, %v495
        %v497 = vpop.f32.mrb[0].mxu0
        %498 = vmatprep.mubr.f32.mxu0 0.0
        %499 = vmatmul.mubr.f32.gmra.mrb[0].mxu0 %v261
        %v500 = vpop.f32.mrb[0].mxu0
        %v501 = vadd.f32 0.0, %v500
        %v502 = vpop.f32.mrb[0].mxu0
        %503 = vmatprep.mubr.f32.mxu0 0.0
        %504 = vmatmul.mubr.f32.gmra.mrb[0].mxu0 %v262
        %v505 = vpop.f32.mrb[0].mxu0
        %v506 = vadd.f32 0.0, %v505
        %v507 = vpop.f32.mrb[0].mxu0
        %508 = vmatprep.mubr.f32.mxu0 0.0
        %509 = vmatmul.mubr.f32.gmra.mrb[0].mxu0 %v263
        %v510 = vpop.f32.mrb[0].mxu0
        %v511 = vadd.f32 0.0, %v510
        %v512 = vpop.f32.mrb[0].mxu0
        %513 = vmatprep.mubr.f32.mxu0 0.0
        %514 = vmatmul.mubr.f32.gmra.mrb[0].mxu0 %v264
        %v515 = vpop.f32.mrb[0].mxu0
        %v516 = vadd.f32 0.0, %v515
        %v517 = vpop.f32.mrb[0].mxu0
        %518 = vmatprep.mubr.f32.mxu0 0.0
        %519 = vmatmul.mubr.f32.gmra.mrb[0].mxu0 %v265
        %v520 = vpop.f32.mrb[0].mxu0
        %v521 = vadd.f32 0.0, %v520
        %v522 = vpop.f32.mrb[0].mxu0
        %523 = vmatprep.mubr.f32.mxu0 0.0
        %524 = vmatmul.mubr.f32.gmra.mrb[0].mxu0 %v266
        %v525 = vpop.f32.mrb[0].mxu0
        %v526 = vadd.f32 0.0, %v525
        %v527 = vpop.f32.mrb[0].mxu0
        %528 = vmatprep.mubr.f32.mxu0 0.0
        %529 = vmatmul.mubr.f32.gmra.mrb[0].mxu0 %v267
        %v530 = vpop.f32.mrb[0].mxu0
        %v531 = vadd.f32 0.0, %v530
        %v532 = vpop.f32.mrb[0].mxu0
        %533 = vdwg.mxu0
        %v558 = vrot.slane %v389, 7
        %vm559 = vcmask 1041409
        %v560 = vsel %vm559, %v558, %v383
        %v561 = vrot.slane %v395, 6
        %vm562 = vcmask 1042434
        %v563 = vsel %vm562, %v561, %v560
        %v564 = vrot.slane %v401, 5
        %vm565 = vcmask 1043459
        %v566 = vsel %vm565, %v564, %v563
        %v567 = vrot.slane %v407, 4
        %vm568 = vcmask 1044484
        %v569 = vsel %vm568, %v567, %v566
        %v570 = vrot.slane %v413, 3
        %vm571 = vcmask 1045509
        %v572 = vsel %vm571, %v570, %v569
        %v573 = vrot.slane %v419, 2
        %vm574 = vcmask 1046534
        %v575 = vsel %vm574, %v573, %v572
        %v576 = vrot.slane %v425, 1
        %vm577 = vcmask 1047559
        %v578 = vsel %vm577, %v576, %v575
        %v579 = vrot.slane %v391, 7
        %v580 = vsel %vm559, %v579, %v385
        %v581 = vrot.slane %v397, 6
        %v582 = vsel %vm562, %v581, %v580
        %v583 = vrot.slane %v403, 5
        %v584 = vsel %vm565, %v583, %v582
        %v585 = vrot.slane %v409, 4
        %v586 = vsel %vm568, %v585, %v584
        %v587 = vrot.slane %v415, 3
        %v588 = vsel %vm571, %v587, %v586
        %v589 = vrot.slane %v421, 2
        %v590 = vsel %vm574, %v589, %v588
        %v591 = vrot.slane %v427, 1
        %v592 = vsel %vm577, %v591, %v590
        %v593 = vrot.slane %v501, 7
        %v594 = vsel %vm559, %v593, %v496
        %v595 = vrot.slane %v506, 6
        %v596 = vsel %vm562, %v595, %v594
        %v597 = vrot.slane %v511, 5
        %v598 = vsel %vm565, %v597, %v596
        %v599 = vrot.slane %v516, 4
        %v600 = vsel %vm568, %v599, %v598
        %v601 = vrot.slane %v521, 3
        %v602 = vsel %vm571, %v601, %v600
        %v603 = vrot.slane %v526, 2
        %v604 = vsel %vm574, %v603, %v602
        %v605 = vrot.slane %v531, 1
        %v606 = vsel %vm577, %v605, %v604
        %610 = vst [vmem:[#allocation2] sm:$0xff] %v578
        %611 = vst [vmem:[#allocation2 + $0x8] sm:$0xff] %v592
        %612 = vst [vmem:[#allocation2 + $0x10] sm:$0xff] %v606
        %v613 = vrot.slane %v383, 1
        %v614 = vsel %vm559, %v389, %v613
        %v615 = vrot.slane %v395, 7
        %v616 = vsel %vm562, %v615, %v614
        %v617 = vrot.slane %v401, 6
        %v618 = vsel %vm565, %v617, %v616
        %v619 = vrot.slane %v407, 5
        %v620 = vsel %vm568, %v619, %v618
        %v621 = vrot.slane %v413, 4
        %v622 = vsel %vm571, %v621, %v620
        %v623 = vrot.slane %v419, 3
        %v624 = vsel %vm574, %v623, %v622
        %v625 = vrot.slane %v425, 2
        %v626 = vsel %vm577, %v625, %v624
        %v627 = vrot.slane %v385, 1
        %v628 = vsel %vm559, %v391, %v627
        %v629 = vrot.slane %v397, 7
        %v630 = vsel %vm562, %v629, %v628
        %v631 = vrot.slane %v403, 6
        %v632 = vsel %vm565, %v631, %v630
        %v633 = vrot.slane %v409, 5
        %v634 = vsel %vm568, %v633, %v632
        %v635 = vrot.slane %v415, 4
        %v636 = vsel %vm571, %v635, %v634
        %v637 = vrot.slane %v421, 3
        %v638 = vsel %vm574, %v637, %v636
        %v639 = vrot.slane %v427, 2
        %v640 = vsel %vm577, %v639, %v638
        %v641 = vrot.slane %v496, 1
        %v642 = vsel %vm559, %v501, %v641
        %v643 = vrot.slane %v506, 7
        %v644 = vsel %vm562, %v643, %v642
        %v645 = vrot.slane %v511, 6
        %v646 = vsel %vm565, %v645, %v644
        %v647 = vrot.slane %v516, 5
        %v648 = vsel %vm568, %v647, %v646
        %v649 = vrot.slane %v521, 4
        %v650 = vsel %vm571, %v649, %v648
        %v651 = vrot.slane %v526, 3
        %v652 = vsel %vm574, %v651, %v650
        %v653 = vrot.slane %v531, 2
        %v654 = vsel %vm577, %v653, %v652
        %s658 = scalar_lea.vmem [#allocation2], 24
        %659 = vst [vmem:[%s658] sm:$0xff] %v626
        %660 = vst [vmem:[%s658 + $0x8] sm:$0xff] %v640
        %661 = vst [vmem:[%s658 + $0x10] sm:$0xff] %v654
        %v662 = vrot.slane %v383, 2
        %v663 = vrot.slane %v389, 1
        %v664 = vsel %vm559, %v663, %v662
        %v665 = vsel %vm562, %v395, %v664
        %v666 = vrot.slane %v401, 7
        %v667 = vsel %vm565, %v666, %v665
        %v668 = vrot.slane %v407, 6
        %v669 = vsel %vm568, %v668, %v667
        %v670 = vrot.slane %v413, 5
        %v671 = vsel %vm571, %v670, %v669
        %v672 = vrot.slane %v419, 4
        %v673 = vsel %vm574, %v672, %v671
        %v674 = vrot.slane %v425, 3
        %v675 = vsel %vm577, %v674, %v673
        %v676 = vrot.slane %v385, 2
        %v677 = vrot.slane %v391, 1
        %v678 = vsel %vm559, %v677, %v676
        %v679 = vsel %vm562, %v397, %v678
        %v680 = vrot.slane %v403, 7
        %v681 = vsel %vm565, %v680, %v679
        %v682 = vrot.slane %v409, 6
        %v683 = vsel %vm568, %v682, %v681
        %v684 = vrot.slane %v415, 5
        %v685 = vsel %vm571, %v684, %v683
        %v686 = vrot.slane %v421, 4
        %v687 = vsel %vm574, %v686, %v685
        %v688 = vrot.slane %v427, 3
        %v689 = vsel %vm577, %v688, %v687
        %v690 = vrot.slane %v496, 2
        %v691 = vrot.slane %v501, 1
        %v692 = vsel %vm559, %v691, %v690
        %v693 = vsel %vm562, %v506, %v692
        %v694 = vrot.slane %v511, 7
        %v695 = vsel %vm565, %v694, %v693
        %v696 = vrot.slane %v516, 6
        %v697 = vsel %vm568, %v696, %v695
        %v698 = vrot.slane %v521, 5
        %v699 = vsel %vm571, %v698, %v697
        %v700 = vrot.slane %v526, 4
        %v701 = vsel %vm574, %v700, %v699
        %v702 = vrot.slane %v531, 3
        %v703 = vsel %vm577, %v702, %v701
        %s707 = scalar_lea.vmem [#allocation2], 48
        %708 = vst [vmem:[%s707] sm:$0xff] %v675
        %709 = vst [vmem:[%s707 + $0x8] sm:$0xff] %v689
        %710 = vst [vmem:[%s707 + $0x10] sm:$0xff] %v703
        %v711 = vrot.slane %v383, 3
        %v712 = vrot.slane %v389, 2
        %v713 = vsel %vm559, %v712, %v711
        %v714 = vrot.slane %v395, 1
        %v715 = vsel %vm562, %v714, %v713
        %v716 = vsel %vm565, %v401, %v715
        %v717 = vrot.slane %v407, 7
        %v718 = vsel %vm568, %v717, %v716
        %v719 = vrot.slane %v413, 6
        %v720 = vsel %vm571, %v719, %v718
        %v721 = vrot.slane %v419, 5
        %v722 = vsel %vm574, %v721, %v720
        %v723 = vrot.slane %v425, 4
        %v724 = vsel %vm577, %v723, %v722
        %v725 = vrot.slane %v385, 3
        %v726 = vrot.slane %v391, 2
        %v727 = vsel %vm559, %v726, %v725
        %v728 = vrot.slane %v397, 1
        %v729 = vsel %vm562, %v728, %v727
        %v730 = vsel %vm565, %v403, %v729
        %v731 = vrot.slane %v409, 7
        %v732 = vsel %vm568, %v731, %v730
        %v733 = vrot.slane %v415, 6
        %v734 = vsel %vm571, %v733, %v732
        %v735 = vrot.slane %v421, 5
        %v736 = vsel %vm574, %v735, %v734
        %v737 = vrot.slane %v427, 4
        %v738 = vsel %vm577, %v737, %v736
        %v739 = vrot.slane %v496, 3
        %v740 = vrot.slane %v501, 2
        %v741 = vsel %vm559, %v740, %v739
        %v742 = vrot.slane %v506, 1
        %v743 = vsel %vm562, %v742, %v741
        %v744 = vsel %vm565, %v511, %v743
        %v745 = vrot.slane %v516, 7
        %v746 = vsel %vm568, %v745, %v744
        %v747 = vrot.slane %v521, 6
        %v748 = vsel %vm571, %v747, %v746
        %v749 = vrot.slane %v526, 5
        %v750 = vsel %vm574, %v749, %v748
        %v751 = vrot.slane %v531, 4
        %v752 = vsel %vm577, %v751, %v750
        %s756 = scalar_lea.vmem [#allocation2], 72
        %757 = vst [vmem:[%s756] sm:$0xff] %v724
        %758 = vst [vmem:[%s756 + $0x8] sm:$0xff] %v738
        %759 = vst [vmem:[%s756 + $0x10] sm:$0xff] %v752
        %v760 = vrot.slane %v383, 4
        %v761 = vrot.slane %v389, 3
        %v762 = vsel %vm559, %v761, %v760
        %v763 = vrot.slane %v395, 2
        %v764 = vsel %vm562, %v763, %v762
        %v765 = vrot.slane %v401, 1
        %v766 = vsel %vm565, %v765, %v764
        %v767 = vsel %vm568, %v407, %v766
        %v768 = vrot.slane %v413, 7
        %v769 = vsel %vm571, %v768, %v767
        %v770 = vrot.slane %v419, 6
        %v771 = vsel %vm574, %v770, %v769
        %v772 = vrot.slane %v425, 5
        %v773 = vsel %vm577, %v772, %v771
        %v774 = vrot.slane %v385, 4
        %v775 = vrot.slane %v391, 3
        %v776 = vsel %vm559, %v775, %v774
        %v777 = vrot.slane %v397, 2
        %v778 = vsel %vm562, %v777, %v776
        %v779 = vrot.slane %v403, 1
        %v780 = vsel %vm565, %v779, %v778
        %v781 = vsel %vm568, %v409, %v780
        %v782 = vrot.slane %v415, 7
        %v783 = vsel %vm571, %v782, %v781
        %v784 = vrot.slane %v421, 6
        %v785 = vsel %vm574, %v784, %v783
        %v786 = vrot.slane %v427, 5
        %v787 = vsel %vm577, %v786, %v785
        %v788 = vrot.slane %v496, 4
        %v789 = vrot.slane %v501, 3
        %v790 = vsel %vm559, %v789, %v788
        %v791 = vrot.slane %v506, 2
        %v792 = vsel %vm562, %v791, %v790
        %v793 = vrot.slane %v511, 1
        %v794 = vsel %vm565, %v793, %v792
        %v795 = vsel %vm568, %v516, %v794
        %v796 = vrot.slane %v521, 7
        %v797 = vsel %vm571, %v796, %v795
        %v798 = vrot.slane %v526, 6
        %v799 = vsel %vm574, %v798, %v797
        %v800 = vrot.slane %v531, 5
        %v801 = vsel %vm577, %v800, %v799
        %s805 = scalar_lea.vmem [#allocation2], 96
        %806 = vst [vmem:[%s805] sm:$0xff] %v773
        %807 = vst [vmem:[%s805 + $0x8] sm:$0xff] %v787
        %808 = vst [vmem:[%s805 + $0x10] sm:$0xff] %v801
        %v809 = vrot.slane %v383, 5
        %v810 = vrot.slane %v389, 4
        %v811 = vsel %vm559, %v810, %v809
        %v812 = vrot.slane %v395, 3
        %v813 = vsel %vm562, %v812, %v811
        %v814 = vrot.slane %v401, 2
        %v815 = vsel %vm565, %v814, %v813
        %v816 = vrot.slane %v407, 1
        %v817 = vsel %vm568, %v816, %v815
        %v818 = vsel %vm571, %v413, %v817
        %v819 = vrot.slane %v419, 7
        %v820 = vsel %vm574, %v819, %v818
        %v821 = vrot.slane %v425, 6
        %v822 = vsel %vm577, %v821, %v820
        %v823 = vrot.slane %v385, 5
        %v824 = vrot.slane %v391, 4
        %v825 = vsel %vm559, %v824, %v823
        %v826 = vrot.slane %v397, 3
        %v827 = vsel %vm562, %v826, %v825
        %v828 = vrot.slane %v403, 2
        %v829 = vsel %vm565, %v828, %v827
        %v830 = vrot.slane %v409, 1
        %v831 = vsel %vm568, %v830, %v829
        %v832 = vsel %vm571, %v415, %v831
        %v833 = vrot.slane %v421, 7
        %v834 = vsel %vm574, %v833, %v832
        %v835 = vrot.slane %v427, 6
        %v836 = vsel %vm577, %v835, %v834
        %v837 = vrot.slane %v496, 5
        %v838 = vrot.slane %v501, 4
        %v839 = vsel %vm559, %v838, %v837
        %v840 = vrot.slane %v506, 3
        %v841 = vsel %vm562, %v840, %v839
        %v842 = vrot.slane %v511, 2
        %v843 = vsel %vm565, %v842, %v841
        %v844 = vrot.slane %v516, 1
        %v845 = vsel %vm568, %v844, %v843
        %v846 = vsel %vm571, %v521, %v845
        %v847 = vrot.slane %v526, 7
        %v848 = vsel %vm574, %v847, %v846
        %v849 = vrot.slane %v531, 6
        %v850 = vsel %vm577, %v849, %v848
        %s854 = scalar_lea.vmem [#allocation2], 120
        %855 = vst [vmem:[%s854] sm:$0xff] %v822
        %856 = vst [vmem:[%s854 + $0x8] sm:$0xff] %v836
        %857 = vst [vmem:[%s854 + $0x10] sm:$0xff] %v850
        %v858 = vrot.slane %v383, 6
        %v859 = vrot.slane %v389, 5
        %v860 = vsel %vm559, %v859, %v858
        %v861 = vrot.slane %v395, 4
        %v862 = vsel %vm562, %v861, %v860
        %v863 = vrot.slane %v401, 3
        %v864 = vsel %vm565, %v863, %v862
        %v865 = vrot.slane %v407, 2
        %v866 = vsel %vm568, %v865, %v864
        %v867 = vrot.slane %v413, 1
        %v868 = vsel %vm571, %v867, %v866
        %v869 = vsel %vm574, %v419, %v868
        %v870 = vrot.slane %v425, 7
        %v871 = vsel %vm577, %v870, %v869
        %v872 = vrot.slane %v385, 6
        %v873 = vrot.slane %v391, 5
        %v874 = vsel %vm559, %v873, %v872
        %v875 = vrot.slane %v397, 4
        %v876 = vsel %vm562, %v875, %v874
        %v877 = vrot.slane %v403, 3
        %v878 = vsel %vm565, %v877, %v876
        %v879 = vrot.slane %v409, 2
        %v880 = vsel %vm568, %v879, %v878
        %v881 = vrot.slane %v415, 1
        %v882 = vsel %vm571, %v881, %v880
        %v883 = vsel %vm574, %v421, %v882
        %v884 = vrot.slane %v427, 7
        %v885 = vsel %vm577, %v884, %v883
        %v886 = vrot.slane %v496, 6
        %v887 = vrot.slane %v501, 5
        %v888 = vsel %vm559, %v887, %v886
        %v889 = vrot.slane %v506, 4
        %v890 = vsel %vm562, %v889, %v888
        %v891 = vrot.slane %v511, 3
        %v892 = vsel %vm565, %v891, %v890
        %v893 = vrot.slane %v516, 2
        %v894 = vsel %vm568, %v893, %v892
        %v895 = vrot.slane %v521, 1
        %v896 = vsel %vm571, %v895, %v894
        %v897 = vsel %vm574, %v526, %v896
        %v898 = vrot.slane %v531, 7
        %v899 = vsel %vm577, %v898, %v897
        %s903 = scalar_lea.vmem [#allocation2], 144
        %904 = vst [vmem:[%s903] sm:$0xff] %v871
        %905 = vst [vmem:[%s903 + $0x8] sm:$0xff] %v885
        %906 = vst [vmem:[%s903 + $0x10] sm:$0xff] %v899
        %v907 = vrot.slane %v383, 7
        %v908 = vrot.slane %v389, 6
        %v909 = vsel %vm559, %v908, %v907
        %v910 = vrot.slane %v395, 5
        %v911 = vsel %vm562, %v910, %v909
        %v912 = vrot.slane %v401, 4
        %v913 = vsel %vm565, %v912, %v911
        %v914 = vrot.slane %v407, 3
        %v915 = vsel %vm568, %v914, %v913
        %v916 = vrot.slane %v413, 2
        %v917 = vsel %vm571, %v916, %v915
        %v918 = vrot.slane %v419, 1
        %v919 = vsel %vm574, %v918, %v917
        %v920 = vsel %vm577, %v425, %v919
        %v921 = vrot.slane %v385, 7
        %v922 = vrot.slane %v391, 6
        %v923 = vsel %vm559, %v922, %v921
        %v924 = vrot.slane %v397, 5
        %v925 = vsel %vm562, %v924, %v923
        %v926 = vrot.slane %v403, 4
        %v927 = vsel %vm565, %v926, %v925
        %v928 = vrot.slane %v409, 3
        %v929 = vsel %vm568, %v928, %v927
        %v930 = vrot.slane %v415, 2
        %v931 = vsel %vm571, %v930, %v929
        %v932 = vrot.slane %v421, 1
        %v933 = vsel %vm574, %v932, %v931
        %v934 = vsel %vm577, %v427, %v933
        %v935 = vrot.slane %v496, 7
        %v936 = vrot.slane %v501, 6
        %v937 = vsel %vm559, %v936, %v935
        %v938 = vrot.slane %v506, 5
        %v939 = vsel %vm562, %v938, %v937
        %v940 = vrot.slane %v511, 4
        %v941 = vsel %vm565, %v940, %v939
        %v942 = vrot.slane %v516, 3
        %v943 = vsel %vm568, %v942, %v941
        %v944 = vrot.slane %v521, 2
        %v945 = vsel %vm571, %v944, %v943
        %v946 = vrot.slane %v526, 1
        %v947 = vsel %vm574, %v946, %v945
        %v948 = vsel %vm577, %v531, %v947
        %s952 = scalar_lea.vmem [#allocation2], 168
        %953 = vst [vmem:[%s952] sm:$0xff] %v920
        %954 = vst [vmem:[%s952 + $0x8] sm:$0xff] %v934
        %955 = vst [vmem:[%s952 + $0x10] sm:$0xff] %v948
        %v956 = vld [vmem:[#allocation9] sm:$0xff]
        %v957 = vld [vmem:[#allocation9 + $0x8] sm:$0xff]
        %v958 = vld [vmem:[#allocation9 + $0x10] sm:$0xff]
        %v959 = vld [vmem:[#allocation9 + $0x18] sm:$0xff]
        %v960 = vld [vmem:[#allocation9 + $0x20] sm:$0xff]
        %v961 = vld [vmem:[#allocation9 + $0x28] sm:$0xff]
        %v962 = vld [vmem:[#allocation9 + $0x30] sm:$0xff]
        %v963 = vld [vmem:[#allocation9 + $0x38] sm:$0xff]
        %v964 = vld [vmem:[#allocation9 + $0x40] sm:$0xff]
        %v965 = vld [vmem:[#allocation9 + $0x48] sm:$0xff]
        %v966 = vld [vmem:[#allocation9 + $0x50] sm:$0xff]
        %v967 = vld [vmem:[#allocation9 + $0x58] sm:$0xff]
        %v968 = vld [vmem:[#allocation9 + $0x60] sm:$0xff]
        %v969 = vld [vmem:[#allocation9 + $0x68] sm:$0xff]
        %v970 = vld [vmem:[#allocation9 + $0x70] sm:$0xff]
        %v971 = vld [vmem:[#allocation9 + $0x78] sm:$0xff]
        %v972 = vld [vmem:[#allocation9 + $0x80] sm:$0xff]
        %v973 = vld [vmem:[#allocation9 + $0x88] sm:$0xff]
        %v974 = vld [vmem:[#allocation9 + $0x90] sm:$0xff]
        %v975 = vld [vmem:[#allocation9 + $0x98] sm:$0xff]
        %v976 = vld [vmem:[#allocation9 + $0xa0] sm:$0xff]
        %v977 = vld [vmem:[#allocation9 + $0xa8] sm:$0xff]
        %v978 = vld [vmem:[#allocation9 + $0xb0] sm:$0xff]
        %v979 = vld [vmem:[#allocation9 + $0xb8] sm:$0xff]
        %v980 = vld [vmem:[#allocation9 + $0xc0] sm:$0xff]
        %v981 = vld [vmem:[#allocation9 + $0xc8] sm:$0xff]
        %v982 = vld [vmem:[#allocation9 + $0xd0] sm:$0xff]
        %v983 = vld [vmem:[#allocation9 + $0xd8] sm:$0xff]
        %v984 = vld [vmem:[#allocation9 + $0xe0] sm:$0xff]
        %v985 = vld [vmem:[#allocation9 + $0xe8] sm:$0xff]
        %v986 = vld [vmem:[#allocation9 + $0xf0] sm:$0xff]
        %v987 = vld [vmem:[#allocation9 + $0xf8] sm:$0xff]
        %v988 = vld [vmem:[#allocation9 + $0x100] sm:$0xff]
        %v989 = vld [vmem:[#allocation9 + $0x108] sm:$0xff]
        %v990 = vld [vmem:[#allocation9 + $0x110] sm:$0xff]
        %v991 = vld [vmem:[#allocation9 + $0x118] sm:$0xff]
        %v992 = vld [vmem:[#allocation9 + $0x120] sm:$0xff]
        %v993 = vld [vmem:[#allocation9 + $0x128] sm:$0xff]
        %v994 = vld [vmem:[#allocation9 + $0x130] sm:$0xff]
        %v995 = vld [vmem:[#allocation9 + $0x138] sm:$0xff]
        %v996 = vld [vmem:[#allocation9 + $0x140] sm:$0xff]
        %v997 = vld [vmem:[#allocation9 + $0x148] sm:$0xff]
        %v998 = vld [vmem:[#allocation9 + $0x150] sm:$0xff]
        %v999 = vld [vmem:[#allocation9 + $0x158] sm:$0xff]
        %v1000 = vld [vmem:[#allocation9 + $0x160] sm:$0xff]
        %v1001 = vld [vmem:[#allocation9 + $0x168] sm:$0xff]
        %v1002 = vld [vmem:[#allocation9 + $0x170] sm:$0xff]
        %v1003 = vld [vmem:[#allocation9 + $0x178] sm:$0xff]
        %v1004 = vld [vmem:[%s3] sm:$0x1]
        %v1005 = vld [vmem:[#allocation3] sm:$0xff]
        %v1006 = vld [vmem:[#allocation2] sm:$0xff]
        %v1007 = vld [vmem:[#allocation2 + $0x8] sm:$0xff]
        %v1008 = vld [vmem:[#allocation2 + $0x10] sm:$0xff]
        %1009 = vmatprep.subr.mxu0 %v957
        %1010 = vmatpush1.msra.mxu0 %v956
        %1011 = vmatprep.subr.mxu0 %v960
        %1012 = vmatpush1.msra.mxu0 %v959
        %1013 = vmatprep.subr.mxu0 %v963
        %1014 = vmatpush1.msra.mxu0 %v962
        %1015 = vmatprep.subr.mxu0 %v966
        %1016 = vmatpush1.msra.mxu0 %v965
        %1017 = vmatprep.subr.mxu0 %v969
        %1018 = vmatpush1.msra.mxu0 %v968
        %1019 = vmatprep.subr.mxu0 %v972
        %1020 = vmatpush1.msra.mxu0 %v971
        %1021 = vmatprep.subr.mxu0 %v975
        %1022 = vmatpush1.msra.mxu0 %v974
        %1023 = vmatprep.subr.mxu0 %v978
        %1024 = vmatpush1.msra.mxu0 %v977
        %1025 = vmatprep.subr.mxu0 %v981
        %1026 = vmatpush1.msra.mxu0 %v980
        %1027 = vmatprep.subr.mxu0 %v984
        %1028 = vmatpush1.msra.mxu0 %v983
        %1029 = vmatprep.subr.mxu0 %v987
        %1030 = vmatpush1.msra.mxu0 %v986
        %1031 = vmatprep.subr.mxu0 %v990
        %1032 = vmatpush1.msra.mxu0 %v989
        %1033 = vmatprep.subr.mxu0 %v993
        %1034 = vmatpush1.msra.mxu0 %v992
        %1035 = vmatprep.subr.mxu0 %v996
        %1036 = vmatpush1.msra.mxu0 %v995
        %1037 = vmatprep.subr.mxu0 %v999
        %1038 = vmatpush1.msra.mxu0 %v998
        %1039 = vmatprep.subr.mxu0 %v1002
        %1040 = vmatpush1.msra.mxu0 %v1001
        %1041 = vmatprep.subr.mxu0 0.0
        %1042 = vmatpush1.msra.mxu0 0.0
        %1043 = vmatprep.subr.mxu0 0.0
        %1044 = vmatpush1.msra.mxu0 0.0
        %1045 = vmatprep.subr.mxu0 0.0
        %1046 = vmatpush1.msra.mxu0 0.0
        %1047 = vmatprep.subr.mxu0 0.0
        %1048 = vmatpush1.msra.mxu0 0.0
        %1049 = vmatprep.subr.mxu0 0.0
        %1050 = vmatpush1.msra.mxu0 0.0
        %1051 = vmatprep.subr.mxu0 0.0
        %1052 = vmatpush1.msra.mxu0 0.0
        %1053 = vmatprep.subr.mxu0 0.0
        %1054 = vmatpush1.msra.mxu0 0.0
        %1055 = vmatprep.subr.mxu0 0.0
        %1056 = vmatpush1.msra.mxu0 0.0
        %1057 = vmatprep.subr.mxu0 0.0
        %1058 = vmatpush1.msra.mxu0 0.0
        %1059 = vmatprep.subr.mxu0 0.0
        %1060 = vmatpush1.msra.mxu0 0.0
        %1061 = vmatprep.subr.mxu0 0.0
        %1062 = vmatpush1.msra.mxu0 0.0
        %1063 = vmatprep.subr.mxu0 0.0
        %1064 = vmatpush1.msra.mxu0 0.0
        %1065 = vmatprep.subr.mxu0 0.0
        %1066 = vmatpush1.msra.mxu0 0.0
        %1067 = vmatprep.subr.mxu0 0.0
        %1068 = vmatpush1.msra.mxu0 0.0
        %1069 = vmatprep.subr.mxu0 0.0
        %1070 = vmatpush1.msra.mxu0 0.0
        %1071 = vmatprep.subr.mxu0 0.0
        %1072 = vmatpush1.msra.mxu0 0.0
        %1073 = vmatprep.mubr.f32.mxu0 0.0
        %1074 = vmatmul.mubr.f32.gmra.mrb[0].mxu0 %v1005
        %v1075 = vpop.f32.mrb[0].mxu0
        %v1076 = vadd.f32 0.0, %v1075
        %v1077 = vpop.f32.mrb[0].mxu0
        %v1078 = vadd.f32 0.0, %v1077
        %1079 = vdwg.mxu0
        %1080 = vmatprep.subr.mxu0 0.0
        %1081 = vmatpush1.msra.mxu0 %v958
        %1082 = vmatprep.subr.mxu0 0.0
        %1083 = vmatpush1.msra.mxu0 %v961
        %1084 = vmatprep.subr.mxu0 0.0
        %1085 = vmatpush1.msra.mxu0 %v964
        %1086 = vmatprep.subr.mxu0 0.0
        %1087 = vmatpush1.msra.mxu0 %v967
        %1088 = vmatprep.subr.mxu0 0.0
        %1089 = vmatpush1.msra.mxu0 %v970
        %1090 = vmatprep.subr.mxu0 0.0
        %1091 = vmatpush1.msra.mxu0 %v973
        %1092 = vmatprep.subr.mxu0 0.0
        %1093 = vmatpush1.msra.mxu0 %v976
        %1094 = vmatprep.subr.mxu0 0.0
        %1095 = vmatpush1.msra.mxu0 %v979
        %1096 = vmatprep.subr.mxu0 0.0
        %1097 = vmatpush1.msra.mxu0 %v982
        %1098 = vmatprep.subr.mxu0 0.0
        %1099 = vmatpush1.msra.mxu0 %v985
        %1100 = vmatprep.subr.mxu0 0.0
        %1101 = vmatpush1.msra.mxu0 %v988
        %1102 = vmatprep.subr.mxu0 0.0
        %1103 = vmatpush1.msra.mxu0 %v991
        %1104 = vmatprep.subr.mxu0 0.0
        %1105 = vmatpush1.msra.mxu0 %v994
        %1106 = vmatprep.subr.mxu0 0.0
        %1107 = vmatpush1.msra.mxu0 %v997
        %1108 = vmatprep.subr.mxu0 0.0
        %1109 = vmatpush1.msra.mxu0 %v1000
        %1110 = vmatprep.subr.mxu0 0.0
        %1111 = vmatpush1.msra.mxu0 %v1003
        %1112 = vmatprep.subr.mxu0 0.0
        %1113 = vmatpush1.msra.mxu0 0.0
        %1114 = vmatprep.subr.mxu0 0.0
        %1115 = vmatpush1.msra.mxu0 0.0
        %1116 = vmatprep.subr.mxu0 0.0
        %1117 = vmatpush1.msra.mxu0 0.0
        %1118 = vmatprep.subr.mxu0 0.0
        %1119 = vmatpush1.msra.mxu0 0.0
        %1120 = vmatprep.subr.mxu0 0.0
        %1121 = vmatpush1.msra.mxu0 0.0
        %1122 = vmatprep.subr.mxu0 0.0
        %1123 = vmatpush1.msra.mxu0 0.0
        %1124 = vmatprep.subr.mxu0 0.0
        %1125 = vmatpush1.msra.mxu0 0.0
        %1126 = vmatprep.subr.mxu0 0.0
        %1127 = vmatpush1.msra.mxu0 0.0
        %1128 = vmatprep.subr.mxu0 0.0
        %1129 = vmatpush1.msra.mxu0 0.0
        %1130 = vmatprep.subr.mxu0 0.0
        %1131 = vmatpush1.msra.mxu0 0.0
        %1132 = vmatprep.subr.mxu0 0.0
        %1133 = vmatpush1.msra.mxu0 0.0
        %1134 = vmatprep.subr.mxu0 0.0
        %1135 = vmatpush1.msra.mxu0 0.0
        %1136 = vmatprep.subr.mxu0 0.0
        %1137 = vmatpush1.msra.mxu0 0.0
        %1138 = vmatprep.subr.mxu0 0.0
        %1139 = vmatpush1.msra.mxu0 0.0
        %1140 = vmatprep.subr.mxu0 0.0
        %1141 = vmatpush1.msra.mxu0 0.0
        %1142 = vmatprep.subr.mxu0 0.0
        %1143 = vmatpush1.msra.mxu0 0.0
        %1144 = vmatprep.mubr.f32.mxu0 0.0
        %1145 = vmatmul.mubr.f32.gmra.mrb[0].mxu0 %v1005
        %v1146 = vpop.f32.mrb[0].mxu0
        %v1147 = vadd.f32 0.0, %v1146
        %v1148 = vpop.f32.mrb[0].mxu0
        %1149 = vdwg.mxu0
        %v1150 = vadd.f32 %v1006, %v1076
        %v1151 = vxor.u32 %v1150, 2147483648
        %v1152 = vmul.f32 %v1151, 1.442695
        %v1153 = vpow.pop %v1152
        %v1154 = vadd.f32 %v1153, 1.0
        %v1155 = vrcp.pop %v1154
        %v1156 = vmul.f32 1.0, %v1155
        %v1157 = vadd.f32 %v1007, %v1078
        %v1158 = vxor.u32 %v1157, 2147483648
        %v1159 = vmul.f32 %v1158, 1.442695
        %v1160 = vpow.pop %v1159
        %v1161 = vadd.f32 %v1160, 1.0
        %v1162 = vrcp.pop %v1161
        %v1163 = vmul.f32 1.0, %v1162
        %v1165 = vlaneseq
        %v1166 = vshrl.u32 %v1165, 7
        %v1167 = vsub.s32 0, %v1166
        %v1168 = vrot.slane %v1004, %v1167
        %v1170 = vadd.f32 %v1147, %v1168
        %v1171 = vmul.f32 %v1156, %v1170
        %v1172 = vadd.f32 %v1008, %v1171
        %v1173 = vtanh.pop %v1172
        %v1174 = vsub.f32 %v1005, %v1173
        %v1175 = vmul.f32 %v1163, %v1174
        %v1176 = vadd.f32 %v1173, %v1175
        %v1177 = vld [vmem:[%s658] sm:$0xff]
        %v1178 = vld [vmem:[%s658 + $0x8] sm:$0xff]
        %v1179 = vld [vmem:[%s658 + $0x10] sm:$0xff]
        %1180 = vmatprep.subr.mxu0 %v957
        %1181 = vmatpush1.msra.mxu0 %v956
        %1182 = vmatprep.subr.mxu0 %v960
        %1183 = vmatpush1.msra.mxu0 %v959
        %1184 = vmatprep.subr.mxu0 %v963
        %1185 = vmatpush1.msra.mxu0 %v962
        %1186 = vmatprep.subr.mxu0 %v966
        %1187 = vmatpush1.msra.mxu0 %v965
        %1188 = vmatprep.subr.mxu0 %v969
        %1189 = vmatpush1.msra.mxu0 %v968
        %1190 = vmatprep.subr.mxu0 %v972
        %1191 = vmatpush1.msra.mxu0 %v971
        %1192 = vmatprep.subr.mxu0 %v975
        %1193 = vmatpush1.msra.mxu0 %v974
        %1194 = vmatprep.subr.mxu0 %v978
        %1195 = vmatpush1.msra.mxu0 %v977
        %1196 = vmatprep.subr.mxu0 %v981
        %1197 = vmatpush1.msra.mxu0 %v980
        %1198 = vmatprep.subr.mxu0 %v984
        %1199 = vmatpush1.msra.mxu0 %v983
        %1200 = vmatprep.subr.mxu0 %v987
        %1201 = vmatpush1.msra.mxu0 %v986
        %1202 = vmatprep.subr.mxu0 %v990
        %1203 = vmatpush1.msra.mxu0 %v989
        %1204 = vmatprep.subr.mxu0 %v993
        %1205 = vmatpush1.msra.mxu0 %v992
        %1206 = vmatprep.subr.mxu0 %v996
        %1207 = vmatpush1.msra.mxu0 %v995
        %1208 = vmatprep.subr.mxu0 %v999
        %1209 = vmatpush1.msra.mxu0 %v998
        %1210 = vmatprep.subr.mxu0 %v1002
        %1211 = vmatpush1.msra.mxu0 %v1001
        %1212 = vmatprep.subr.mxu0 0.0
        %1213 = vmatpush1.msra.mxu0 0.0
        %1214 = vmatprep.subr.mxu0 0.0
        %1215 = vmatpush1.msra.mxu0 0.0
        %1216 = vmatprep.subr.mxu0 0.0
        %1217 = vmatpush1.msra.mxu0 0.0
        %1218 = vmatprep.subr.mxu0 0.0
        %1219 = vmatpush1.msra.mxu0 0.0
        %1220 = vmatprep.subr.mxu0 0.0
        %1221 = vmatpush1.msra.mxu0 0.0
        %1222 = vmatprep.subr.mxu0 0.0
        %1223 = vmatpush1.msra.mxu0 0.0
        %1224 = vmatprep.subr.mxu0 0.0
        %1225 = vmatpush1.msra.mxu0 0.0
        %1226 = vmatprep.subr.mxu0 0.0
        %1227 = vmatpush1.msra.mxu0 0.0
        %1228 = vmatprep.subr.mxu0 0.0
        %1229 = vmatpush1.msra.mxu0 0.0
        %1230 = vmatprep.subr.mxu0 0.0
        %1231 = vmatpush1.msra.mxu0 0.0
        %1232 = vmatprep.subr.mxu0 0.0
        %1233 = vmatpush1.msra.mxu0 0.0
        %1234 = vmatprep.subr.mxu0 0.0
        %1235 = vmatpush1.msra.mxu0 0.0
        %1236 = vmatprep.subr.mxu0 0.0
        %1237 = vmatpush1.msra.mxu0 0.0
        %1238 = vmatprep.subr.mxu0 0.0
        %1239 = vmatpush1.msra.mxu0 0.0
        %1240 = vmatprep.subr.mxu0 0.0
        %1241 = vmatpush1.msra.mxu0 0.0
        %1242 = vmatprep.subr.mxu0 0.0
        %1243 = vmatpush1.msra.mxu0 0.0
        %1244 = vmatprep.mubr.f32.mxu0 0.0
        %1245 = vmatmul.mubr.f32.gmra.mrb[0].mxu0 %v1176
        %v1246 = vpop.f32.mrb[0].mxu0
        %v1247 = vadd.f32 0.0, %v1246
        %v1248 = vpop.f32.mrb[0].mxu0
        %v1249 = vadd.f32 0.0, %v1248
        %1250 = vdwg.mxu0
        %1251 = vmatprep.subr.mxu0 0.0
        %1252 = vmatpush1.msra.mxu0 %v958
        %1253 = vmatprep.subr.mxu0 0.0
        %1254 = vmatpush1.msra.mxu0 %v961
        %1255 = vmatprep.subr.mxu0 0.0
        %1256 = vmatpush1.msra.mxu0 %v964
        %1257 = vmatprep.subr.mxu0 0.0
        %1258 = vmatpush1.msra.mxu0 %v967
        %1259 = vmatprep.subr.mxu0 0.0
        %1260 = vmatpush1.msra.mxu0 %v970
        %1261 = vmatprep.subr.mxu0 0.0
        %1262 = vmatpush1.msra.mxu0 %v973
        %1263 = vmatprep.subr.mxu0 0.0
        %1264 = vmatpush1.msra.mxu0 %v976
        %1265 = vmatprep.subr.mxu0 0.0
        %1266 = vmatpush1.msra.mxu0 %v979
        %1267 = vmatprep.subr.mxu0 0.0
        %1268 = vmatpush1.msra.mxu0 %v982
        %1269 = vmatprep.subr.mxu0 0.0
        %1270 = vmatpush1.msra.mxu0 %v985
        %1271 = vmatprep.subr.mxu0 0.0
        %1272 = vmatpush1.msra.mxu0 %v988
        %1273 = vmatprep.subr.mxu0 0.0
        %1274 = vmatpush1.msra.mxu0 %v991
        %1275 = vmatprep.subr.mxu0 0.0
        %1276 = vmatpush1.msra.mxu0 %v994
        %1277 = vmatprep.subr.mxu0 0.0
        %1278 = vmatpush1.msra.mxu0 %v997
        %1279 = vmatprep.subr.mxu0 0.0
        %1280 = vmatpush1.msra.mxu0 %v1000
        %1281 = vmatprep.subr.mxu0 0.0
        %1282 = vmatpush1.msra.mxu0 %v1003
        %1283 = vmatprep.subr.mxu0 0.0
        %1284 = vmatpush1.msra.mxu0 0.0
        %1285 = vmatprep.subr.mxu0 0.0
        %1286 = vmatpush1.msra.mxu0 0.0
        %1287 = vmatprep.subr.mxu0 0.0
        %1288 = vmatpush1.msra.mxu0 0.0
        %1289 = vmatprep.subr.mxu0 0.0
        %1290 = vmatpush1.msra.mxu0 0.0
        %1291 = vmatprep.subr.mxu0 0.0
        %1292 = vmatpush1.msra.mxu0 0.0
        %1293 = vmatprep.subr.mxu0 0.0
        %1294 = vmatpush1.msra.mxu0 0.0
        %1295 = vmatprep.subr.mxu0 0.0
        %1296 = vmatpush1.msra.mxu0 0.0
        %1297 = vmatprep.subr.mxu0 0.0
        %1298 = vmatpush1.msra.mxu0 0.0
        %1299 = vmatprep.subr.mxu0 0.0
        %1300 = vmatpush1.msra.mxu0 0.0
        %1301 = vmatprep.subr.mxu0 0.0
        %1302 = vmatpush1.msra.mxu0 0.0
        %1303 = vmatprep.subr.mxu0 0.0
        %1304 = vmatpush1.msra.mxu0 0.0
        %1305 = vmatprep.subr.mxu0 0.0
        %1306 = vmatpush1.msra.mxu0 0.0
        %1307 = vmatprep.subr.mxu0 0.0
        %1308 = vmatpush1.msra.mxu0 0.0
        %1309 = vmatprep.subr.mxu0 0.0
        %1310 = vmatpush1.msra.mxu0 0.0
        %1311 = vmatprep.subr.mxu0 0.0
        %1312 = vmatpush1.msra.mxu0 0.0
        %1313 = vmatprep.subr.mxu0 0.0
        %1314 = vmatpush1.msra.mxu0 0.0
        %1315 = vmatprep.mubr.f32.mxu0 0.0
        %1316 = vmatmul.mubr.f32.gmra.mrb[0].mxu0 %v1176
        %v1317 = vpop.f32.mrb[0].mxu0
        %v1318 = vadd.f32 0.0, %v1317
        %v1319 = vpop.f32.mrb[0].mxu0
        %1320 = vdwg.mxu0
        %v1321 = vadd.f32 %v1177, %v1247
        %v1322 = vxor.u32 %v1321, 2147483648
        %v1323 = vmul.f32 %v1322, 1.442695
        %v1324 = vpow.pop %v1323
        %v1325 = vadd.f32 %v1324, 1.0
        %v1326 = vrcp.pop %v1325
        %v1327 = vmul.f32 1.0, %v1326
        %v1328 = vadd.f32 %v1178, %v1249
        %v1329 = vxor.u32 %v1328, 2147483648
        %v1330 = vmul.f32 %v1329, 1.442695
        %v1331 = vpow.pop %v1330
        %v1332 = vadd.f32 %v1331, 1.0
        %v1333 = vrcp.pop %v1332
        %v1334 = vmul.f32 1.0, %v1333
        %v1335 = vadd.f32 %v1318, %v1168
        %v1336 = vmul.f32 %v1327, %v1335
        %v1337 = vadd.f32 %v1179, %v1336
        %v1338 = vtanh.pop %v1337
        %v1339 = vsub.f32 %v1176, %v1338
        %v1340 = vmul.f32 %v1334, %v1339
        %v1341 = vadd.f32 %v1338, %v1340
        %v1342 = vld [vmem:[%s707] sm:$0xff]
        %v1343 = vld [vmem:[%s707 + $0x8] sm:$0xff]
        %v1344 = vld [vmem:[%s707 + $0x10] sm:$0xff]
        %1345 = vmatprep.subr.mxu0 %v957
        %1346 = vmatpush1.msra.mxu0 %v956
        %1347 = vmatprep.subr.mxu0 %v960
        %1348 = vmatpush1.msra.mxu0 %v959
        %1349 = vmatprep.subr.mxu0 %v963
        %1350 = vmatpush1.msra.mxu0 %v962
        %1351 = vmatprep.subr.mxu0 %v966
        %1352 = vmatpush1.msra.mxu0 %v965
        %1353 = vmatprep.subr.mxu0 %v969
        %1354 = vmatpush1.msra.mxu0 %v968
        %1355 = vmatprep.subr.mxu0 %v972
        %1356 = vmatpush1.msra.mxu0 %v971
        %1357 = vmatprep.subr.mxu0 %v975
        %1358 = vmatpush1.msra.mxu0 %v974
        %1359 = vmatprep.subr.mxu0 %v978
        %1360 = vmatpush1.msra.mxu0 %v977
        %1361 = vmatprep.subr.mxu0 %v981
        %1362 = vmatpush1.msra.mxu0 %v980
        %1363 = vmatprep.subr.mxu0 %v984
        %1364 = vmatpush1.msra.mxu0 %v983
        %1365 = vmatprep.subr.mxu0 %v987
        %1366 = vmatpush1.msra.mxu0 %v986
        %1367 = vmatprep.subr.mxu0 %v990
        %1368 = vmatpush1.msra.mxu0 %v989
        %1369 = vmatprep.subr.mxu0 %v993
        %1370 = vmatpush1.msra.mxu0 %v992
        %1371 = vmatprep.subr.mxu0 %v996
        %1372 = vmatpush1.msra.mxu0 %v995
        %1373 = vmatprep.subr.mxu0 %v999
        %1374 = vmatpush1.msra.mxu0 %v998
        %1375 = vmatprep.subr.mxu0 %v1002
        %1376 = vmatpush1.msra.mxu0 %v1001
        %1377 = vmatprep.subr.mxu0 0.0
        %1378 = vmatpush1.msra.mxu0 0.0
        %1379 = vmatprep.subr.mxu0 0.0
        %1380 = vmatpush1.msra.mxu0 0.0
        %1381 = vmatprep.subr.mxu0 0.0
        %1382 = vmatpush1.msra.mxu0 0.0
        %1383 = vmatprep.subr.mxu0 0.0
        %1384 = vmatpush1.msra.mxu0 0.0
        %1385 = vmatprep.subr.mxu0 0.0
        %1386 = vmatpush1.msra.mxu0 0.0
        %1387 = vmatprep.subr.mxu0 0.0
        %1388 = vmatpush1.msra.mxu0 0.0
        %1389 = vmatprep.subr.mxu0 0.0
        %1390 = vmatpush1.msra.mxu0 0.0
        %1391 = vmatprep.subr.mxu0 0.0
        %1392 = vmatpush1.msra.mxu0 0.0
        %1393 = vmatprep.subr.mxu0 0.0
        %1394 = vmatpush1.msra.mxu0 0.0
        %1395 = vmatprep.subr.mxu0 0.0
        %1396 = vmatpush1.msra.mxu0 0.0
        %1397 = vmatprep.subr.mxu0 0.0
        %1398 = vmatpush1.msra.mxu0 0.0
        %1399 = vmatprep.subr.mxu0 0.0
        %1400 = vmatpush1.msra.mxu0 0.0
        %1401 = vmatprep.subr.mxu0 0.0
        %1402 = vmatpush1.msra.mxu0 0.0
        %1403 = vmatprep.subr.mxu0 0.0
        %1404 = vmatpush1.msra.mxu0 0.0
        %1405 = vmatprep.subr.mxu0 0.0
        %1406 = vmatpush1.msra.mxu0 0.0
        %1407 = vmatprep.subr.mxu0 0.0
        %1408 = vmatpush1.msra.mxu0 0.0
        %1409 = vmatprep.mubr.f32.mxu0 0.0
        %1410 = vmatmul.mubr.f32.gmra.mrb[0].mxu0 %v1341
        %v1411 = vpop.f32.mrb[0].mxu0
        %v1412 = vadd.f32 0.0, %v1411
        %v1413 = vpop.f32.mrb[0].mxu0
        %v1414 = vadd.f32 0.0, %v1413
        %1415 = vdwg.mxu0
        %1416 = vmatprep.subr.mxu0 0.0
        %1417 = vmatpush1.msra.mxu0 %v958
        %1418 = vmatprep.subr.mxu0 0.0
        %1419 = vmatpush1.msra.mxu0 %v961
        %1420 = vmatprep.subr.mxu0 0.0
        %1421 = vmatpush1.msra.mxu0 %v964
        %1422 = vmatprep.subr.mxu0 0.0
        %1423 = vmatpush1.msra.mxu0 %v967
        %1424 = vmatprep.subr.mxu0 0.0
        %1425 = vmatpush1.msra.mxu0 %v970
        %1426 = vmatprep.subr.mxu0 0.0
        %1427 = vmatpush1.msra.mxu0 %v973
        %1428 = vmatprep.subr.mxu0 0.0
        %1429 = vmatpush1.msra.mxu0 %v976
        %1430 = vmatprep.subr.mxu0 0.0
        %1431 = vmatpush1.msra.mxu0 %v979
        %1432 = vmatprep.subr.mxu0 0.0
        %1433 = vmatpush1.msra.mxu0 %v982
        %1434 = vmatprep.subr.mxu0 0.0
        %1435 = vmatpush1.msra.mxu0 %v985
        %1436 = vmatprep.subr.mxu0 0.0
        %1437 = vmatpush1.msra.mxu0 %v988
        %1438 = vmatprep.subr.mxu0 0.0
        %1439 = vmatpush1.msra.mxu0 %v991
        %1440 = vmatprep.subr.mxu0 0.0
        %1441 = vmatpush1.msra.mxu0 %v994
        %1442 = vmatprep.subr.mxu0 0.0
        %1443 = vmatpush1.msra.mxu0 %v997
        %1444 = vmatprep.subr.mxu0 0.0
        %1445 = vmatpush1.msra.mxu0 %v1000
        %1446 = vmatprep.subr.mxu0 0.0
        %1447 = vmatpush1.msra.mxu0 %v1003
        %1448 = vmatprep.subr.mxu0 0.0
        %1449 = vmatpush1.msra.mxu0 0.0
        %1450 = vmatprep.subr.mxu0 0.0
        %1451 = vmatpush1.msra.mxu0 0.0
        %1452 = vmatprep.subr.mxu0 0.0
        %1453 = vmatpush1.msra.mxu0 0.0
        %1454 = vmatprep.subr.mxu0 0.0
        %1455 = vmatpush1.msra.mxu0 0.0
        %1456 = vmatprep.subr.mxu0 0.0
        %1457 = vmatpush1.msra.mxu0 0.0
        %1458 = vmatprep.subr.mxu0 0.0
        %1459 = vmatpush1.msra.mxu0 0.0
        %1460 = vmatprep.subr.mxu0 0.0
        %1461 = vmatpush1.msra.mxu0 0.0
        %1462 = vmatprep.subr.mxu0 0.0
        %1463 = vmatpush1.msra.mxu0 0.0
        %1464 = vmatprep.subr.mxu0 0.0
        %1465 = vmatpush1.msra.mxu0 0.0
        %1466 = vmatprep.subr.mxu0 0.0
        %1467 = vmatpush1.msra.mxu0 0.0
        %1468 = vmatprep.subr.mxu0 0.0
        %1469 = vmatpush1.msra.mxu0 0.0
        %1470 = vmatprep.subr.mxu0 0.0
        %1471 = vmatpush1.msra.mxu0 0.0
        %1472 = vmatprep.subr.mxu0 0.0
        %1473 = vmatpush1.msra.mxu0 0.0
        %1474 = vmatprep.subr.mxu0 0.0
        %1475 = vmatpush1.msra.mxu0 0.0
        %1476 = vmatprep.subr.mxu0 0.0
        %1477 = vmatpush1.msra.mxu0 0.0
        %1478 = vmatprep.subr.mxu0 0.0
        %1479 = vmatpush1.msra.mxu0 0.0
        %1480 = vmatprep.mubr.f32.mxu0 0.0
        %1481 = vmatmul.mubr.f32.gmra.mrb[0].mxu0 %v1341
        %v1482 = vpop.f32.mrb[0].mxu0
        %v1483 = vadd.f32 0.0, %v1482
        %v1484 = vpop.f32.mrb[0].mxu0
        %1485 = vdwg.mxu0
        %v1486 = vadd.f32 %v1342, %v1412
        %v1487 = vxor.u32 %v1486, 2147483648
        %v1488 = vmul.f32 %v1487, 1.442695
        %v1489 = vpow.pop %v1488
        %v1490 = vadd.f32 %v1489, 1.0
        %v1491 = vrcp.pop %v1490
        %v1492 = vmul.f32 1.0, %v1491
        %v1493 = vadd.f32 %v1343, %v1414
        %v1494 = vxor.u32 %v1493, 2147483648
        %v1495 = vmul.f32 %v1494, 1.442695
        %v1496 = vpow.pop %v1495
        %v1497 = vadd.f32 %v1496, 1.0
        %v1498 = vrcp.pop %v1497
        %v1499 = vmul.f32 1.0, %v1498
        %v1500 = vadd.f32 %v1483, %v1168
        %v1501 = vmul.f32 %v1492, %v1500
        %v1502 = vadd.f32 %v1344, %v1501
        %v1503 = vtanh.pop %v1502
        %v1504 = vsub.f32 %v1341, %v1503
        %v1505 = vmul.f32 %v1499, %v1504
        %v1506 = vadd.f32 %v1503, %v1505
        %v1507 = vld [vmem:[%s756] sm:$0xff]
        %v1508 = vld [vmem:[%s756 + $0x8] sm:$0xff]
        %v1509 = vld [vmem:[%s756 + $0x10] sm:$0xff]
        %1510 = vmatprep.subr.mxu0 %v957
        %1511 = vmatpush1.msra.mxu0 %v956
        %1512 = vmatprep.subr.mxu0 %v960
        %1513 = vmatpush1.msra.mxu0 %v959
        %1514 = vmatprep.subr.mxu0 %v963
        %1515 = vmatpush1.msra.mxu0 %v962
        %1516 = vmatprep.subr.mxu0 %v966
        %1517 = vmatpush1.msra.mxu0 %v965
        %1518 = vmatprep.subr.mxu0 %v969
        %1519 = vmatpush1.msra.mxu0 %v968
        %1520 = vmatprep.subr.mxu0 %v972
        %1521 = vmatpush1.msra.mxu0 %v971
        %1522 = vmatprep.subr.mxu0 %v975
        %1523 = vmatpush1.msra.mxu0 %v974
        %1524 = vmatprep.subr.mxu0 %v978
        %1525 = vmatpush1.msra.mxu0 %v977
        %1526 = vmatprep.subr.mxu0 %v981
        %1527 = vmatpush1.msra.mxu0 %v980
        %1528 = vmatprep.subr.mxu0 %v984
        %1529 = vmatpush1.msra.mxu0 %v983
        %1530 = vmatprep.subr.mxu0 %v987
        %1531 = vmatpush1.msra.mxu0 %v986
        %1532 = vmatprep.subr.mxu0 %v990
        %1533 = vmatpush1.msra.mxu0 %v989
        %1534 = vmatprep.subr.mxu0 %v993
        %1535 = vmatpush1.msra.mxu0 %v992
        %1536 = vmatprep.subr.mxu0 %v996
        %1537 = vmatpush1.msra.mxu0 %v995
        %1538 = vmatprep.subr.mxu0 %v999
        %1539 = vmatpush1.msra.mxu0 %v998
        %1540 = vmatprep.subr.mxu0 %v1002
        %1541 = vmatpush1.msra.mxu0 %v1001
        %1542 = vmatprep.subr.mxu0 0.0
        %1543 = vmatpush1.msra.mxu0 0.0
        %1544 = vmatprep.subr.mxu0 0.0
        %1545 = vmatpush1.msra.mxu0 0.0
        %1546 = vmatprep.subr.mxu0 0.0
        %1547 = vmatpush1.msra.mxu0 0.0
        %1548 = vmatprep.subr.mxu0 0.0
        %1549 = vmatpush1.msra.mxu0 0.0
        %1550 = vmatprep.subr.mxu0 0.0
        %1551 = vmatpush1.msra.mxu0 0.0
        %1552 = vmatprep.subr.mxu0 0.0
        %1553 = vmatpush1.msra.mxu0 0.0
        %1554 = vmatprep.subr.mxu0 0.0
        %1555 = vmatpush1.msra.mxu0 0.0
        %1556 = vmatprep.subr.mxu0 0.0
        %1557 = vmatpush1.msra.mxu0 0.0
        %1558 = vmatprep.subr.mxu0 0.0
        %1559 = vmatpush1.msra.mxu0 0.0
        %1560 = vmatprep.subr.mxu0 0.0
        %1561 = vmatpush1.msra.mxu0 0.0
        %1562 = vmatprep.subr.mxu0 0.0
        %1563 = vmatpush1.msra.mxu0 0.0
        %1564 = vmatprep.subr.mxu0 0.0
        %1565 = vmatpush1.msra.mxu0 0.0
        %1566 = vmatprep.subr.mxu0 0.0
        %1567 = vmatpush1.msra.mxu0 0.0
        %1568 = vmatprep.subr.mxu0 0.0
        %1569 = vmatpush1.msra.mxu0 0.0
        %1570 = vmatprep.subr.mxu0 0.0
        %1571 = vmatpush1.msra.mxu0 0.0
        %1572 = vmatprep.subr.mxu0 0.0
        %1573 = vmatpush1.msra.mxu0 0.0
        %1574 = vmatprep.mubr.f32.mxu0 0.0
        %1575 = vmatmul.mubr.f32.gmra.mrb[0].mxu0 %v1506
        %v1576 = vpop.f32.mrb[0].mxu0
        %v1577 = vadd.f32 0.0, %v1576
        %v1578 = vpop.f32.mrb[0].mxu0
        %v1579 = vadd.f32 0.0, %v1578
        %1580 = vdwg.mxu0
        %1581 = vmatprep.subr.mxu0 0.0
        %1582 = vmatpush1.msra.mxu0 %v958
        %1583 = vmatprep.subr.mxu0 0.0
        %1584 = vmatpush1.msra.mxu0 %v961
        %1585 = vmatprep.subr.mxu0 0.0
        %1586 = vmatpush1.msra.mxu0 %v964
        %1587 = vmatprep.subr.mxu0 0.0
        %1588 = vmatpush1.msra.mxu0 %v967
        %1589 = vmatprep.subr.mxu0 0.0
        %1590 = vmatpush1.msra.mxu0 %v970
        %1591 = vmatprep.subr.mxu0 0.0
        %1592 = vmatpush1.msra.mxu0 %v973
        %1593 = vmatprep.subr.mxu0 0.0
        %1594 = vmatpush1.msra.mxu0 %v976
        %1595 = vmatprep.subr.mxu0 0.0
        %1596 = vmatpush1.msra.mxu0 %v979
        %1597 = vmatprep.subr.mxu0 0.0
        %1598 = vmatpush1.msra.mxu0 %v982
        %1599 = vmatprep.subr.mxu0 0.0
        %1600 = vmatpush1.msra.mxu0 %v985
        %1601 = vmatprep.subr.mxu0 0.0
        %1602 = vmatpush1.msra.mxu0 %v988
        %1603 = vmatprep.subr.mxu0 0.0
        %1604 = vmatpush1.msra.mxu0 %v991
        %1605 = vmatprep.subr.mxu0 0.0
        %1606 = vmatpush1.msra.mxu0 %v994
        %1607 = vmatprep.subr.mxu0 0.0
        %1608 = vmatpush1.msra.mxu0 %v997
        %1609 = vmatprep.subr.mxu0 0.0
        %1610 = vmatpush1.msra.mxu0 %v1000
        %1611 = vmatprep.subr.mxu0 0.0
        %1612 = vmatpush1.msra.mxu0 %v1003
        %1613 = vmatprep.subr.mxu0 0.0
        %1614 = vmatpush1.msra.mxu0 0.0
        %1615 = vmatprep.subr.mxu0 0.0
        %1616 = vmatpush1.msra.mxu0 0.0
        %1617 = vmatprep.subr.mxu0 0.0
        %1618 = vmatpush1.msra.mxu0 0.0
        %1619 = vmatprep.subr.mxu0 0.0
        %1620 = vmatpush1.msra.mxu0 0.0
        %1621 = vmatprep.subr.mxu0 0.0
        %1622 = vmatpush1.msra.mxu0 0.0
        %1623 = vmatprep.subr.mxu0 0.0
        %1624 = vmatpush1.msra.mxu0 0.0
        %1625 = vmatprep.subr.mxu0 0.0
        %1626 = vmatpush1.msra.mxu0 0.0
        %1627 = vmatprep.subr.mxu0 0.0
        %1628 = vmatpush1.msra.mxu0 0.0
        %1629 = vmatprep.subr.mxu0 0.0
        %1630 = vmatpush1.msra.mxu0 0.0
        %1631 = vmatprep.subr.mxu0 0.0
        %1632 = vmatpush1.msra.mxu0 0.0
        %1633 = vmatprep.subr.mxu0 0.0
        %1634 = vmatpush1.msra.mxu0 0.0
        %1635 = vmatprep.subr.mxu0 0.0
        %1636 = vmatpush1.msra.mxu0 0.0
        %1637 = vmatprep.subr.mxu0 0.0
        %1638 = vmatpush1.msra.mxu0 0.0
        %1639 = vmatprep.subr.mxu0 0.0
        %1640 = vmatpush1.msra.mxu0 0.0
        %1641 = vmatprep.subr.mxu0 0.0
        %1642 = vmatpush1.msra.mxu0 0.0
        %1643 = vmatprep.subr.mxu0 0.0
        %1644 = vmatpush1.msra.mxu0 0.0
        %1645 = vmatprep.mubr.f32.mxu0 0.0
        %1646 = vmatmul.mubr.f32.gmra.mrb[0].mxu0 %v1506
        %v1647 = vpop.f32.mrb[0].mxu0
        %v1648 = vadd.f32 0.0, %v1647
        %v1649 = vpop.f32.mrb[0].mxu0
        %1650 = vdwg.mxu0
        %v1651 = vadd.f32 %v1507, %v1577
        %v1652 = vxor.u32 %v1651, 2147483648
        %v1653 = vmul.f32 %v1652, 1.442695
        %v1654 = vpow.pop %v1653
        %v1655 = vadd.f32 %v1654, 1.0
        %v1656 = vrcp.pop %v1655
        %v1657 = vmul.f32 1.0, %v1656
        %v1658 = vadd.f32 %v1508, %v1579
        %v1659 = vxor.u32 %v1658, 2147483648
        %v1660 = vmul.f32 %v1659, 1.442695
        %v1661 = vpow.pop %v1660
        %v1662 = vadd.f32 %v1661, 1.0
        %v1663 = vrcp.pop %v1662
        %v1664 = vmul.f32 1.0, %v1663
        %v1665 = vadd.f32 %v1648, %v1168
        %v1666 = vmul.f32 %v1657, %v1665
        %v1667 = vadd.f32 %v1509, %v1666
        %v1668 = vtanh.pop %v1667
        %v1669 = vsub.f32 %v1506, %v1668
        %v1670 = vmul.f32 %v1664, %v1669
        %v1671 = vadd.f32 %v1668, %v1670
        %v1672 = vld [vmem:[%s805] sm:$0xff]
        %v1673 = vld [vmem:[%s805 + $0x8] sm:$0xff]
        %v1674 = vld [vmem:[%s805 + $0x10] sm:$0xff]
        %1675 = vmatprep.subr.mxu0 %v957
        %1676 = vmatpush1.msra.mxu0 %v956
        %1677 = vmatprep.subr.mxu0 %v960
        %1678 = vmatpush1.msra.mxu0 %v959
        %1679 = vmatprep.subr.mxu0 %v963
        %1680 = vmatpush1.msra.mxu0 %v962
        %1681 = vmatprep.subr.mxu0 %v966
        %1682 = vmatpush1.msra.mxu0 %v965
        %1683 = vmatprep.subr.mxu0 %v969
        %1684 = vmatpush1.msra.mxu0 %v968
        %1685 = vmatprep.subr.mxu0 %v972
        %1686 = vmatpush1.msra.mxu0 %v971
        %1687 = vmatprep.subr.mxu0 %v975
        %1688 = vmatpush1.msra.mxu0 %v974
        %1689 = vmatprep.subr.mxu0 %v978
        %1690 = vmatpush1.msra.mxu0 %v977
        %1691 = vmatprep.subr.mxu0 %v981
        %1692 = vmatpush1.msra.mxu0 %v980
        %1693 = vmatprep.subr.mxu0 %v984
        %1694 = vmatpush1.msra.mxu0 %v983
        %1695 = vmatprep.subr.mxu0 %v987
        %1696 = vmatpush1.msra.mxu0 %v986
        %1697 = vmatprep.subr.mxu0 %v990
        %1698 = vmatpush1.msra.mxu0 %v989
        %1699 = vmatprep.subr.mxu0 %v993
        %1700 = vmatpush1.msra.mxu0 %v992
        %1701 = vmatprep.subr.mxu0 %v996
        %1702 = vmatpush1.msra.mxu0 %v995
        %1703 = vmatprep.subr.mxu0 %v999
        %1704 = vmatpush1.msra.mxu0 %v998
        %1705 = vmatprep.subr.mxu0 %v1002
        %1706 = vmatpush1.msra.mxu0 %v1001
        %1707 = vmatprep.subr.mxu0 0.0
        %1708 = vmatpush1.msra.mxu0 0.0
        %1709 = vmatprep.subr.mxu0 0.0
        %1710 = vmatpush1.msra.mxu0 0.0
        %1711 = vmatprep.subr.mxu0 0.0
        %1712 = vmatpush1.msra.mxu0 0.0
        %1713 = vmatprep.subr.mxu0 0.0
        %1714 = vmatpush1.msra.mxu0 0.0
        %1715 = vmatprep.subr.mxu0 0.0
        %1716 = vmatpush1.msra.mxu0 0.0
        %1717 = vmatprep.subr.mxu0 0.0
        %1718 = vmatpush1.msra.mxu0 0.0
        %1719 = vmatprep.subr.mxu0 0.0
        %1720 = vmatpush1.msra.mxu0 0.0
        %1721 = vmatprep.subr.mxu0 0.0
        %1722 = vmatpush1.msra.mxu0 0.0
        %1723 = vmatprep.subr.mxu0 0.0
        %1724 = vmatpush1.msra.mxu0 0.0
        %1725 = vmatprep.subr.mxu0 0.0
        %1726 = vmatpush1.msra.mxu0 0.0
        %1727 = vmatprep.subr.mxu0 0.0
        %1728 = vmatpush1.msra.mxu0 0.0
        %1729 = vmatprep.subr.mxu0 0.0
        %1730 = vmatpush1.msra.mxu0 0.0
        %1731 = vmatprep.subr.mxu0 0.0
        %1732 = vmatpush1.msra.mxu0 0.0
        %1733 = vmatprep.subr.mxu0 0.0
        %1734 = vmatpush1.msra.mxu0 0.0
        %1735 = vmatprep.subr.mxu0 0.0
        %1736 = vmatpush1.msra.mxu0 0.0
        %1737 = vmatprep.subr.mxu0 0.0
        %1738 = vmatpush1.msra.mxu0 0.0
        %1739 = vmatprep.mubr.f32.mxu0 0.0
        %1740 = vmatmul.mubr.f32.gmra.mrb[0].mxu0 %v1671
        %v1741 = vpop.f32.mrb[0].mxu0
        %v1742 = vadd.f32 0.0, %v1741
        %v1743 = vpop.f32.mrb[0].mxu0
        %v1744 = vadd.f32 0.0, %v1743
        %1745 = vdwg.mxu0
        %1746 = vmatprep.subr.mxu0 0.0
        %1747 = vmatpush1.msra.mxu0 %v958
        %1748 = vmatprep.subr.mxu0 0.0
        %1749 = vmatpush1.msra.mxu0 %v961
        %1750 = vmatprep.subr.mxu0 0.0
        %1751 = vmatpush1.msra.mxu0 %v964
        %1752 = vmatprep.subr.mxu0 0.0
        %1753 = vmatpush1.msra.mxu0 %v967
        %1754 = vmatprep.subr.mxu0 0.0
        %1755 = vmatpush1.msra.mxu0 %v970
        %1756 = vmatprep.subr.mxu0 0.0
        %1757 = vmatpush1.msra.mxu0 %v973
        %1758 = vmatprep.subr.mxu0 0.0
        %1759 = vmatpush1.msra.mxu0 %v976
        %1760 = vmatprep.subr.mxu0 0.0
        %1761 = vmatpush1.msra.mxu0 %v979
        %1762 = vmatprep.subr.mxu0 0.0
        %1763 = vmatpush1.msra.mxu0 %v982
        %1764 = vmatprep.subr.mxu0 0.0
        %1765 = vmatpush1.msra.mxu0 %v985
        %1766 = vmatprep.subr.mxu0 0.0
        %1767 = vmatpush1.msra.mxu0 %v988
        %1768 = vmatprep.subr.mxu0 0.0
        %1769 = vmatpush1.msra.mxu0 %v991
        %1770 = vmatprep.subr.mxu0 0.0
        %1771 = vmatpush1.msra.mxu0 %v994
        %1772 = vmatprep.subr.mxu0 0.0
        %1773 = vmatpush1.msra.mxu0 %v997
        %1774 = vmatprep.subr.mxu0 0.0
        %1775 = vmatpush1.msra.mxu0 %v1000
        %1776 = vmatprep.subr.mxu0 0.0
        %1777 = vmatpush1.msra.mxu0 %v1003
        %1778 = vmatprep.subr.mxu0 0.0
        %1779 = vmatpush1.msra.mxu0 0.0
        %1780 = vmatprep.subr.mxu0 0.0
        %1781 = vmatpush1.msra.mxu0 0.0
        %1782 = vmatprep.subr.mxu0 0.0
        %1783 = vmatpush1.msra.mxu0 0.0
        %1784 = vmatprep.subr.mxu0 0.0
        %1785 = vmatpush1.msra.mxu0 0.0
        %1786 = vmatprep.subr.mxu0 0.0
        %1787 = vmatpush1.msra.mxu0 0.0
        %1788 = vmatprep.subr.mxu0 0.0
        %1789 = vmatpush1.msra.mxu0 0.0
        %1790 = vmatprep.subr.mxu0 0.0
        %1791 = vmatpush1.msra.mxu0 0.0
        %1792 = vmatprep.subr.mxu0 0.0
        %1793 = vmatpush1.msra.mxu0 0.0
        %1794 = vmatprep.subr.mxu0 0.0
        %1795 = vmatpush1.msra.mxu0 0.0
        %1796 = vmatprep.subr.mxu0 0.0
        %1797 = vmatpush1.msra.mxu0 0.0
        %1798 = vmatprep.subr.mxu0 0.0
        %1799 = vmatpush1.msra.mxu0 0.0
        %1800 = vmatprep.subr.mxu0 0.0
        %1801 = vmatpush1.msra.mxu0 0.0
        %1802 = vmatprep.subr.mxu0 0.0
        %1803 = vmatpush1.msra.mxu0 0.0
        %1804 = vmatprep.subr.mxu0 0.0
        %1805 = vmatpush1.msra.mxu0 0.0
        %1806 = vmatprep.subr.mxu0 0.0
        %1807 = vmatpush1.msra.mxu0 0.0
        %1808 = vmatprep.subr.mxu0 0.0
        %1809 = vmatpush1.msra.mxu0 0.0
        %1810 = vmatprep.mubr.f32.mxu0 0.0
        %1811 = vmatmul.mubr.f32.gmra.mrb[0].mxu0 %v1671
        %v1812 = vpop.f32.mrb[0].mxu0
        %v1813 = vadd.f32 0.0, %v1812
        %v1814 = vpop.f32.mrb[0].mxu0
        %1815 = vdwg.mxu0
        %v1816 = vadd.f32 %v1672, %v1742
        %v1817 = vxor.u32 %v1816, 2147483648
        %v1818 = vmul.f32 %v1817, 1.442695
        %v1819 = vpow.pop %v1818
        %v1820 = vadd.f32 %v1819, 1.0
        %v1821 = vrcp.pop %v1820
        %v1822 = vmul.f32 1.0, %v1821
        %v1823 = vadd.f32 %v1673, %v1744
        %v1824 = vxor.u32 %v1823, 2147483648
        %v1825 = vmul.f32 %v1824, 1.442695
        %v1826 = vpow.pop %v1825
        %v1827 = vadd.f32 %v1826, 1.0
        %v1828 = vrcp.pop %v1827
        %v1829 = vmul.f32 1.0, %v1828
        %v1830 = vadd.f32 %v1813, %v1168
        %v1831 = vmul.f32 %v1822, %v1830
        %v1832 = vadd.f32 %v1674, %v1831
        %v1833 = vtanh.pop %v1832
        %v1834 = vsub.f32 %v1671, %v1833
        %v1835 = vmul.f32 %v1829, %v1834
        %v1836 = vadd.f32 %v1833, %v1835
        %v1837 = vld [vmem:[%s854] sm:$0xff]
        %v1838 = vld [vmem:[%s854 + $0x8] sm:$0xff]
        %v1839 = vld [vmem:[%s854 + $0x10] sm:$0xff]
        %1840 = vmatprep.subr.mxu0 %v957
        %1841 = vmatpush1.msra.mxu0 %v956
        %1842 = vmatprep.subr.mxu0 %v960
        %1843 = vmatpush1.msra.mxu0 %v959
        %1844 = vmatprep.subr.mxu0 %v963
        %1845 = vmatpush1.msra.mxu0 %v962
        %1846 = vmatprep.subr.mxu0 %v966
        %1847 = vmatpush1.msra.mxu0 %v965
        %1848 = vmatprep.subr.mxu0 %v969
        %1849 = vmatpush1.msra.mxu0 %v968
        %1850 = vmatprep.subr.mxu0 %v972
        %1851 = vmatpush1.msra.mxu0 %v971
        %1852 = vmatprep.subr.mxu0 %v975
        %1853 = vmatpush1.msra.mxu0 %v974
        %1854 = vmatprep.subr.mxu0 %v978
        %1855 = vmatpush1.msra.mxu0 %v977
        %1856 = vmatprep.subr.mxu0 %v981
        %1857 = vmatpush1.msra.mxu0 %v980
        %1858 = vmatprep.subr.mxu0 %v984
        %1859 = vmatpush1.msra.mxu0 %v983
        %1860 = vmatprep.subr.mxu0 %v987
        %1861 = vmatpush1.msra.mxu0 %v986
        %1862 = vmatprep.subr.mxu0 %v990
        %1863 = vmatpush1.msra.mxu0 %v989
        %1864 = vmatprep.subr.mxu0 %v993
        %1865 = vmatpush1.msra.mxu0 %v992
        %1866 = vmatprep.subr.mxu0 %v996
        %1867 = vmatpush1.msra.mxu0 %v995
        %1868 = vmatprep.subr.mxu0 %v999
        %1869 = vmatpush1.msra.mxu0 %v998
        %1870 = vmatprep.subr.mxu0 %v1002
        %1871 = vmatpush1.msra.mxu0 %v1001
        %1872 = vmatprep.subr.mxu0 0.0
        %1873 = vmatpush1.msra.mxu0 0.0
        %1874 = vmatprep.subr.mxu0 0.0
        %1875 = vmatpush1.msra.mxu0 0.0
        %1876 = vmatprep.subr.mxu0 0.0
        %1877 = vmatpush1.msra.mxu0 0.0
        %1878 = vmatprep.subr.mxu0 0.0
        %1879 = vmatpush1.msra.mxu0 0.0
        %1880 = vmatprep.subr.mxu0 0.0
        %1881 = vmatpush1.msra.mxu0 0.0
        %1882 = vmatprep.subr.mxu0 0.0
        %1883 = vmatpush1.msra.mxu0 0.0
        %1884 = vmatprep.subr.mxu0 0.0
        %1885 = vmatpush1.msra.mxu0 0.0
        %1886 = vmatprep.subr.mxu0 0.0
        %1887 = vmatpush1.msra.mxu0 0.0
        %1888 = vmatprep.subr.mxu0 0.0
        %1889 = vmatpush1.msra.mxu0 0.0
        %1890 = vmatprep.subr.mxu0 0.0
        %1891 = vmatpush1.msra.mxu0 0.0
        %1892 = vmatprep.subr.mxu0 0.0
        %1893 = vmatpush1.msra.mxu0 0.0
        %1894 = vmatprep.subr.mxu0 0.0
        %1895 = vmatpush1.msra.mxu0 0.0
        %1896 = vmatprep.subr.mxu0 0.0
        %1897 = vmatpush1.msra.mxu0 0.0
        %1898 = vmatprep.subr.mxu0 0.0
        %1899 = vmatpush1.msra.mxu0 0.0
        %1900 = vmatprep.subr.mxu0 0.0
        %1901 = vmatpush1.msra.mxu0 0.0
        %1902 = vmatprep.subr.mxu0 0.0
        %1903 = vmatpush1.msra.mxu0 0.0
        %1904 = vmatprep.mubr.f32.mxu0 0.0
        %1905 = vmatmul.mubr.f32.gmra.mrb[0].mxu0 %v1836
        %v1906 = vpop.f32.mrb[0].mxu0
        %v1907 = vadd.f32 0.0, %v1906
        %v1908 = vpop.f32.mrb[0].mxu0
        %v1909 = vadd.f32 0.0, %v1908
        %1910 = vdwg.mxu0
        %1911 = vmatprep.subr.mxu0 0.0
        %1912 = vmatpush1.msra.mxu0 %v958
        %1913 = vmatprep.subr.mxu0 0.0
        %1914 = vmatpush1.msra.mxu0 %v961
        %1915 = vmatprep.subr.mxu0 0.0
        %1916 = vmatpush1.msra.mxu0 %v964
        %1917 = vmatprep.subr.mxu0 0.0
        %1918 = vmatpush1.msra.mxu0 %v967
        %1919 = vmatprep.subr.mxu0 0.0
        %1920 = vmatpush1.msra.mxu0 %v970
        %1921 = vmatprep.subr.mxu0 0.0
        %1922 = vmatpush1.msra.mxu0 %v973
        %1923 = vmatprep.subr.mxu0 0.0
        %1924 = vmatpush1.msra.mxu0 %v976
        %1925 = vmatprep.subr.mxu0 0.0
        %1926 = vmatpush1.msra.mxu0 %v979
        %1927 = vmatprep.subr.mxu0 0.0
        %1928 = vmatpush1.msra.mxu0 %v982
        %1929 = vmatprep.subr.mxu0 0.0
        %1930 = vmatpush1.msra.mxu0 %v985
        %1931 = vmatprep.subr.mxu0 0.0
        %1932 = vmatpush1.msra.mxu0 %v988
        %1933 = vmatprep.subr.mxu0 0.0
        %1934 = vmatpush1.msra.mxu0 %v991
        %1935 = vmatprep.subr.mxu0 0.0
        %1936 = vmatpush1.msra.mxu0 %v994
        %1937 = vmatprep.subr.mxu0 0.0
        %1938 = vmatpush1.msra.mxu0 %v997
        %1939 = vmatprep.subr.mxu0 0.0
        %1940 = vmatpush1.msra.mxu0 %v1000
        %1941 = vmatprep.subr.mxu0 0.0
        %1942 = vmatpush1.msra.mxu0 %v1003
        %1943 = vmatprep.subr.mxu0 0.0
        %1944 = vmatpush1.msra.mxu0 0.0
        %1945 = vmatprep.subr.mxu0 0.0
        %1946 = vmatpush1.msra.mxu0 0.0
        %1947 = vmatprep.subr.mxu0 0.0
        %1948 = vmatpush1.msra.mxu0 0.0
        %1949 = vmatprep.subr.mxu0 0.0
        %1950 = vmatpush1.msra.mxu0 0.0
        %1951 = vmatprep.subr.mxu0 0.0
        %1952 = vmatpush1.msra.mxu0 0.0
        %1953 = vmatprep.subr.mxu0 0.0
        %1954 = vmatpush1.msra.mxu0 0.0
        %1955 = vmatprep.subr.mxu0 0.0
        %1956 = vmatpush1.msra.mxu0 0.0
        %1957 = vmatprep.subr.mxu0 0.0
        %1958 = vmatpush1.msra.mxu0 0.0
        %1959 = vmatprep.subr.mxu0 0.0
        %1960 = vmatpush1.msra.mxu0 0.0
        %1961 = vmatprep.subr.mxu0 0.0
        %1962 = vmatpush1.msra.mxu0 0.0
        %1963 = vmatprep.subr.mxu0 0.0
        %1964 = vmatpush1.msra.mxu0 0.0
        %1965 = vmatprep.subr.mxu0 0.0
        %1966 = vmatpush1.msra.mxu0 0.0
        %1967 = vmatprep.subr.mxu0 0.0
        %1968 = vmatpush1.msra.mxu0 0.0
        %1969 = vmatprep.subr.mxu0 0.0
        %1970 = vmatpush1.msra.mxu0 0.0
        %1971 = vmatprep.subr.mxu0 0.0
        %1972 = vmatpush1.msra.mxu0 0.0
        %1973 = vmatprep.subr.mxu0 0.0
        %1974 = vmatpush1.msra.mxu0 0.0
        %1975 = vmatprep.mubr.f32.mxu0 0.0
        %1976 = vmatmul.mubr.f32.gmra.mrb[0].mxu0 %v1836
        %v1977 = vpop.f32.mrb[0].mxu0
        %v1978 = vadd.f32 0.0, %v1977
        %v1979 = vpop.f32.mrb[0].mxu0
        %1980 = vdwg.mxu0
        %v1981 = vadd.f32 %v1837, %v1907
        %v1982 = vxor.u32 %v1981, 2147483648
        %v1983 = vmul.f32 %v1982, 1.442695
        %v1984 = vpow.pop %v1983
        %v1985 = vadd.f32 %v1984, 1.0
        %v1986 = vrcp.pop %v1985
        %v1987 = vmul.f32 1.0, %v1986
        %v1988 = vadd.f32 %v1838, %v1909
        %v1989 = vxor.u32 %v1988, 2147483648
        %v1990 = vmul.f32 %v1989, 1.442695
        %v1991 = vpow.pop %v1990
        %v1992 = vadd.f32 %v1991, 1.0
        %v1993 = vrcp.pop %v1992
        %v1994 = vmul.f32 1.0, %v1993
        %v1995 = vadd.f32 %v1978, %v1168
        %v1996 = vmul.f32 %v1987, %v1995
        %v1997 = vadd.f32 %v1839, %v1996
        %v1998 = vtanh.pop %v1997
        %v1999 = vsub.f32 %v1836, %v1998
        %v2000 = vmul.f32 %v1994, %v1999
        %v2001 = vadd.f32 %v1998, %v2000
        %v2002 = vld [vmem:[%s903] sm:$0xff]
        %v2003 = vld [vmem:[%s903 + $0x8] sm:$0xff]
        %v2004 = vld [vmem:[%s903 + $0x10] sm:$0xff]
        %2005 = vmatprep.subr.mxu0 %v957
        %2006 = vmatpush1.msra.mxu0 %v956
        %2007 = vmatprep.subr.mxu0 %v960
        %2008 = vmatpush1.msra.mxu0 %v959
        %2009 = vmatprep.subr.mxu0 %v963
        %2010 = vmatpush1.msra.mxu0 %v962
        %2011 = vmatprep.subr.mxu0 %v966
        %2012 = vmatpush1.msra.mxu0 %v965
        %2013 = vmatprep.subr.mxu0 %v969
        %2014 = vmatpush1.msra.mxu0 %v968
        %2015 = vmatprep.subr.mxu0 %v972
        %2016 = vmatpush1.msra.mxu0 %v971
        %2017 = vmatprep.subr.mxu0 %v975
        %2018 = vmatpush1.msra.mxu0 %v974
        %2019 = vmatprep.subr.mxu0 %v978
        %2020 = vmatpush1.msra.mxu0 %v977
        %2021 = vmatprep.subr.mxu0 %v981
        %2022 = vmatpush1.msra.mxu0 %v980
        %2023 = vmatprep.subr.mxu0 %v984
        %2024 = vmatpush1.msra.mxu0 %v983
        %2025 = vmatprep.subr.mxu0 %v987
        %2026 = vmatpush1.msra.mxu0 %v986
        %2027 = vmatprep.subr.mxu0 %v990
        %2028 = vmatpush1.msra.mxu0 %v989
        %2029 = vmatprep.subr.mxu0 %v993
        %2030 = vmatpush1.msra.mxu0 %v992
        %2031 = vmatprep.subr.mxu0 %v996
        %2032 = vmatpush1.msra.mxu0 %v995
        %2033 = vmatprep.subr.mxu0 %v999
        %2034 = vmatpush1.msra.mxu0 %v998
        %2035 = vmatprep.subr.mxu0 %v1002
        %2036 = vmatpush1.msra.mxu0 %v1001
        %2037 = vmatprep.subr.mxu0 0.0
        %2038 = vmatpush1.msra.mxu0 0.0
        %2039 = vmatprep.subr.mxu0 0.0
        %2040 = vmatpush1.msra.mxu0 0.0
        %2041 = vmatprep.subr.mxu0 0.0
        %2042 = vmatpush1.msra.mxu0 0.0
        %2043 = vmatprep.subr.mxu0 0.0
        %2044 = vmatpush1.msra.mxu0 0.0
        %2045 = vmatprep.subr.mxu0 0.0
        %2046 = vmatpush1.msra.mxu0 0.0
        %2047 = vmatprep.subr.mxu0 0.0
        %2048 = vmatpush1.msra.mxu0 0.0
        %2049 = vmatprep.subr.mxu0 0.0
        %2050 = vmatpush1.msra.mxu0 0.0
        %2051 = vmatprep.subr.mxu0 0.0
        %2052 = vmatpush1.msra.mxu0 0.0
        %2053 = vmatprep.subr.mxu0 0.0
        %2054 = vmatpush1.msra.mxu0 0.0
        %2055 = vmatprep.subr.mxu0 0.0
        %2056 = vmatpush1.msra.mxu0 0.0
        %2057 = vmatprep.subr.mxu0 0.0
        %2058 = vmatpush1.msra.mxu0 0.0
        %2059 = vmatprep.subr.mxu0 0.0
        %2060 = vmatpush1.msra.mxu0 0.0
        %2061 = vmatprep.subr.mxu0 0.0
        %2062 = vmatpush1.msra.mxu0 0.0
        %2063 = vmatprep.subr.mxu0 0.0
        %2064 = vmatpush1.msra.mxu0 0.0
        %2065 = vmatprep.subr.mxu0 0.0
        %2066 = vmatpush1.msra.mxu0 0.0
        %2067 = vmatprep.subr.mxu0 0.0
        %2068 = vmatpush1.msra.mxu0 0.0
        %2069 = vmatprep.mubr.f32.mxu0 0.0
        %2070 = vmatmul.mubr.f32.gmra.mrb[0].mxu0 %v2001
        %v2071 = vpop.f32.mrb[0].mxu0
        %v2072 = vadd.f32 0.0, %v2071
        %v2073 = vpop.f32.mrb[0].mxu0
        %v2074 = vadd.f32 0.0, %v2073
        %2075 = vdwg.mxu0
        %2076 = vmatprep.subr.mxu0 0.0
        %2077 = vmatpush1.msra.mxu0 %v958
        %2078 = vmatprep.subr.mxu0 0.0
        %2079 = vmatpush1.msra.mxu0 %v961
        %2080 = vmatprep.subr.mxu0 0.0
        %2081 = vmatpush1.msra.mxu0 %v964
        %2082 = vmatprep.subr.mxu0 0.0
        %2083 = vmatpush1.msra.mxu0 %v967
        %2084 = vmatprep.subr.mxu0 0.0
        %2085 = vmatpush1.msra.mxu0 %v970
        %2086 = vmatprep.subr.mxu0 0.0
        %2087 = vmatpush1.msra.mxu0 %v973
        %2088 = vmatprep.subr.mxu0 0.0
        %2089 = vmatpush1.msra.mxu0 %v976
        %2090 = vmatprep.subr.mxu0 0.0
        %2091 = vmatpush1.msra.mxu0 %v979
        %2092 = vmatprep.subr.mxu0 0.0
        %2093 = vmatpush1.msra.mxu0 %v982
        %2094 = vmatprep.subr.mxu0 0.0
        %2095 = vmatpush1.msra.mxu0 %v985
        %2096 = vmatprep.subr.mxu0 0.0
        %2097 = vmatpush1.msra.mxu0 %v988
        %2098 = vmatprep.subr.mxu0 0.0
        %2099 = vmatpush1.msra.mxu0 %v991
        %2100 = vmatprep.subr.mxu0 0.0
        %2101 = vmatpush1.msra.mxu0 %v994
        %2102 = vmatprep.subr.mxu0 0.0
        %2103 = vmatpush1.msra.mxu0 %v997
        %2104 = vmatprep.subr.mxu0 0.0
        %2105 = vmatpush1.msra.mxu0 %v1000
        %2106 = vmatprep.subr.mxu0 0.0
        %2107 = vmatpush1.msra.mxu0 %v1003
        %2108 = vmatprep.subr.mxu0 0.0
        %2109 = vmatpush1.msra.mxu0 0.0
        %2110 = vmatprep.subr.mxu0 0.0
        %2111 = vmatpush1.msra.mxu0 0.0
        %2112 = vmatprep.subr.mxu0 0.0
        %2113 = vmatpush1.msra.mxu0 0.0
        %2114 = vmatprep.subr.mxu0 0.0
        %2115 = vmatpush1.msra.mxu0 0.0
        %2116 = vmatprep.subr.mxu0 0.0
        %2117 = vmatpush1.msra.mxu0 0.0
        %2118 = vmatprep.subr.mxu0 0.0
        %2119 = vmatpush1.msra.mxu0 0.0
        %2120 = vmatprep.subr.mxu0 0.0
        %2121 = vmatpush1.msra.mxu0 0.0
        %2122 = vmatprep.subr.mxu0 0.0
        %2123 = vmatpush1.msra.mxu0 0.0
        %2124 = vmatprep.subr.mxu0 0.0
        %2125 = vmatpush1.msra.mxu0 0.0
        %2126 = vmatprep.subr.mxu0 0.0
        %2127 = vmatpush1.msra.mxu0 0.0
        %2128 = vmatprep.subr.mxu0 0.0
        %2129 = vmatpush1.msra.mxu0 0.0
        %2130 = vmatprep.subr.mxu0 0.0
        %2131 = vmatpush1.msra.mxu0 0.0
        %2132 = vmatprep.subr.mxu0 0.0
        %2133 = vmatpush1.msra.mxu0 0.0
        %2134 = vmatprep.subr.mxu0 0.0
        %2135 = vmatpush1.msra.mxu0 0.0
        %2136 = vmatprep.subr.mxu0 0.0
        %2137 = vmatpush1.msra.mxu0 0.0
        %2138 = vmatprep.subr.mxu0 0.0
        %2139 = vmatpush1.msra.mxu0 0.0
        %2140 = vmatprep.mubr.f32.mxu0 0.0
        %2141 = vmatmul.mubr.f32.gmra.mrb[0].mxu0 %v2001
        %v2142 = vpop.f32.mrb[0].mxu0
        %v2143 = vadd.f32 0.0, %v2142
        %v2144 = vpop.f32.mrb[0].mxu0
        %2145 = vdwg.mxu0
        %v2146 = vadd.f32 %v2002, %v2072
        %v2147 = vxor.u32 %v2146, 2147483648
        %v2148 = vmul.f32 %v2147, 1.442695
        %v2149 = vpow.pop %v2148
        %v2150 = vadd.f32 %v2149, 1.0
        %v2151 = vrcp.pop %v2150
        %v2152 = vmul.f32 1.0, %v2151
        %v2153 = vadd.f32 %v2003, %v2074
        %v2154 = vxor.u32 %v2153, 2147483648
        %v2155 = vmul.f32 %v2154, 1.442695
        %v2156 = vpow.pop %v2155
        %v2157 = vadd.f32 %v2156, 1.0
        %v2158 = vrcp.pop %v2157
        %v2159 = vmul.f32 1.0, %v2158
        %v2160 = vadd.f32 %v2143, %v1168
        %v2161 = vmul.f32 %v2152, %v2160
        %v2162 = vadd.f32 %v2004, %v2161
        %v2163 = vtanh.pop %v2162
        %v2164 = vsub.f32 %v2001, %v2163
        %v2165 = vmul.f32 %v2159, %v2164
        %v2166 = vadd.f32 %v2163, %v2165
        %v2167 = vld [vmem:[%s952] sm:$0xff]
        %v2168 = vld [vmem:[%s952 + $0x8] sm:$0xff]
        %v2169 = vld [vmem:[%s952 + $0x10] sm:$0xff]
        %2170 = vmatprep.subr.mxu0 %v957
        %2171 = vmatpush1.msra.mxu0 %v956
        %2172 = vmatprep.subr.mxu0 %v960
        %2173 = vmatpush1.msra.mxu0 %v959
        %2174 = vmatprep.subr.mxu0 %v963
        %2175 = vmatpush1.msra.mxu0 %v962
        %2176 = vmatprep.subr.mxu0 %v966
        %2177 = vmatpush1.msra.mxu0 %v965
        %2178 = vmatprep.subr.mxu0 %v969
        %2179 = vmatpush1.msra.mxu0 %v968
        %2180 = vmatprep.subr.mxu0 %v972
        %2181 = vmatpush1.msra.mxu0 %v971
        %2182 = vmatprep.subr.mxu0 %v975
        %2183 = vmatpush1.msra.mxu0 %v974
        %2184 = vmatprep.subr.mxu0 %v978
        %2185 = vmatpush1.msra.mxu0 %v977
        %2186 = vmatprep.subr.mxu0 %v981
        %2187 = vmatpush1.msra.mxu0 %v980
        %2188 = vmatprep.subr.mxu0 %v984
        %2189 = vmatpush1.msra.mxu0 %v983
        %2190 = vmatprep.subr.mxu0 %v987
        %2191 = vmatpush1.msra.mxu0 %v986
        %2192 = vmatprep.subr.mxu0 %v990
        %2193 = vmatpush1.msra.mxu0 %v989
        %2194 = vmatprep.subr.mxu0 %v993
        %2195 = vmatpush1.msra.mxu0 %v992
        %2196 = vmatprep.subr.mxu0 %v996
        %2197 = vmatpush1.msra.mxu0 %v995
        %2198 = vmatprep.subr.mxu0 %v999
        %2199 = vmatpush1.msra.mxu0 %v998
        %2200 = vmatprep.subr.mxu0 %v1002
        %2201 = vmatpush1.msra.mxu0 %v1001
        %2202 = vmatprep.subr.mxu0 0.0
        %2203 = vmatpush1.msra.mxu0 0.0
        %2204 = vmatprep.subr.mxu0 0.0
        %2205 = vmatpush1.msra.mxu0 0.0
        %2206 = vmatprep.subr.mxu0 0.0
        %2207 = vmatpush1.msra.mxu0 0.0
        %2208 = vmatprep.subr.mxu0 0.0
        %2209 = vmatpush1.msra.mxu0 0.0
        %2210 = vmatprep.subr.mxu0 0.0
        %2211 = vmatpush1.msra.mxu0 0.0
        %2212 = vmatprep.subr.mxu0 0.0
        %2213 = vmatpush1.msra.mxu0 0.0
        %2214 = vmatprep.subr.mxu0 0.0
        %2215 = vmatpush1.msra.mxu0 0.0
        %2216 = vmatprep.subr.mxu0 0.0
        %2217 = vmatpush1.msra.mxu0 0.0
        %2218 = vmatprep.subr.mxu0 0.0
        %2219 = vmatpush1.msra.mxu0 0.0
        %2220 = vmatprep.subr.mxu0 0.0
        %2221 = vmatpush1.msra.mxu0 0.0
        %2222 = vmatprep.subr.mxu0 0.0
        %2223 = vmatpush1.msra.mxu0 0.0
        %2224 = vmatprep.subr.mxu0 0.0
        %2225 = vmatpush1.msra.mxu0 0.0
        %2226 = vmatprep.subr.mxu0 0.0
        %2227 = vmatpush1.msra.mxu0 0.0
        %2228 = vmatprep.subr.mxu0 0.0
        %2229 = vmatpush1.msra.mxu0 0.0
        %2230 = vmatprep.subr.mxu0 0.0
        %2231 = vmatpush1.msra.mxu0 0.0
        %2232 = vmatprep.subr.mxu0 0.0
        %2233 = vmatpush1.msra.mxu0 0.0
        %2234 = vmatprep.mubr.f32.mxu0 0.0
        %2235 = vmatmul.mubr.f32.gmra.mrb[0].mxu0 %v2166
        %v2236 = vpop.f32.mrb[0].mxu0
        %v2237 = vadd.f32 0.0, %v2236
        %v2238 = vpop.f32.mrb[0].mxu0
        %v2239 = vadd.f32 0.0, %v2238
        %2240 = vdwg.mxu0
        %2241 = vmatprep.subr.mxu0 0.0
        %2242 = vmatpush1.msra.mxu0 %v958
        %2243 = vmatprep.subr.mxu0 0.0
        %2244 = vmatpush1.msra.mxu0 %v961
        %2245 = vmatprep.subr.mxu0 0.0
        %2246 = vmatpush1.msra.mxu0 %v964
        %2247 = vmatprep.subr.mxu0 0.0
        %2248 = vmatpush1.msra.mxu0 %v967
        %2249 = vmatprep.subr.mxu0 0.0
        %2250 = vmatpush1.msra.mxu0 %v970
        %2251 = vmatprep.subr.mxu0 0.0
        %2252 = vmatpush1.msra.mxu0 %v973
        %2253 = vmatprep.subr.mxu0 0.0
        %2254 = vmatpush1.msra.mxu0 %v976
        %2255 = vmatprep.subr.mxu0 0.0
        %2256 = vmatpush1.msra.mxu0 %v979
        %2257 = vmatprep.subr.mxu0 0.0
        %2258 = vmatpush1.msra.mxu0 %v982
        %2259 = vmatprep.subr.mxu0 0.0
        %2260 = vmatpush1.msra.mxu0 %v985
        %2261 = vmatprep.subr.mxu0 0.0
        %2262 = vmatpush1.msra.mxu0 %v988
        %2263 = vmatprep.subr.mxu0 0.0
        %2264 = vmatpush1.msra.mxu0 %v991
        %2265 = vmatprep.subr.mxu0 0.0
        %2266 = vmatpush1.msra.mxu0 %v994
        %2267 = vmatprep.subr.mxu0 0.0
        %2268 = vmatpush1.msra.mxu0 %v997
        %2269 = vmatprep.subr.mxu0 0.0
        %2270 = vmatpush1.msra.mxu0 %v1000
        %2271 = vmatprep.subr.mxu0 0.0
        %2272 = vmatpush1.msra.mxu0 %v1003
        %2273 = vmatprep.subr.mxu0 0.0
        %2274 = vmatpush1.msra.mxu0 0.0
        %2275 = vmatprep.subr.mxu0 0.0
        %2276 = vmatpush1.msra.mxu0 0.0
        %2277 = vmatprep.subr.mxu0 0.0
        %2278 = vmatpush1.msra.mxu0 0.0
        %2279 = vmatprep.subr.mxu0 0.0
        %2280 = vmatpush1.msra.mxu0 0.0
        %2281 = vmatprep.subr.mxu0 0.0
        %2282 = vmatpush1.msra.mxu0 0.0
        %2283 = vmatprep.subr.mxu0 0.0
        %2284 = vmatpush1.msra.mxu0 0.0
        %2285 = vmatprep.subr.mxu0 0.0
        %2286 = vmatpush1.msra.mxu0 0.0
        %2287 = vmatprep.subr.mxu0 0.0
        %2288 = vmatpush1.msra.mxu0 0.0
        %2289 = vmatprep.subr.mxu0 0.0
        %2290 = vmatpush1.msra.mxu0 0.0
        %2291 = vmatprep.subr.mxu0 0.0
        %2292 = vmatpush1.msra.mxu0 0.0
        %2293 = vmatprep.subr.mxu0 0.0
        %2294 = vmatpush1.msra.mxu0 0.0
        %2295 = vmatprep.subr.mxu0 0.0
        %2296 = vmatpush1.msra.mxu0 0.0
        %2297 = vmatprep.subr.mxu0 0.0
        %2298 = vmatpush1.msra.mxu0 0.0
        %2299 = vmatprep.subr.mxu0 0.0
        %2300 = vmatpush1.msra.mxu0 0.0
        %2301 = vmatprep.subr.mxu0 0.0
        %2302 = vmatpush1.msra.mxu0 0.0
        %2303 = vmatprep.subr.mxu0 0.0
        %2304 = vmatpush1.msra.mxu0 0.0
        %2305 = vmatprep.mubr.f32.mxu0 0.0
        %2306 = vmatmul.mubr.f32.gmra.mrb[0].mxu0 %v2166
        %v2307 = vpop.f32.mrb[0].mxu0
        %v2308 = vadd.f32 0.0, %v2307
        %v2309 = vpop.f32.mrb[0].mxu0
        %2310 = vdwg.mxu0
        %v2311 = vadd.f32 %v2167, %v2237
        %v2312 = vxor.u32 %v2311, 2147483648
        %v2313 = vmul.f32 %v2312, 1.442695
        %v2314 = vpow.pop %v2313
        %v2315 = vadd.f32 %v2314, 1.0
        %v2316 = vrcp.pop %v2315
        %v2317 = vmul.f32 1.0, %v2316
        %v2318 = vadd.f32 %v2168, %v2239
        %v2319 = vxor.u32 %v2318, 2147483648
        %v2320 = vmul.f32 %v2319, 1.442695
        %v2321 = vpow.pop %v2320
        %v2322 = vadd.f32 %v2321, 1.0
        %v2323 = vrcp.pop %v2322
        %v2324 = vmul.f32 1.0, %v2323
        %v2325 = vadd.f32 %v2308, %v1168
        %v2326 = vmul.f32 %v2317, %v2325
        %v2327 = vadd.f32 %v2169, %v2326
        %v2328 = vtanh.pop %v2327
        %v2329 = vsub.f32 %v2166, %v2328
        %v2330 = vmul.f32 %v2324, %v2329
        %v2331 = vadd.f32 %v2328, %v2330
        %2332 = vst [vmem:[#allocation3] sm:$0xff] %v2331
        %p2333 = scmp.eq.s32.totalorder %s25, 1
        // Predicated region
        $region53: #{tpu_custom_call.1} parent=35 // pred_check
          %p2334 = pneg %p2333
        $region54: #{tpu_custom_call.1} parent=35 // pred_check_branch
          %2336 = sbr.rel (%p2334) target = $region56
        $region55: #{tpu_custom_call.1} parent=35 // pred_region
          %2337 = vst [vmem:[#allocation10] sm:$0xff] %v2331
        $region56: #{tpu_custom_call.1} parent=35 // pred_fallthru
          _
        // Predicated region
        $region57: #{tpu_custom_call.1} parent=35 // pred_check
          %p2338 = pneg %p141
        $region58: #{tpu_custom_call.1} parent=35 // pred_check_branch
          %2340 = sbr.rel (%p2338) target = $region60
        $region59: #{tpu_custom_call.1} parent=35 // pred_region
          %s2342 = ssub.s32 128, 128
          %2343 = vsyncadd [#allocation6], %s2342
          %s2344 = smul.addr %s24, 128
          %s2345 = scalar_lea.hbm %s4, %s2344
          %s2347 = sshll.u32 [#allocation10], 4
          %s2348 = int_to_ptr.vmem [resolvable:$true] %s2347
          %2350 = dma.vmem_to_hbm [thread:$0]  %s2348, 128, %s2345, [#allocation6]
        $region60: #{tpu_custom_call.1} parent=35 // pred_fallthru
          _
        // Predicated region
        $region61: #{tpu_custom_call.1} parent=35 // pred_check
          %p2351 = pneg %p141
        $region62: #{tpu_custom_call.1} parent=35 // pred_check_branch
          %2353 = sbr.rel (%p2351) target = $region64
        $region63: #{tpu_custom_call.1} parent=35 // pred_region
          %2354 = dma.done [#allocation6], 128
        $region64: #{tpu_custom_call.1} parent=35 // pred_fallthru
          _
      $region36: #{tpu_custom_call.1} parent=5 // pred_fallthru
        _
      %p2355 = scmp.le.s32.totalorder 2, %s15
      // Predicated region
      $region65: #{tpu_custom_call.1} parent=5 // pred_check
        %p2356 = pneg %p2355
      $region66: #{tpu_custom_call.1} parent=5 // pred_check_branch
        %2358 = sbr.rel (%p2356) target = $region68
      $region67: #{tpu_custom_call.1} parent=5 // pred_region
        %s2359 = ssub.s32 %s15, 2
      $region68: #{tpu_custom_call.1} parent=5 // pred_fallthru
        _
    $region6: #{tpu_custom_call.1} parent=1 // loop_footer
      %s19 = sadd.s32 1, %s15
    $region7: #{tpu_custom_call.1} parent=1 // loop_footer_branch
      %14 = sbr.rel target = $region3
    $region8: #{tpu_custom_call.1} parent=1 // loop_exit
      _
    %2360 = vsyncpa [#allocation5], 1
    %s2361 = scalar_lea.sflag [#allocation5], 1
    %2362 = vsyncpa %s2361, 1
    %2363 = vsyncpa [#allocation8], 1
    %2364 = vsyncpa [#allocation6], 1
    %s2365 = scalar_lea.sflag [#allocation6], 1
    %2366 = vsyncpa %s2365, 1

</llo_original>
